<compile_context>
chip_gen: v6e
topology: v6e:2x2x1
jax: 0.10.0
libtpu: 0.0.40
codegen_flags: <defaults>
</compile_context>

<pallas_src>
from functools import partial

import numpy as np
import jax
import jax.numpy as jnp
from jax.experimental import pallas as pl
from jax.experimental.pallas import tpu as pltpu

# -------------------- hyper-params (stand-in for `args`) --------------------
SAMPLE_RATE = 16000
N_FFT = 512
WIN_LENGTH = 400
HOP_LENGTH = 160
N_MELS = 40
EMBEDDING_DIM = 32
NUM_CLASSES = 10
N_PER_SPEAKER = 1
C1, C2 = 64, 64            # TDNN channel widths

N_BINS = N_FFT // 2 + 1    # 257 rfft bins
NBP = 384                  # rfft bins padded to a lane multiple (128)
CP = 128                   # all channel dims padded to one 128-lane tile


# ============================ constant builders (run once) ============================

def make_dft_mats(n_fft=N_FFT, win_length=WIN_LENGTH):
    """Windowed real-DFT matrices (periodic hamming, window centered in n_fft)."""
    n = np.arange(win_length)
    ham = 0.54 - 0.46 * np.cos(2.0 * np.pi * n / win_length)   # periodic hamming
    window = np.zeros(n_fft, np.float64)
    lpad = (n_fft - win_length) // 2
    window[lpad:lpad + win_length] = ham
    k = np.arange(n_fft // 2 + 1)
    nn = np.arange(n_fft)
    ang = 2.0 * np.pi * np.outer(nn, k) / n_fft
    cos_mat = (window[:, None] * np.cos(ang)).astype(np.float32)   # (n_fft, n_bins)
    sin_mat = (window[:, None] * np.sin(ang)).astype(np.float32)
    return cos_mat, sin_mat


def make_mel_filterbank(n_freqs, n_mels, sr, f_min=0.0, f_max=None):
    """torchaudio defaults: HTK mel scale, norm=None. Returns (n_freqs, n_mels)."""
    f_max = f_max if f_max is not None else sr / 2.0
    all_freqs = np.linspace(0, sr // 2, n_freqs)
    hz2mel = lambda f: 2595.0 * np.log10(1.0 + f / 700.0)
    mel2hz = lambda m: 700.0 * (10.0 ** (m / 2595.0) - 1.0)
    m_pts = np.linspace(hz2mel(f_min), hz2mel(f_max), n_mels + 2)
    f_pts = mel2hz(m_pts)
    f_diff = f_pts[1:] - f_pts[:-1]
    slopes = f_pts[None, :] - all_freqs[:, None]
    down = -slopes[:, :-2] / f_diff[:-1]
    up = slopes[:, 2:] / f_diff[1:]
    fb = np.maximum(0.0, np.minimum(down, up))
    return fb.astype(np.float32)


def init_params(seed=42):
    """Deterministic synthetic weights, pre-padded / pre-transposed for the fused kernel."""
    key = jax.random.PRNGKey(seed)
    ks = jax.random.split(key, 10)
    s = 0.05
    conv1_w = jax.random.normal(ks[0], (C1, N_MELS, 5), jnp.float32) * s   # (Cout,Cin,K)
    conv1_b = jnp.zeros((C1,), jnp.float32)
    conv2_w = jax.random.normal(ks[1], (C1, C1, 3), jnp.float32) * s
    conv2_b = jnp.zeros((C1,), jnp.float32)
    conv3_w = jax.random.normal(ks[2], (C2, C1, 1), jnp.float32) * s
    conv3_b = jnp.zeros((C2,), jnp.float32)
    fc_w = jax.random.normal(ks[3], (EMBEDDING_DIM, 2 * C2), jnp.float32) * s
    fc_b = jnp.zeros((EMBEDDING_DIM,), jnp.float32)
    cls_w = jax.random.normal(ks[4], (NUM_CLASSES, EMBEDDING_DIM), jnp.float32) * s
    cls_b = jnp.zeros((NUM_CLASSES,), jnp.float32)

    # ---- conv taps: stack [conv1 k=0..4, conv2 k=0..2, conv3] as (Cin_pad, Cout_pad) ----
    convw = jnp.zeros((9, CP, CP), jnp.float32)
    for k in range(5):
        convw = convw.at[k, :N_MELS, :C1].set(conv1_w[:, :, k].T)
    for k in range(3):
        convw = convw.at[5 + k, :C1, :C1].set(conv2_w[:, :, k].T)
    convw = convw.at[8, :C1, :C2].set(conv3_w[:, :, 0].T)
    convw = convw.astype(jnp.bfloat16)

    # ---- biases packed into one (5, 128) f32 tile: [b1, b2, b3, fc_b, cls_b] ----
    biases = jnp.zeros((5, CP), jnp.float32)
    biases = biases.at[0, :C1].set(conv1_b)
    biases = biases.at[1, :C1].set(conv2_b)
    biases = biases.at[2, :C2].set(conv3_b)
    biases = biases.at[3, :EMBEDDING_DIM].set(fc_b)
    biases = biases.at[4, :NUM_CLASSES].set(cls_b)

    # ---- FC: pooled layout in-kernel is [mean(128-pad) | std(128-pad)] -> (256, 128) ----
    fc_wt = fc_w.T                                     # (2*C2, EMB) = (128, 32)
    fcw = jnp.zeros((2 * CP, CP), jnp.float32)
    fcw = fcw.at[:C2, :EMBEDDING_DIM].set(fc_wt[:C2])          # mean half
    fcw = fcw.at[CP:CP + C2, :EMBEDDING_DIM].set(fc_wt[C2:])   # std half
    fcw = fcw.astype(jnp.bfloat16)

    # ---- classifier ----
    clsw = jnp.zeros((CP, CP), jnp.float32)
    clsw = clsw.at[:EMBEDDING_DIM, :NUM_CLASSES].set(cls_w.T)
    clsw = clsw.astype(jnp.bfloat16)

    # ---- front-end constants: cos|sin packed into one RHS; mel fb padded ----
    cos_mat, sin_mat = make_dft_mats()                 # (512, 257) each
    dft = np.zeros((N_FFT, 2 * NBP), np.float32)
    dft[:, :N_BINS] = cos_mat
    dft[:, NBP:NBP + N_BINS] = sin_mat

    mel_fb = make_mel_filterbank(N_BINS, N_MELS, SAMPLE_RATE)   # (257, 40)
    melfb = np.zeros((NBP, CP), np.float32)
    melfb[:N_BINS, :N_MELS] = mel_fb

    return dict(dft=jnp.asarray(dft), melfb=jnp.asarray(melfb), convw=convw,
                biases=biases, fcw=fcw, clsw=clsw)


# ============================ XLA front-end glue (tiny) ============================

def pre_emphasis(x, coef=0.97):
    # x: (N, T); reflect-pad 1 on the left then y[t] = x[t] - coef * x[t-1]
    xp = jnp.concatenate([x[:, 1:2], x], axis=1)
    return xp[:, 1:] - coef * xp[:, :-1]


def frame_signal(x, n_fft=N_FFT, hop=HOP_LENGTH):
    # center=True, reflect padding of n_fft//2 (torchaudio Spectrogram default)
    pad = n_fft // 2
    xp = jnp.pad(x, ((0, 0), (pad, pad)), mode="reflect")
    n_frames = 1 + (xp.shape[1] - n_fft) // hop
    idx = jnp.arange(n_frames)[:, None] * hop + jnp.arange(n_fft)[None, :]
    return xp[:, idx]                                  # (N, n_frames, n_fft)


# ============================ the single fused Pallas kernel ============================

def _fused_model_kernel(frames_ref, dft_ref, melfb_ref, convw_ref, biases_ref,
                        fcw_ref, clsw_ref, out_ref, *, n_frames):
    """Whole model body for one utterance; all intermediates live in VMEM."""
    T = n_frames
    f32, bf16 = jnp.float32, jnp.bfloat16

    # ---------- front-end (kept in f32): windowed DFT power -> mel -> log -> InstanceNorm ----------
    frames = frames_ref[...]                                              # (T, 512) f32
    spec = jnp.dot(frames, dft_ref[...], preferred_element_type=f32)      # (T, 2*NBP)
    re = spec[:, :NBP]
    im = spec[:, NBP:]
    power = re * re + im * im                                             # (T, NBP)
    mel = jnp.dot(power, melfb_ref[...], preferred_element_type=f32)      # (T, CP); pad cols 0
    logmel = jnp.log(mel + 1e-6)
    mu = jnp.mean(logmel, axis=0, keepdims=True)
    var = jnp.mean((logmel - mu) ** 2, axis=0, keepdims=True)
    feat = (logmel - mu) * jax.lax.rsqrt(var + 1e-5)                      # (T, CP); pad cols -> 0

    b_all = biases_ref[...]                                               # (5, CP) f32
    zpad = jnp.zeros((2, CP), f32)

    # ---------- conv1: K=5, dilation=1, padding=2 (in-kernel tap accumulation) ----------
    xp = jnp.concatenate([zpad, feat, zpad], axis=0)                      # (T+4, CP)
    acc = jnp.zeros((T, CP), f32)
    for k in range(5):
        acc = acc + jnp.dot(xp[k:k + T, :].astype(bf16), convw_ref[k],
                            preferred_element_type=f32)
    h = jnp.maximum(acc + b_all[0:1, :], 0.0)

    # ---------- conv2: K=3, dilation=2, padding=2 ----------
    xp = jnp.concatenate([zpad, h, zpad], axis=0)                         # (T+4, CP)
    acc = jnp.zeros((T, CP), f32)
    for k in range(3):
        acc = acc + jnp.dot(xp[2 * k:2 * k + T, :].astype(bf16), convw_ref[5 + k],
                            preferred_element_type=f32)
    h = jnp.maximum(acc + b_all[1:2, :], 0.0)

    # ---------- conv3: K=1 ----------
    h = jnp.maximum(
        jnp.dot(h.astype(bf16), convw_ref[8], preferred_element_type=f32) + b_all[2:3, :],
        0.0)                                                              # (T, CP)

    # ---------- stats pooling (mean / std over time) ----------
    mean = jnp.mean(h, axis=0, keepdims=True)                             # (1, CP)
    std = jnp.sqrt(jnp.mean((h - mean) ** 2, axis=0, keepdims=True) + 1e-8)
    pooled = jnp.concatenate([mean, std], axis=1)                         # (1, 2*CP)

    # ---------- FC embedding + softmax-head linear (fused) ----------
    emb = jnp.dot(pooled.astype(bf16), fcw_ref[...],
                  preferred_element_type=f32) + b_all[3:4, :]             # (1, CP)
    logits = jnp.dot(emb.astype(bf16), clsw_ref[...],
                     preferred_element_type=f32) + b_all[4:5, :]          # (1, CP)
    out_ref[...] = logits


def fused_model(params, frames):
    """frames: (N, F, n_fft) f32 -> lane-padded logits (N, 1, CP)."""
    N, F, _ = frames.shape
    return pl.pallas_call(
        partial(_fused_model_kernel, n_frames=F),
        out_shape=jax.ShapeDtypeStruct((N, 1, CP), jnp.float32),
        grid=(N,),
        in_specs=[
            pl.BlockSpec((None, F, N_FFT), lambda b: (b, 0, 0)),   # per-utterance frames
            pl.BlockSpec((N_FFT, 2 * NBP), lambda b: (0, 0)),      # cos|sin DFT (resident)
            pl.BlockSpec((NBP, CP), lambda b: (0, 0)),             # mel filterbank
            pl.BlockSpec((9, CP, CP), lambda b: (0, 0, 0)),        # conv taps (bf16)
            pl.BlockSpec((5, CP), lambda b: (0, 0)),               # packed biases
            pl.BlockSpec((2 * CP, CP), lambda b: (0, 0)),          # FC weight (bf16)
            pl.BlockSpec((CP, CP), lambda b: (0, 0)),              # classifier weight (bf16)
        ],
        out_specs=pl.BlockSpec((None, 1, CP), lambda b: (b, 0, 0)),
        compiler_params=pltpu.CompilerParams(
            dimension_semantics=("parallel",)),                    # megacore-shard over utterances
    )(frames, params["dft"], params["melfb"], params["convw"], params["biases"],
      params["fcw"], params["clsw"])


# ============================ model forward ============================

def forward(params, x, label):
    # x: (B, nPerSpeaker, T_samples) -> flatten utterances
    sig = x.reshape(-1, x.shape[-1]).astype(jnp.float32)
    sig = pre_emphasis(sig)
    frames = frame_signal(sig)                                    # (N, F, 512)

    logits_pad = fused_model(params, frames)                      # (N, 1, CP)
    logits = logits_pad[:, 0, :NUM_CLASSES]                       # (N, num_classes)

    # Softmax loss head: CE + top-1 accuracy (matches the plain `Softmax` loss)
    logp = jax.nn.log_softmax(logits, axis=-1)
    nll = -jnp.take_along_axis(logp, label[:, None].astype(jnp.int32), axis=-1)[:, 0]
    loss = nll.mean()
    acc = 100.0 * jnp.mean((jnp.argmax(logits, axis=-1) == label).astype(jnp.float32))
    return loss, acc, logits


# ============================ main ============================

if __name__ == "__main__":
    key = jax.random.PRNGKey(0)
    B, T_SAMPLES = 2, 3200   # 2 speakers, 0.2 s of 16 kHz audio each
    x = jax.random.normal(key, (B, N_PER_SPEAKER, T_SAMPLES), jnp.float32)
    label = jnp.array([1, 3], dtype=jnp.int32)

    params = init_params()

    loss, acc, logits = jax.jit(forward)(params, x, label)
    jax.block_until_ready((loss, acc, logits))

    assert logits.shape == (B * N_PER_SPEAKER, NUM_CLASSES)
    assert bool(jnp.isfinite(loss)) and bool(jnp.isfinite(acc))
    assert bool(jnp.all(jnp.isfinite(logits)))
    print("KERNEL_OK")
</pallas_src>

<mosaic_0001>
module attributes {stable_mosaic.version = 11 : i64} {
  func.func @_fused_model_kernel(%arg0: i32, %arg1: memref<1x21x512xf32, #tpu.memory_space<vmem>>, %arg2: memref<512x768xf32, #tpu.memory_space<vmem>>, %arg3: memref<384x128xf32, #tpu.memory_space<vmem>>, %arg4: memref<9x128x128xbf16, #tpu.memory_space<vmem>>, %arg5: memref<5x128xf32, #tpu.memory_space<vmem>>, %arg6: memref<256x128xbf16, #tpu.memory_space<vmem>>, %arg7: memref<128x128xbf16, #tpu.memory_space<vmem>>, %arg8: memref<1x1x128xf32, #tpu.memory_space<vmem>>) attributes {dimension_semantics = [#tpu.dimension_semantics<parallel>], iteration_bounds = array<i64: 2>, scalar_prefetch = 0 : i64, scratch_operands = 0 : i64, tpu.core_type = #tpu.core_type<tc>, window_params = [{transform_indices = @transform_0, window_bounds = array<i64: 1, 21, 512>}, {pipeline_mode = #tpu.pipeline_mode<synchronous>, transform_indices = @transform_1, window_bounds = array<i64: 512, 768>}, {pipeline_mode = #tpu.pipeline_mode<synchronous>, transform_indices = @transform_2, window_bounds = array<i64: 384, 128>}, {pipeline_mode = #tpu.pipeline_mode<synchronous>, transform_indices = @transform_3, window_bounds = array<i64: 9, 128, 128>}, {pipeline_mode = #tpu.pipeline_mode<synchronous>, transform_indices = @transform_4, window_bounds = array<i64: 5, 128>}, {pipeline_mode = #tpu.pipeline_mode<synchronous>, transform_indices = @transform_5, window_bounds = array<i64: 256, 128>}, {pipeline_mode = #tpu.pipeline_mode<synchronous>, transform_indices = @transform_6, window_bounds = array<i64: 128, 128>}, {transform_indices = @transform_7, window_bounds = array<i64: 1, 1, 128>}]} {
    %c0 = arith.constant 0 : index
    %c0_0 = arith.constant 0 : index
    %c0_1 = arith.constant 0 : index
    %0 = vector.load %arg1[%c0, %c0_0, %c0_1] : memref<1x21x512xf32, #tpu.memory_space<vmem>>, vector<1x21x512xf32>
    %1 = vector.shape_cast %0 : vector<1x21x512xf32> to vector<21x512xf32>
    %c0_2 = arith.constant 0 : index
    %c0_3 = arith.constant 0 : index
    %2 = vector.load %arg2[%c0_2, %c0_3] : memref<512x768xf32, #tpu.memory_space<vmem>>, vector<512x768xf32>
    %cst = arith.constant dense<0.000000e+00> : vector<21x768xf32>
    %3 = tpu.matmul %1, %2, %cst {dimension_numbers = #tpu.dot_dimension_numbers<[1], [0], [0], [1], [0, 0, 1, 1], [], []>} : vector<21x512xf32>, vector<512x768xf32>, vector<21x768xf32> -> vector<21x768xf32>
    %4 = vector.extract_strided_slice %3 {offsets = [0, 0], sizes = [21, 384], strides = [1, 1]} : vector<21x768xf32> to vector<21x384xf32>
    %5 = vector.extract_strided_slice %3 {offsets = [0, 384], sizes = [21, 384], strides = [1, 1]} : vector<21x768xf32> to vector<21x384xf32>
    %6 = arith.mulf %4, %4 : vector<21x384xf32>
    %7 = arith.mulf %5, %5 : vector<21x384xf32>
    %8 = arith.addf %6, %7 : vector<21x384xf32>
    %c0_4 = arith.constant 0 : index
    %c0_5 = arith.constant 0 : index
    %9 = vector.load %arg3[%c0_4, %c0_5] : memref<384x128xf32, #tpu.memory_space<vmem>>, vector<384x128xf32>
    %cst_6 = arith.constant dense<0.000000e+00> : vector<21x128xf32>
    %10 = tpu.matmul %8, %9, %cst_6 {dimension_numbers = #tpu.dot_dimension_numbers<[1], [0], [0], [1], [0, 0, 1, 1], [], []>} : vector<21x384xf32>, vector<384x128xf32>, vector<21x128xf32> -> vector<21x128xf32>
    %cst_7 = arith.constant 9.99999997E-7 : f32
    %11 = vector.broadcast %cst_7 : f32 to vector<21x128xf32>
    %12 = arith.addf %10, %11 : vector<21x128xf32>
    %13 = math.log %12 : vector<21x128xf32>
    %cst_8 = arith.constant dense<0.000000e+00> : vector<128xf32>
    %14 = vector.multi_reduction <add>, %13, %cst_8 [0] : vector<21x128xf32> to vector<128xf32>
    %15 = vector.shape_cast %14 : vector<128xf32> to vector<1x128xf32>
    %cst_9 = arith.constant 2.100000e+01 : f32
    %16 = vector.broadcast %cst_9 : f32 to vector<1x128xf32>
    %17 = arith.divf %15, %16 : vector<1x128xf32>
    %18 = vector.broadcast %17 : vector<1x128xf32> to vector<21x128xf32>
    %19 = arith.subf %13, %18 : vector<21x128xf32>
    %20 = arith.mulf %19, %19 : vector<21x128xf32>
    %cst_10 = arith.constant dense<0.000000e+00> : vector<128xf32>
    %21 = vector.multi_reduction <add>, %20, %cst_10 [0] : vector<21x128xf32> to vector<128xf32>
    %22 = vector.shape_cast %21 : vector<128xf32> to vector<1x128xf32>
    %cst_11 = arith.constant 2.100000e+01 : f32
    %23 = vector.broadcast %cst_11 : f32 to vector<1x128xf32>
    %24 = arith.divf %22, %23 : vector<1x128xf32>
    %25 = vector.broadcast %17 : vector<1x128xf32> to vector<21x128xf32>
    %26 = arith.subf %13, %25 : vector<21x128xf32>
    %cst_12 = arith.constant 9.99999974E-6 : f32
    %27 = vector.broadcast %cst_12 : f32 to vector<1x128xf32>
    %28 = arith.addf %24, %27 : vector<1x128xf32>
    %29 = math.rsqrt %28 : vector<1x128xf32>
    %30 = vector.broadcast %29 : vector<1x128xf32> to vector<21x128xf32>
    %31 = arith.mulf %26, %30 : vector<21x128xf32>
    %c0_13 = arith.constant 0 : index
    %c0_14 = arith.constant 0 : index
    %32 = vector.load %arg5[%c0_13, %c0_14] : memref<5x128xf32, #tpu.memory_space<vmem>>, vector<5x128xf32>
    %cst_15 = arith.constant 0.000000e+00 : f32
    %33 = vector.broadcast %cst_15 : f32 to vector<2x128xf32>
    %34 = tpu.concatenate %33, %31, %33 in 0 : vector<2x128xf32>, vector<21x128xf32>, vector<2x128xf32> -> vector<25x128xf32>
    %cst_16 = arith.constant 0.000000e+00 : f32
    %35 = vector.broadcast %cst_16 : f32 to vector<21x128xf32>
    %36 = vector.extract_strided_slice %34 {offsets = [0, 0], sizes = [21, 128], strides = [1, 1]} : vector<25x128xf32> to vector<21x128xf32>
    %37 = arith.truncf %36 : vector<21x128xf32> to vector<21x128xbf16>
    %c0_17 = arith.constant 0 : index
    %c0_18 = arith.constant 0 : index
    %c0_19 = arith.constant 0 : index
    %38 = vector.load %arg4[%c0_17, %c0_18, %c0_19] : memref<9x128x128xbf16, #tpu.memory_space<vmem>>, vector<1x128x128xbf16>
    %39 = vector.shape_cast %38 : vector<1x128x128xbf16> to vector<128x128xbf16>
    %cst_20 = arith.constant dense<0.000000e+00> : vector<21x128xf32>
    %40 = tpu.matmul %37, %39, %cst_20 {dimension_numbers = #tpu.dot_dimension_numbers<[1], [0], [0], [1], [0, 0, 1, 1], [], []>} : vector<21x128xbf16>, vector<128x128xbf16>, vector<21x128xf32> -> vector<21x128xf32>
    %41 = arith.addf %35, %40 : vector<21x128xf32>
    %42 = vector.extract_strided_slice %34 {offsets = [1, 0], sizes = [21, 128], strides = [1, 1]} : vector<25x128xf32> to vector<21x128xf32>
    %43 = arith.truncf %42 : vector<21x128xf32> to vector<21x128xbf16>
    %c1 = arith.constant 1 : index
    %c0_21 = arith.constant 0 : index
    %c0_22 = arith.constant 0 : index
    %44 = vector.load %arg4[%c1, %c0_21, %c0_22] : memref<9x128x128xbf16, #tpu.memory_space<vmem>>, vector<1x128x128xbf16>
    %45 = vector.shape_cast %44 : vector<1x128x128xbf16> to vector<128x128xbf16>
    %cst_23 = arith.constant dense<0.000000e+00> : vector<21x128xf32>
    %46 = tpu.matmul %43, %45, %cst_23 {dimension_numbers = #tpu.dot_dimension_numbers<[1], [0], [0], [1], [0, 0, 1, 1], [], []>} : vector<21x128xbf16>, vector<128x128xbf16>, vector<21x128xf32> -> vector<21x128xf32>
    %47 = arith.addf %41, %46 : vector<21x128xf32>
    %48 = vector.extract_strided_slice %34 {offsets = [2, 0], sizes = [21, 128], strides = [1, 1]} : vector<25x128xf32> to vector<21x128xf32>
    %49 = arith.truncf %48 : vector<21x128xf32> to vector<21x128xbf16>
    %c2 = arith.constant 2 : index
    %c0_24 = arith.constant 0 : index
    %c0_25 = arith.constant 0 : index
    %50 = vector.load %arg4[%c2, %c0_24, %c0_25] : memref<9x128x128xbf16, #tpu.memory_space<vmem>>, vector<1x128x128xbf16>
    %51 = vector.shape_cast %50 : vector<1x128x128xbf16> to vector<128x128xbf16>
    %cst_26 = arith.constant dense<0.000000e+00> : vector<21x128xf32>
    %52 = tpu.matmul %49, %51, %cst_26 {dimension_numbers = #tpu.dot_dimension_numbers<[1], [0], [0], [1], [0, 0, 1, 1], [], []>} : vector<21x128xbf16>, vector<128x128xbf16>, vector<21x128xf32> -> vector<21x128xf32>
    %53 = arith.addf %47, %52 : vector<21x128xf32>
    %54 = vector.extract_strided_slice %34 {offsets = [3, 0], sizes = [21, 128], strides = [1, 1]} : vector<25x128xf32> to vector<21x128xf32>
    %55 = arith.truncf %54 : vector<21x128xf32> to vector<21x128xbf16>
    %c3 = arith.constant 3 : index
    %c0_27 = arith.constant 0 : index
    %c0_28 = arith.constant 0 : index
    %56 = vector.load %arg4[%c3, %c0_27, %c0_28] : memref<9x128x128xbf16, #tpu.memory_space<vmem>>, vector<1x128x128xbf16>
    %57 = vector.shape_cast %56 : vector<1x128x128xbf16> to vector<128x128xbf16>
    %cst_29 = arith.constant dense<0.000000e+00> : vector<21x128xf32>
    %58 = tpu.matmul %55, %57, %cst_29 {dimension_numbers = #tpu.dot_dimension_numbers<[1], [0], [0], [1], [0, 0, 1, 1], [], []>} : vector<21x128xbf16>, vector<128x128xbf16>, vector<21x128xf32> -> vector<21x128xf32>
    %59 = arith.addf %53, %58 : vector<21x128xf32>
    %60 = vector.extract_strided_slice %34 {offsets = [4, 0], sizes = [21, 128], strides = [1, 1]} : vector<25x128xf32> to vector<21x128xf32>
    %61 = arith.truncf %60 : vector<21x128xf32> to vector<21x128xbf16>
    %c4 = arith.constant 4 : index
    %c0_30 = arith.constant 0 : index
    %c0_31 = arith.constant 0 : index
    %62 = vector.load %arg4[%c4, %c0_30, %c0_31] : memref<9x128x128xbf16, #tpu.memory_space<vmem>>, vector<1x128x128xbf16>
    %63 = vector.shape_cast %62 : vector<1x128x128xbf16> to vector<128x128xbf16>
    %cst_32 = arith.constant dense<0.000000e+00> : vector<21x128xf32>
    %64 = tpu.matmul %61, %63, %cst_32 {dimension_numbers = #tpu.dot_dimension_numbers<[1], [0], [0], [1], [0, 0, 1, 1], [], []>} : vector<21x128xbf16>, vector<128x128xbf16>, vector<21x128xf32> -> vector<21x128xf32>
    %65 = arith.addf %59, %64 : vector<21x128xf32>
    %66 = vector.extract_strided_slice %32 {offsets = [0, 0], sizes = [1, 128], strides = [1, 1]} : vector<5x128xf32> to vector<1x128xf32>
    %67 = vector.broadcast %66 : vector<1x128xf32> to vector<21x128xf32>
    %68 = arith.addf %65, %67 : vector<21x128xf32>
    %cst_33 = arith.constant 0.000000e+00 : f32
    %69 = vector.broadcast %cst_33 : f32 to vector<21x128xf32>
    %70 = arith.maximumf %68, %69 : vector<21x128xf32>
    %71 = tpu.concatenate %33, %70, %33 in 0 : vector<2x128xf32>, vector<21x128xf32>, vector<2x128xf32> -> vector<25x128xf32>
    %cst_34 = arith.constant 0.000000e+00 : f32
    %72 = vector.broadcast %cst_34 : f32 to vector<21x128xf32>
    %73 = vector.extract_strided_slice %71 {offsets = [0, 0], sizes = [21, 128], strides = [1, 1]} : vector<25x128xf32> to vector<21x128xf32>
    %74 = arith.truncf %73 : vector<21x128xf32> to vector<21x128xbf16>
    %c5 = arith.constant 5 : index
    %c0_35 = arith.constant 0 : index
    %c0_36 = arith.constant 0 : index
    %75 = vector.load %arg4[%c5, %c0_35, %c0_36] : memref<9x128x128xbf16, #tpu.memory_space<vmem>>, vector<1x128x128xbf16>
    %76 = vector.shape_cast %75 : vector<1x128x128xbf16> to vector<128x128xbf16>
    %cst_37 = arith.constant dense<0.000000e+00> : vector<21x128xf32>
    %77 = tpu.matmul %74, %76, %cst_37 {dimension_numbers = #tpu.dot_dimension_numbers<[1], [0], [0], [1], [0, 0, 1, 1], [], []>} : vector<21x128xbf16>, vector<128x128xbf16>, vector<21x128xf32> -> vector<21x128xf32>
    %78 = arith.addf %72, %77 : vector<21x128xf32>
    %79 = vector.extract_strided_slice %71 {offsets = [2, 0], sizes = [21, 128], strides = [1, 1]} : vector<25x128xf32> to vector<21x128xf32>
    %80 = arith.truncf %79 : vector<21x128xf32> to vector<21x128xbf16>
    %c6 = arith.constant 6 : index
    %c0_38 = arith.constant 0 : index
    %c0_39 = arith.constant 0 : index
    %81 = vector.load %arg4[%c6, %c0_38, %c0_39] : memref<9x128x128xbf16, #tpu.memory_space<vmem>>, vector<1x128x128xbf16>
    %82 = vector.shape_cast %81 : vector<1x128x128xbf16> to vector<128x128xbf16>
    %cst_40 = arith.constant dense<0.000000e+00> : vector<21x128xf32>
    %83 = tpu.matmul %80, %82, %cst_40 {dimension_numbers = #tpu.dot_dimension_numbers<[1], [0], [0], [1], [0, 0, 1, 1], [], []>} : vector<21x128xbf16>, vector<128x128xbf16>, vector<21x128xf32> -> vector<21x128xf32>
    %84 = arith.addf %78, %83 : vector<21x128xf32>
    %85 = vector.extract_strided_slice %71 {offsets = [4, 0], sizes = [21, 128], strides = [1, 1]} : vector<25x128xf32> to vector<21x128xf32>
    %86 = arith.truncf %85 : vector<21x128xf32> to vector<21x128xbf16>
    %c7 = arith.constant 7 : index
    %c0_41 = arith.constant 0 : index
    %c0_42 = arith.constant 0 : index
    %87 = vector.load %arg4[%c7, %c0_41, %c0_42] : memref<9x128x128xbf16, #tpu.memory_space<vmem>>, vector<1x128x128xbf16>
    %88 = vector.shape_cast %87 : vector<1x128x128xbf16> to vector<128x128xbf16>
    %cst_43 = arith.constant dense<0.000000e+00> : vector<21x128xf32>
    %89 = tpu.matmul %86, %88, %cst_43 {dimension_numbers = #tpu.dot_dimension_numbers<[1], [0], [0], [1], [0, 0, 1, 1], [], []>} : vector<21x128xbf16>, vector<128x128xbf16>, vector<21x128xf32> -> vector<21x128xf32>
    %90 = arith.addf %84, %89 : vector<21x128xf32>
    %91 = vector.extract_strided_slice %32 {offsets = [1, 0], sizes = [1, 128], strides = [1, 1]} : vector<5x128xf32> to vector<1x128xf32>
    %92 = vector.broadcast %91 : vector<1x128xf32> to vector<21x128xf32>
    %93 = arith.addf %90, %92 : vector<21x128xf32>
    %cst_44 = arith.constant 0.000000e+00 : f32
    %94 = vector.broadcast %cst_44 : f32 to vector<21x128xf32>
    %95 = arith.maximumf %93, %94 : vector<21x128xf32>
    %96 = arith.truncf %95 : vector<21x128xf32> to vector<21x128xbf16>
    %c8 = arith.constant 8 : index
    %c0_45 = arith.constant 0 : index
    %c0_46 = arith.constant 0 : index
    %97 = vector.load %arg4[%c8, %c0_45, %c0_46] : memref<9x128x128xbf16, #tpu.memory_space<vmem>>, vector<1x128x128xbf16>
    %98 = vector.shape_cast %97 : vector<1x128x128xbf16> to vector<128x128xbf16>
    %cst_47 = arith.constant dense<0.000000e+00> : vector<21x128xf32>
    %99 = tpu.matmul %96, %98, %cst_47 {dimension_numbers = #tpu.dot_dimension_numbers<[1], [0], [0], [1], [0, 0, 1, 1], [], []>} : vector<21x128xbf16>, vector<128x128xbf16>, vector<21x128xf32> -> vector<21x128xf32>
    %100 = vector.extract_strided_slice %32 {offsets = [2, 0], sizes = [1, 128], strides = [1, 1]} : vector<5x128xf32> to vector<1x128xf32>
    %101 = vector.broadcast %100 : vector<1x128xf32> to vector<21x128xf32>
    %102 = arith.addf %99, %101 : vector<21x128xf32>
    %cst_48 = arith.constant 0.000000e+00 : f32
    %103 = vector.broadcast %cst_48 : f32 to vector<21x128xf32>
    %104 = arith.maximumf %102, %103 : vector<21x128xf32>
    %cst_49 = arith.constant dense<0.000000e+00> : vector<128xf32>
    %105 = vector.multi_reduction <add>, %104, %cst_49 [0] : vector<21x128xf32> to vector<128xf32>
    %106 = vector.shape_cast %105 : vector<128xf32> to vector<1x128xf32>
    %cst_50 = arith.constant 2.100000e+01 : f32
    %107 = vector.broadcast %cst_50 : f32 to vector<1x128xf32>
    %108 = arith.divf %106, %107 : vector<1x128xf32>
    %109 = vector.broadcast %108 : vector<1x128xf32> to vector<21x128xf32>
    %110 = arith.subf %104, %109 : vector<21x128xf32>
    %111 = arith.mulf %110, %110 : vector<21x128xf32>
    %cst_51 = arith.constant dense<0.000000e+00> : vector<128xf32>
    %112 = vector.multi_reduction <add>, %111, %cst_51 [0] : vector<21x128xf32> to vector<128xf32>
    %113 = vector.shape_cast %112 : vector<128xf32> to vector<1x128xf32>
    %cst_52 = arith.constant 2.100000e+01 : f32
    %114 = vector.broadcast %cst_52 : f32 to vector<1x128xf32>
    %115 = arith.divf %113, %114 : vector<1x128xf32>
    %cst_53 = arith.constant 9.99999993E-9 : f32
    %116 = vector.broadcast %cst_53 : f32 to vector<1x128xf32>
    %117 = arith.addf %115, %116 : vector<1x128xf32>
    %118 = math.sqrt %117 : vector<1x128xf32>
    %119 = tpu.concatenate %108, %118 in 1 : vector<1x128xf32>, vector<1x128xf32> -> vector<1x256xf32>
    %120 = arith.truncf %119 : vector<1x256xf32> to vector<1x256xbf16>
    %c0_54 = arith.constant 0 : index
    %c0_55 = arith.constant 0 : index
    %121 = vector.load %arg6[%c0_54, %c0_55] : memref<256x128xbf16, #tpu.memory_space<vmem>>, vector<256x128xbf16>
    %cst_56 = arith.constant dense<0.000000e+00> : vector<1x128xf32>
    %122 = tpu.matmul %120, %121, %cst_56 {dimension_numbers = #tpu.dot_dimension_numbers<[1], [0], [0], [1], [0, 0, 1, 1], [], []>} : vector<1x256xbf16>, vector<256x128xbf16>, vector<1x128xf32> -> vector<1x128xf32>
    %123 = vector.extract_strided_slice %32 {offsets = [3, 0], sizes = [1, 128], strides = [1, 1]} : vector<5x128xf32> to vector<1x128xf32>
    %124 = arith.addf %122, %123 : vector<1x128xf32>
    %125 = arith.truncf %124 : vector<1x128xf32> to vector<1x128xbf16>
    %c0_57 = arith.constant 0 : index
    %c0_58 = arith.constant 0 : index
    %126 = vector.load %arg7[%c0_57, %c0_58] : memref<128x128xbf16, #tpu.memory_space<vmem>>, vector<128x128xbf16>
    %cst_59 = arith.constant dense<0.000000e+00> : vector<1x128xf32>
    %127 = tpu.matmul %125, %126, %cst_59 {dimension_numbers = #tpu.dot_dimension_numbers<[1], [0], [0], [1], [0, 0, 1, 1], [], []>} : vector<1x128xbf16>, vector<128x128xbf16>, vector<1x128xf32> -> vector<1x128xf32>
    %128 = vector.extract_strided_slice %32 {offsets = [4, 0], sizes = [1, 128], strides = [1, 1]} : vector<5x128xf32> to vector<1x128xf32>
    %129 = arith.addf %127, %128 : vector<1x128xf32>
    %c0_60 = arith.constant 0 : index
    %c0_61 = arith.constant 0 : index
    %c0_62 = arith.constant 0 : index
    %130 = vector.load %arg8[%c0_60, %c0_61, %c0_62] : memref<1x1x128xf32, #tpu.memory_space<vmem>>, vector<1x1x128xf32>
    %131 = vector.shape_cast %130 : vector<1x1x128xf32> to vector<1x128xf32>
    %132 = vector.shape_cast %129 : vector<1x128xf32> to vector<1x1x128xf32>
    tpu.vector_store %arg8[%c0_60, %c0_61, %c0_62], %132 {strides = array<i32>} : memref<1x1x128xf32, #tpu.memory_space<vmem>>, vector<1x1x128xf32>,
    return
  }
  func.func @transform_0(%arg0: i32) -> (i32, i32, i32) {
    %c0_i32 = arith.constant 0 : i32
    %c0_i32_0 = arith.constant 0 : i32
    %c0_i32_1 = arith.constant 0 : i32
    return %arg0, %c0_i32, %c0_i32_0 : i32, i32, i32
  }
  func.func @transform_1(%arg0: i32) -> (i32, i32) {
    %c0_i32 = arith.constant 0 : i32
    %c0_i32_0 = arith.constant 0 : i32
    %c0_i32_1 = arith.constant 0 : i32
    return %c0_i32, %c0_i32_0 : i32, i32
  }
  func.func @transform_2(%arg0: i32) -> (i32, i32) {
    %c0_i32 = arith.constant 0 : i32
    %c0_i32_0 = arith.constant 0 : i32
    %c0_i32_1 = arith.constant 0 : i32
    return %c0_i32, %c0_i32_0 : i32, i32
  }
  func.func @transform_3(%arg0: i32) -> (i32, i32, i32) {
    %c0_i32 = arith.constant 0 : i32
    %c0_i32_0 = arith.constant 0 : i32
    %c0_i32_1 = arith.constant 0 : i32
    %c0_i32_2 = arith.constant 0 : i32
    return %c0_i32, %c0_i32_0, %c0_i32_1 : i32, i32, i32
  }
  func.func @transform_4(%arg0: i32) -> (i32, i32) {
    %c0_i32 = arith.constant 0 : i32
    %c0_i32_0 = arith.constant 0 : i32
    %c0_i32_1 = arith.constant 0 : i32
    return %c0_i32, %c0_i32_0 : i32, i32
  }
  func.func @transform_5(%arg0: i32) -> (i32, i32) {
    %c0_i32 = arith.constant 0 : i32
    %c0_i32_0 = arith.constant 0 : i32
    %c0_i32_1 = arith.constant 0 : i32
    return %c0_i32, %c0_i32_0 : i32, i32
  }
  func.func @transform_6(%arg0: i32) -> (i32, i32) {
    %c0_i32 = arith.constant 0 : i32
    %c0_i32_0 = arith.constant 0 : i32
    %c0_i32_1 = arith.constant 0 : i32
    return %c0_i32, %c0_i32_0 : i32, i32
  }
  func.func @transform_7(%arg0: i32) -> (i32, i32, i32) {
    %c0_i32 = arith.constant 0 : i32
    %c0_i32_0 = arith.constant 0 : i32
    %c0_i32_1 = arith.constant 0 : i32
    return %arg0, %c0_i32, %c0_i32_0 : i32, i32, i32
  }
}

</mosaic_0001>

<llo_original>
// kernel: forward.1
$region0: #{forward.1}
  #allocation0 [shape = 'u32[]', space=smem, size = 0x4, offset = 0x4, fixed_abs, tag = 'smem constant byte address 0x4 - core index']
  #allocation1 [shape = 'u32[144,128]{1,0:T(1,128)}', space=vmem, size = 0x12000, scoped, tag = 'internal scratch']
  %s0 = inlined_call_operand.vmem [shape: f32[2,21,512], index: 0, kind: input, shape index: {}]
  %s1 = inlined_call_operand.vmem [shape: f32[512,768], index: 1, kind: input, shape index: {}]
  %s2 = inlined_call_operand.vmem [shape: f32[384,128], index: 2, kind: input, shape index: {}]
  %s3 = inlined_call_operand.vmem [shape: bf16[9,128,128], index: 3, kind: input, shape index: {}]
  %s4 = inlined_call_operand.vmem [shape: f32[5,128], index: 4, kind: input, shape index: {}]
  %s5 = inlined_call_operand.vmem [shape: bf16[256,128], index: 5, kind: input, shape index: {}]
  %s6 = inlined_call_operand.vmem [shape: bf16[128,128], index: 6, kind: input, shape index: {}]
  %s7 = inlined_call_operand.vmem [shape: f32[2,1,128], index: 7, kind: output, shape index: {}]
  %s8 = sld [smem:[#allocation0]]
  $region61: #{forward.1} parent=0
    _
  %s10 = ssub.s32 1, %s8
  %s11 = scalar_select 0, %s10, %s8
  loop: start=0, step=1, limit=4
  $region2: #{forward.1} parent=0 // loop_pre_header
    _
  $region3: #{forward.1} parent=0 // loop_header
    %s13 = sphi 0, %s17
    %p14 = scmp.ge.s32.totalorder %s13, 4
    %s23 = sphi 0, %s25
    %s26 = sphi 0, %s23
    %s27 = sphi 0, %s26
    %s43 = sphi 0, %s27
    %s47 = sphi 0, %s47
    %s49 = sphi 0, %s47
    %s50 = sphi 0, %s49
    %s64 = sphi 0, %s50
    %s68 = sphi 0, %s68
    %s70 = sphi 0, %s68
    %s71 = sphi 0, %s70
    %s85 = sphi 0, %s71
    %s89 = sphi 0, %s89
    %s91 = sphi 0, %s89
    %s92 = sphi 0, %s91
    %s106 = sphi 0, %s92
    %s110 = sphi 0, %s110
    %s112 = sphi 0, %s110
    %s113 = sphi 0, %s112
    %s127 = sphi 0, %s113
    %s131 = sphi 0, %s131
    %s133 = sphi 0, %s131
    %s134 = sphi 0, %s133
    %s148 = sphi 0, %s134
    %s152 = sphi 0, %s152
    %s154 = sphi 0, %s152
    %s155 = sphi 0, %s154
    %s169 = sphi 0, %s155
    %s175 = sphi 0, %s177
    %s178 = sphi 0, %s175
    %s179 = sphi 0, %s178
    %s195 = sphi 0, %s179
  $region4: #{forward.1} parent=0 // loop_header_branch
    %16 = sbr.rel (%p14) target = $region8
  $region5: #{forward.1} parent=0 // loop_body
    %s18 = ssub.s32 %s13, 1
    %s19 = ssub.s32 %s13, 2
    %s20 = sadd.s32 %s13, 1
    %s21 = ssub.s32 %s13, %s20
    %p22 = scmp.eq.s32.totalorder %s21, 0
    %s24 = sadd.s32 %s23, 1
    %s25 = scalar_select %p22, %s23, %s24
    %p28 = pneg %p22
    %p29 = scmp.eq.s32.totalorder %s13, 1
    %p30 = por %p28, %p29
    %p31 = scmp.ne.s32.totalorder %s23, %s26
    %p32 = scmp.eq.s32.totalorder %s13, 0
    %p33 = por %p31, %p32
    %p34 = scmp.ne.s32.totalorder %s23, %s26
    %p35 = scmp.eq.s32.totalorder %s18, 1
    %p36 = por %p34, %p35
    %p37 = scmp.ne.s32.totalorder %s26, %s27
    %p38 = scmp.eq.s32.totalorder %s18, 0
    %p39 = por %p37, %p38
    %p40 = scmp.ne.s32.totalorder %s26, %s27
    %p41 = scmp.eq.s32.totalorder %s19, 1
    %p42 = por %p40, %p41
    %p44 = scmp.ne.s32.totalorder %s27, %s43
    %p45 = scmp.eq.s32.totalorder %s19, 0
    %p46 = por %p44, %p45
    %s48 = sadd.s32 %s47, 1
    %p51 = scmp.eq.s32.totalorder %s13, 1
    %p52 = scmp.ne.s32.totalorder %s47, %s49
    %p53 = scmp.eq.s32.totalorder %s13, 0
    %p54 = por %p52, %p53
    %p55 = scmp.ne.s32.totalorder %s47, %s49
    %p56 = scmp.eq.s32.totalorder %s18, 1
    %p57 = por %p55, %p56
    %p58 = scmp.ne.s32.totalorder %s49, %s50
    %p59 = scmp.eq.s32.totalorder %s18, 0
    %p60 = por %p58, %p59
    %p61 = scmp.ne.s32.totalorder %s49, %s50
    %p62 = scmp.eq.s32.totalorder %s19, 1
    %p63 = por %p61, %p62
    %p65 = scmp.ne.s32.totalorder %s50, %s64
    %p66 = scmp.eq.s32.totalorder %s19, 0
    %p67 = por %p65, %p66
    %s69 = sadd.s32 %s68, 1
    %p72 = scmp.eq.s32.totalorder %s13, 1
    %p73 = scmp.ne.s32.totalorder %s68, %s70
    %p74 = scmp.eq.s32.totalorder %s13, 0
    %p75 = por %p73, %p74
    %p76 = scmp.ne.s32.totalorder %s68, %s70
    %p77 = scmp.eq.s32.totalorder %s18, 1
    %p78 = por %p76, %p77
    %p79 = scmp.ne.s32.totalorder %s70, %s71
    %p80 = scmp.eq.s32.totalorder %s18, 0
    %p81 = por %p79, %p80
    %p82 = scmp.ne.s32.totalorder %s70, %s71
    %p83 = scmp.eq.s32.totalorder %s19, 1
    %p84 = por %p82, %p83
    %p86 = scmp.ne.s32.totalorder %s71, %s85
    %p87 = scmp.eq.s32.totalorder %s19, 0
    %p88 = por %p86, %p87
    %s90 = sadd.s32 %s89, 1
    %p93 = scmp.eq.s32.totalorder %s13, 1
    %p94 = scmp.ne.s32.totalorder %s89, %s91
    %p95 = scmp.eq.s32.totalorder %s13, 0
    %p96 = por %p94, %p95
    %p97 = scmp.ne.s32.totalorder %s89, %s91
    %p98 = scmp.eq.s32.totalorder %s18, 1
    %p99 = por %p97, %p98
    %p100 = scmp.ne.s32.totalorder %s91, %s92
    %p101 = scmp.eq.s32.totalorder %s18, 0
    %p102 = por %p100, %p101
    %p103 = scmp.ne.s32.totalorder %s91, %s92
    %p104 = scmp.eq.s32.totalorder %s19, 1
    %p105 = por %p103, %p104
    %p107 = scmp.ne.s32.totalorder %s92, %s106
    %p108 = scmp.eq.s32.totalorder %s19, 0
    %p109 = por %p107, %p108
    %s111 = sadd.s32 %s110, 1
    %p114 = scmp.eq.s32.totalorder %s13, 1
    %p115 = scmp.ne.s32.totalorder %s110, %s112
    %p116 = scmp.eq.s32.totalorder %s13, 0
    %p117 = por %p115, %p116
    %p118 = scmp.ne.s32.totalorder %s110, %s112
    %p119 = scmp.eq.s32.totalorder %s18, 1
    %p120 = por %p118, %p119
    %p121 = scmp.ne.s32.totalorder %s112, %s113
    %p122 = scmp.eq.s32.totalorder %s18, 0
    %p123 = por %p121, %p122
    %p124 = scmp.ne.s32.totalorder %s112, %s113
    %p125 = scmp.eq.s32.totalorder %s19, 1
    %p126 = por %p124, %p125
    %p128 = scmp.ne.s32.totalorder %s113, %s127
    %p129 = scmp.eq.s32.totalorder %s19, 0
    %p130 = por %p128, %p129
    %s132 = sadd.s32 %s131, 1
    %p135 = scmp.eq.s32.totalorder %s13, 1
    %p136 = scmp.ne.s32.totalorder %s131, %s133
    %p137 = scmp.eq.s32.totalorder %s13, 0
    %p138 = por %p136, %p137
    %p139 = scmp.ne.s32.totalorder %s131, %s133
    %p140 = scmp.eq.s32.totalorder %s18, 1
    %p141 = por %p139, %p140
    %p142 = scmp.ne.s32.totalorder %s133, %s134
    %p143 = scmp.eq.s32.totalorder %s18, 0
    %p144 = por %p142, %p143
    %p145 = scmp.ne.s32.totalorder %s133, %s134
    %p146 = scmp.eq.s32.totalorder %s19, 1
    %p147 = por %p145, %p146
    %p149 = scmp.ne.s32.totalorder %s134, %s148
    %p150 = scmp.eq.s32.totalorder %s19, 0
    %p151 = por %p149, %p150
    %s153 = sadd.s32 %s152, 1
    %p156 = scmp.eq.s32.totalorder %s13, 1
    %p157 = scmp.ne.s32.totalorder %s152, %s154
    %p158 = scmp.eq.s32.totalorder %s13, 0
    %p159 = por %p157, %p158
    %p160 = scmp.ne.s32.totalorder %s152, %s154
    %p161 = scmp.eq.s32.totalorder %s18, 1
    %p162 = por %p160, %p161
    %p163 = scmp.ne.s32.totalorder %s154, %s155
    %p164 = scmp.eq.s32.totalorder %s18, 0
    %p165 = por %p163, %p164
    %p166 = scmp.ne.s32.totalorder %s154, %s155
    %p167 = scmp.eq.s32.totalorder %s19, 1
    %p168 = por %p166, %p167
    %p170 = scmp.ne.s32.totalorder %s155, %s169
    %p171 = scmp.eq.s32.totalorder %s19, 0
    %p172 = por %p170, %p171
    %s173 = ssub.s32 %s13, %s20
    %p174 = scmp.eq.s32.totalorder %s173, 0
    %s176 = sadd.s32 %s175, 1
    %s177 = scalar_select %p174, %s175, %s176
    %p180 = pneg %p174
    %p181 = scmp.eq.s32.totalorder %s13, 1
    %p182 = por %p180, %p181
    %p183 = scmp.ne.s32.totalorder %s175, %s178
    %p184 = scmp.eq.s32.totalorder %s13, 0
    %p185 = por %p183, %p184
    %p186 = scmp.ne.s32.totalorder %s175, %s178
    %p187 = scmp.eq.s32.totalorder %s18, 1
    %p188 = por %p186, %p187
    %p189 = scmp.ne.s32.totalorder %s178, %s179
    %p190 = scmp.eq.s32.totalorder %s18, 0
    %p191 = por %p189, %p190
    %p192 = scmp.ne.s32.totalorder %s178, %s179
    %p193 = scmp.eq.s32.totalorder %s19, 1
    %p194 = por %p192, %p193
    %p196 = scmp.ne.s32.totalorder %s179, %s195
    %p197 = scmp.eq.s32.totalorder %s19, 0
    %p198 = por %p196, %p197
    %p199 = scmp.le.s32.totalorder 1, %s13
    %p200 = scmp.lt.s32.totalorder %s13, 3
    %p201 = pnand %p199, %p200
    %p202 = pneg %p201
    // Predicated region
    $region9: #{forward.1} parent=5 // pred_check
      _
    $region10: #{forward.1} parent=5 // pred_check_branch
      %204 = sbr.rel (%p201) target = $region12
    $region11: #{forward.1} parent=5 // pred_region
      %s205 = ssub.s32 %s13, 1
      // Predicated region
      $region13: #{forward.1} parent=11 // pred_check
        %p206 = pneg %p60
      $region14: #{forward.1} parent=11 // pred_check_branch
        %208 = sbr.rel (%p206) target = $region16
      $region15: #{forward.1} parent=11 // pred_region
        _
      $region16: #{forward.1} parent=11 // pred_fallthru
        _
      // Predicated region
      $region17: #{forward.1} parent=11 // pred_check
        %p209 = pneg %p81
      $region18: #{forward.1} parent=11 // pred_check_branch
        %211 = sbr.rel (%p209) target = $region20
      $region19: #{forward.1} parent=11 // pred_region
        _
      $region20: #{forward.1} parent=11 // pred_fallthru
        _
      // Predicated region
      $region21: #{forward.1} parent=11 // pred_check
        %p212 = pneg %p102
      $region22: #{forward.1} parent=11 // pred_check_branch
        %214 = sbr.rel (%p212) target = $region24
      $region23: #{forward.1} parent=11 // pred_region
        _
      $region24: #{forward.1} parent=11 // pred_fallthru
        _
      // Predicated region
      $region25: #{forward.1} parent=11 // pred_check
        %p215 = pneg %p123
      $region26: #{forward.1} parent=11 // pred_check_branch
        %217 = sbr.rel (%p215) target = $region28
      $region27: #{forward.1} parent=11 // pred_region
        _
      $region28: #{forward.1} parent=11 // pred_fallthru
        _
      // Predicated region
      $region29: #{forward.1} parent=11 // pred_check
        %p218 = pneg %p144
      $region30: #{forward.1} parent=11 // pred_check_branch
        %220 = sbr.rel (%p218) target = $region32
      $region31: #{forward.1} parent=11 // pred_region
        _
      $region32: #{forward.1} parent=11 // pred_fallthru
        _
      // Predicated region
      $region33: #{forward.1} parent=11 // pred_check
        %p221 = pneg %p165
      $region34: #{forward.1} parent=11 // pred_check_branch
        %223 = sbr.rel (%p221) target = $region36
      $region35: #{forward.1} parent=11 // pred_region
        _
      $region36: #{forward.1} parent=11 // pred_fallthru
        _
    $region12: #{forward.1} parent=5 // pred_fallthru
      _
    %p224 = scmp.lt.s32.totalorder %s13, 2
    // Predicated region
    $region37: #{forward.1} parent=5 // pred_check
      %p225 = pneg %p224
    $region38: #{forward.1} parent=5 // pred_check_branch
      %227 = sbr.rel (%p225) target = $region40
    $region39: #{forward.1} parent=5 // pred_region
      // Predicated region
      $region41: #{forward.1} parent=39 // pred_check
        %p228 = pneg %p33
      $region42: #{forward.1} parent=39 // pred_check_branch
        %230 = sbr.rel (%p228) target = $region44
      $region43: #{forward.1} parent=39 // pred_region
        %p231 = scmp.lt.s32.totalorder %s13, 1
        %s232 = scalar_select %p231, %s13, 1
        %s233 = smul.addr %s232, 12
        %s234 = smul.addr %s233, 8
        %s235 = scalar_lea.vmem %s0, %s234
      $region44: #{forward.1} parent=39 // pred_fallthru
        _
    $region40: #{forward.1} parent=5 // pred_fallthru
      _
    %p236 = scmp.le.s32.totalorder 1, %s13
    %p237 = scmp.lt.s32.totalorder %s13, 3
    %p238 = pnand %p236, %p237
    %p239 = pneg %p238
    // Predicated region
    $region45: #{forward.1} parent=5 // pred_check
      _
    $region46: #{forward.1} parent=5 // pred_check_branch
      %241 = sbr.rel (%p238) target = $region48
    $region47: #{forward.1} parent=5 // pred_region
      %s242 = ssub.s32 %s13, 1
      %p243 = scmp.lt.s32.totalorder %s18, 1
      %s244 = scalar_select %p243, %s18, 1
      %s245 = smul.addr %s244, 12
      %s246 = smul.addr %s245, 8
      %s247 = scalar_lea.vmem %s0, %s246
      %p248 = pneg %p39
      %p249 = pneg %p36
      %p250 = pneg %p60
      %p251 = pneg %p57
      %p252 = pneg %p81
      %p253 = pneg %p78
      %p254 = pneg %p102
      %p255 = pneg %p99
      %p256 = pneg %p123
      %p257 = pneg %p120
      %p258 = pneg %p144
      %p259 = pneg %p141
      %p260 = pneg %p165
      %p261 = pneg %p162
      %p262 = pneg %p191
      %p263 = pneg %p188
      %p264 = scmp.lt.s32.totalorder %s18, 1
      %s265 = scalar_select %p264, %s18, 1
      %s266 = scalar_lea.vmem %s7, %s265
      %p267 = scmp.lt.s32.totalorder %s18, 1
      %s268 = scalar_select %p267, %s18, 1
      %s269 = smul.addr %s268, 12
      %s270 = smul.addr %s269, 8
      %s271 = scalar_lea.vmem %s0, %s270
      %p272 = scmp.lt.s32.totalorder %s18, 1
      %s273 = scalar_select %p272, %s18, 1
      %s274 = scalar_lea.vmem %s7, %s273
      %v276 = vld [vmem:[%s271] sm:$0xff]
      %v277 = vld [vmem:[%s271 + $0x8] sm:$0xff]
      %v278 = vld [vmem:[%s271 + $0x10] sm:$0xff]
      %v279 = vld [vmem:[%s271 + $0x18] sm:$0xff]
      %v280 = vld [vmem:[%s271 + $0x20] sm:$0xff]
      %v281 = vld [vmem:[%s271 + $0x28] sm:$0xff]
      %v282 = vld [vmem:[%s271 + $0x30] sm:$0xff]
      %v283 = vld [vmem:[%s271 + $0x38] sm:$0xff]
      %v284 = vld [vmem:[%s271 + $0x40] sm:$0x1f]
      %v285 = vld [vmem:[%s271 + $0x48] sm:$0x1f]
      %v286 = vld [vmem:[%s271 + $0x50] sm:$0x1f]
      %v287 = vld [vmem:[%s271 + $0x58] sm:$0x1f]
      %v288 = vld [vmem:[%s1] sm:$0xff]
      %v289 = vld [vmem:[%s1 + $0x8] sm:$0xff]
      %v290 = vld [vmem:[%s1 + $0x10] sm:$0xff]
      %v291 = vld [vmem:[%s1 + $0x18] sm:$0xff]
      %v292 = vld [vmem:[%s1 + $0x20] sm:$0xff]
      %v293 = vld [vmem:[%s1 + $0x28] sm:$0xff]
      %v294 = vld [vmem:[%s1 + $0x30] sm:$0xff]
      %v295 = vld [vmem:[%s1 + $0x38] sm:$0xff]
      %v296 = vld [vmem:[%s1 + $0x40] sm:$0xff]
      %v297 = vld [vmem:[%s1 + $0x48] sm:$0xff]
      %v298 = vld [vmem:[%s1 + $0x50] sm:$0xff]
      %v299 = vld [vmem:[%s1 + $0x58] sm:$0xff]
      %v300 = vld [vmem:[%s1 + $0x60] sm:$0xff]
      %v301 = vld [vmem:[%s1 + $0x68] sm:$0xff]
      %v302 = vld [vmem:[%s1 + $0x70] sm:$0xff]
      %v303 = vld [vmem:[%s1 + $0x78] sm:$0xff]
      %v304 = vld [vmem:[%s1 + $0x80] sm:$0xff]
      %v305 = vld [vmem:[%s1 + $0x88] sm:$0xff]
      %v306 = vld [vmem:[%s1 + $0x90] sm:$0xff]
      %v307 = vld [vmem:[%s1 + $0x98] sm:$0xff]
      %v308 = vld [vmem:[%s1 + $0xa0] sm:$0xff]
      %v309 = vld [vmem:[%s1 + $0xa8] sm:$0xff]
      %v310 = vld [vmem:[%s1 + $0xb0] sm:$0xff]
      %v311 = vld [vmem:[%s1 + $0xb8] sm:$0xff]
      %v312 = vld [vmem:[%s1 + $0xc0] sm:$0xff]
      %v313 = vld [vmem:[%s1 + $0xc8] sm:$0xff]
      %v314 = vld [vmem:[%s1 + $0xd0] sm:$0xff]
      %v315 = vld [vmem:[%s1 + $0xd8] sm:$0xff]
      %v316 = vld [vmem:[%s1 + $0xe0] sm:$0xff]
      %v317 = vld [vmem:[%s1 + $0xe8] sm:$0xff]
      %v318 = vld [vmem:[%s1 + $0xf0] sm:$0xff]
      %v319 = vld [vmem:[%s1 + $0xf8] sm:$0xff]
      %v320 = vld [vmem:[%s1 + $0x100] sm:$0xff]
      %v321 = vld [vmem:[%s1 + $0x108] sm:$0xff]
      %v322 = vld [vmem:[%s1 + $0x110] sm:$0xff]
      %v323 = vld [vmem:[%s1 + $0x118] sm:$0xff]
      %v324 = vld [vmem:[%s1 + $0x120] sm:$0xff]
      %v325 = vld [vmem:[%s1 + $0x128] sm:$0xff]
      %v326 = vld [vmem:[%s1 + $0x130] sm:$0xff]
      %v327 = vld [vmem:[%s1 + $0x138] sm:$0xff]
      %v328 = vld [vmem:[%s1 + $0x140] sm:$0xff]
      %v329 = vld [vmem:[%s1 + $0x148] sm:$0xff]
      %v330 = vld [vmem:[%s1 + $0x150] sm:$0xff]
      %v331 = vld [vmem:[%s1 + $0x158] sm:$0xff]
      %v332 = vld [vmem:[%s1 + $0x160] sm:$0xff]
      %v333 = vld [vmem:[%s1 + $0x168] sm:$0xff]
      %v334 = vld [vmem:[%s1 + $0x170] sm:$0xff]
      %v335 = vld [vmem:[%s1 + $0x178] sm:$0xff]
      %v336 = vld [vmem:[%s1 + $0x180] sm:$0xff]
      %v337 = vld [vmem:[%s1 + $0x188] sm:$0xff]
      %v338 = vld [vmem:[%s1 + $0x190] sm:$0xff]
      %v339 = vld [vmem:[%s1 + $0x198] sm:$0xff]
      %v340 = vld [vmem:[%s1 + $0x1a0] sm:$0xff]
      %v341 = vld [vmem:[%s1 + $0x1a8] sm:$0xff]
      %v342 = vld [vmem:[%s1 + $0x1b0] sm:$0xff]
      %v343 = vld [vmem:[%s1 + $0x1b8] sm:$0xff]
      %v344 = vld [vmem:[%s1 + $0x1c0] sm:$0xff]
      %v345 = vld [vmem:[%s1 + $0x1c8] sm:$0xff]
      %v346 = vld [vmem:[%s1 + $0x1d0] sm:$0xff]
      %v347 = vld [vmem:[%s1 + $0x1d8] sm:$0xff]
      %v348 = vld [vmem:[%s1 + $0x1e0] sm:$0xff]
      %v349 = vld [vmem:[%s1 + $0x1e8] sm:$0xff]
      %v350 = vld [vmem:[%s1 + $0x1f0] sm:$0xff]
      %v351 = vld [vmem:[%s1 + $0x1f8] sm:$0xff]
      %v352 = vld [vmem:[%s1 + $0x200] sm:$0xff]
      %v353 = vld [vmem:[%s1 + $0x208] sm:$0xff]
      %v354 = vld [vmem:[%s1 + $0x210] sm:$0xff]
      %v355 = vld [vmem:[%s1 + $0x218] sm:$0xff]
      %v356 = vld [vmem:[%s1 + $0x220] sm:$0xff]
      %v357 = vld [vmem:[%s1 + $0x228] sm:$0xff]
      %v358 = vld [vmem:[%s1 + $0x230] sm:$0xff]
      %v359 = vld [vmem:[%s1 + $0x238] sm:$0xff]
      %v360 = vld [vmem:[%s1 + $0x240] sm:$0xff]
      %v361 = vld [vmem:[%s1 + $0x248] sm:$0xff]
      %v362 = vld [vmem:[%s1 + $0x250] sm:$0xff]
      %v363 = vld [vmem:[%s1 + $0x258] sm:$0xff]
      %v364 = vld [vmem:[%s1 + $0x260] sm:$0xff]
      %v365 = vld [vmem:[%s1 + $0x268] sm:$0xff]
      %v366 = vld [vmem:[%s1 + $0x270] sm:$0xff]
      %v367 = vld [vmem:[%s1 + $0x278] sm:$0xff]
      %v368 = vld [vmem:[%s1 + $0x280] sm:$0xff]
      %v369 = vld [vmem:[%s1 + $0x288] sm:$0xff]
      %v370 = vld [vmem:[%s1 + $0x290] sm:$0xff]
      %v371 = vld [vmem:[%s1 + $0x298] sm:$0xff]
      %v372 = vld [vmem:[%s1 + $0x2a0] sm:$0xff]
      %v373 = vld [vmem:[%s1 + $0x2a8] sm:$0xff]
      %v374 = vld [vmem:[%s1 + $0x2b0] sm:$0xff]
      %v375 = vld [vmem:[%s1 + $0x2b8] sm:$0xff]
      %v376 = vld [vmem:[%s1 + $0x2c0] sm:$0xff]
      %v377 = vld [vmem:[%s1 + $0x2c8] sm:$0xff]
      %v378 = vld [vmem:[%s1 + $0x2d0] sm:$0xff]
      %v379 = vld [vmem:[%s1 + $0x2d8] sm:$0xff]
      %v380 = vld [vmem:[%s1 + $0x2e0] sm:$0xff]
      %v381 = vld [vmem:[%s1 + $0x2e8] sm:$0xff]
      %v382 = vld [vmem:[%s1 + $0x2f0] sm:$0xff]
      %v383 = vld [vmem:[%s1 + $0x2f8] sm:$0xff]
      %v384 = vld [vmem:[%s1 + $0x300] sm:$0xff]
      %v385 = vld [vmem:[%s1 + $0x308] sm:$0xff]
      %v386 = vld [vmem:[%s1 + $0x310] sm:$0xff]
      %v387 = vld [vmem:[%s1 + $0x318] sm:$0xff]
      %v388 = vld [vmem:[%s1 + $0x320] sm:$0xff]
      %v389 = vld [vmem:[%s1 + $0x328] sm:$0xff]
      %v390 = vld [vmem:[%s1 + $0x330] sm:$0xff]
      %v391 = vld [vmem:[%s1 + $0x338] sm:$0xff]
      %v392 = vld [vmem:[%s1 + $0x340] sm:$0xff]
      %v393 = vld [vmem:[%s1 + $0x348] sm:$0xff]
      %v394 = vld [vmem:[%s1 + $0x350] sm:$0xff]
      %v395 = vld [vmem:[%s1 + $0x358] sm:$0xff]
      %v396 = vld [vmem:[%s1 + $0x360] sm:$0xff]
      %v397 = vld [vmem:[%s1 + $0x368] sm:$0xff]
      %v398 = vld [vmem:[%s1 + $0x370] sm:$0xff]
      %v399 = vld [vmem:[%s1 + $0x378] sm:$0xff]
      %v400 = vld [vmem:[%s1 + $0x380] sm:$0xff]
      %v401 = vld [vmem:[%s1 + $0x388] sm:$0xff]
      %v402 = vld [vmem:[%s1 + $0x390] sm:$0xff]
      %v403 = vld [vmem:[%s1 + $0x398] sm:$0xff]
      %v404 = vld [vmem:[%s1 + $0x3a0] sm:$0xff]
      %v405 = vld [vmem:[%s1 + $0x3a8] sm:$0xff]
      %v406 = vld [vmem:[%s1 + $0x3b0] sm:$0xff]
      %v407 = vld [vmem:[%s1 + $0x3b8] sm:$0xff]
      %v408 = vld [vmem:[%s1 + $0x3c0] sm:$0xff]
      %v409 = vld [vmem:[%s1 + $0x3c8] sm:$0xff]
      %v410 = vld [vmem:[%s1 + $0x3d0] sm:$0xff]
      %v411 = vld [vmem:[%s1 + $0x3d8] sm:$0xff]
      %v412 = vld [vmem:[%s1 + $0x3e0] sm:$0xff]
      %v413 = vld [vmem:[%s1 + $0x3e8] sm:$0xff]
      %v414 = vld [vmem:[%s1 + $0x3f0] sm:$0xff]
      %v415 = vld [vmem:[%s1 + $0x3f8] sm:$0xff]
      %v416 = vld [vmem:[%s1 + $0x400] sm:$0xff]
      %v417 = vld [vmem:[%s1 + $0x408] sm:$0xff]
      %v418 = vld [vmem:[%s1 + $0x410] sm:$0xff]
      %v419 = vld [vmem:[%s1 + $0x418] sm:$0xff]
      %v420 = vld [vmem:[%s1 + $0x420] sm:$0xff]
      %v421 = vld [vmem:[%s1 + $0x428] sm:$0xff]
      %v422 = vld [vmem:[%s1 + $0x430] sm:$0xff]
      %v423 = vld [vmem:[%s1 + $0x438] sm:$0xff]
      %v424 = vld [vmem:[%s1 + $0x440] sm:$0xff]
      %v425 = vld [vmem:[%s1 + $0x448] sm:$0xff]
      %v426 = vld [vmem:[%s1 + $0x450] sm:$0xff]
      %v427 = vld [vmem:[%s1 + $0x458] sm:$0xff]
      %v428 = vld [vmem:[%s1 + $0x460] sm:$0xff]
      %v429 = vld [vmem:[%s1 + $0x468] sm:$0xff]
      %v430 = vld [vmem:[%s1 + $0x470] sm:$0xff]
      %v431 = vld [vmem:[%s1 + $0x478] sm:$0xff]
      %v432 = vld [vmem:[%s1 + $0x480] sm:$0xff]
      %v433 = vld [vmem:[%s1 + $0x488] sm:$0xff]
      %v434 = vld [vmem:[%s1 + $0x490] sm:$0xff]
      %v435 = vld [vmem:[%s1 + $0x498] sm:$0xff]
      %v436 = vld [vmem:[%s1 + $0x4a0] sm:$0xff]
      %v437 = vld [vmem:[%s1 + $0x4a8] sm:$0xff]
      %v438 = vld [vmem:[%s1 + $0x4b0] sm:$0xff]
      %v439 = vld [vmem:[%s1 + $0x4b8] sm:$0xff]
      %v440 = vld [vmem:[%s1 + $0x4c0] sm:$0xff]
      %v441 = vld [vmem:[%s1 + $0x4c8] sm:$0xff]
      %v442 = vld [vmem:[%s1 + $0x4d0] sm:$0xff]
      %v443 = vld [vmem:[%s1 + $0x4d8] sm:$0xff]
      %v444 = vld [vmem:[%s1 + $0x4e0] sm:$0xff]
      %v445 = vld [vmem:[%s1 + $0x4e8] sm:$0xff]
      %v446 = vld [vmem:[%s1 + $0x4f0] sm:$0xff]
      %v447 = vld [vmem:[%s1 + $0x4f8] sm:$0xff]
      %v448 = vld [vmem:[%s1 + $0x500] sm:$0xff]
      %v449 = vld [vmem:[%s1 + $0x508] sm:$0xff]
      %v450 = vld [vmem:[%s1 + $0x510] sm:$0xff]
      %v451 = vld [vmem:[%s1 + $0x518] sm:$0xff]
      %v452 = vld [vmem:[%s1 + $0x520] sm:$0xff]
      %v453 = vld [vmem:[%s1 + $0x528] sm:$0xff]
      %v454 = vld [vmem:[%s1 + $0x530] sm:$0xff]
      %v455 = vld [vmem:[%s1 + $0x538] sm:$0xff]
      %v456 = vld [vmem:[%s1 + $0x540] sm:$0xff]
      %v457 = vld [vmem:[%s1 + $0x548] sm:$0xff]
      %v458 = vld [vmem:[%s1 + $0x550] sm:$0xff]
      %v459 = vld [vmem:[%s1 + $0x558] sm:$0xff]
      %v460 = vld [vmem:[%s1 + $0x560] sm:$0xff]
      %v461 = vld [vmem:[%s1 + $0x568] sm:$0xff]
      %v462 = vld [vmem:[%s1 + $0x570] sm:$0xff]
      %v463 = vld [vmem:[%s1 + $0x578] sm:$0xff]
      %v464 = vld [vmem:[%s1 + $0x580] sm:$0xff]
      %v465 = vld [vmem:[%s1 + $0x588] sm:$0xff]
      %v466 = vld [vmem:[%s1 + $0x590] sm:$0xff]
      %v467 = vld [vmem:[%s1 + $0x598] sm:$0xff]
      %v468 = vld [vmem:[%s1 + $0x5a0] sm:$0xff]
      %v469 = vld [vmem:[%s1 + $0x5a8] sm:$0xff]
      %v470 = vld [vmem:[%s1 + $0x5b0] sm:$0xff]
      %v471 = vld [vmem:[%s1 + $0x5b8] sm:$0xff]
      %v472 = vld [vmem:[%s1 + $0x5c0] sm:$0xff]
      %v473 = vld [vmem:[%s1 + $0x5c8] sm:$0xff]
      %v474 = vld [vmem:[%s1 + $0x5d0] sm:$0xff]
      %v475 = vld [vmem:[%s1 + $0x5d8] sm:$0xff]
      %v476 = vld [vmem:[%s1 + $0x5e0] sm:$0xff]
      %v477 = vld [vmem:[%s1 + $0x5e8] sm:$0xff]
      %v478 = vld [vmem:[%s1 + $0x5f0] sm:$0xff]
      %v479 = vld [vmem:[%s1 + $0x5f8] sm:$0xff]
      %v480 = vld [vmem:[%s1 + $0x600] sm:$0xff]
      %v481 = vld [vmem:[%s1 + $0x608] sm:$0xff]
      %v482 = vld [vmem:[%s1 + $0x610] sm:$0xff]
      %v483 = vld [vmem:[%s1 + $0x618] sm:$0xff]
      %v484 = vld [vmem:[%s1 + $0x620] sm:$0xff]
      %v485 = vld [vmem:[%s1 + $0x628] sm:$0xff]
      %v486 = vld [vmem:[%s1 + $0x630] sm:$0xff]
      %v487 = vld [vmem:[%s1 + $0x638] sm:$0xff]
      %v488 = vld [vmem:[%s1 + $0x640] sm:$0xff]
      %v489 = vld [vmem:[%s1 + $0x648] sm:$0xff]
      %v490 = vld [vmem:[%s1 + $0x650] sm:$0xff]
      %v491 = vld [vmem:[%s1 + $0x658] sm:$0xff]
      %v492 = vld [vmem:[%s1 + $0x660] sm:$0xff]
      %v493 = vld [vmem:[%s1 + $0x668] sm:$0xff]
      %v494 = vld [vmem:[%s1 + $0x670] sm:$0xff]
      %v495 = vld [vmem:[%s1 + $0x678] sm:$0xff]
      %v496 = vld [vmem:[%s1 + $0x680] sm:$0xff]
      %v497 = vld [vmem:[%s1 + $0x688] sm:$0xff]
      %v498 = vld [vmem:[%s1 + $0x690] sm:$0xff]
      %v499 = vld [vmem:[%s1 + $0x698] sm:$0xff]
      %v500 = vld [vmem:[%s1 + $0x6a0] sm:$0xff]
      %v501 = vld [vmem:[%s1 + $0x6a8] sm:$0xff]
      %v502 = vld [vmem:[%s1 + $0x6b0] sm:$0xff]
      %v503 = vld [vmem:[%s1 + $0x6b8] sm:$0xff]
      %v504 = vld [vmem:[%s1 + $0x6c0] sm:$0xff]
      %v505 = vld [vmem:[%s1 + $0x6c8] sm:$0xff]
      %v506 = vld [vmem:[%s1 + $0x6d0] sm:$0xff]
      %v507 = vld [vmem:[%s1 + $0x6d8] sm:$0xff]
      %v508 = vld [vmem:[%s1 + $0x6e0] sm:$0xff]
      %v509 = vld [vmem:[%s1 + $0x6e8] sm:$0xff]
      %v510 = vld [vmem:[%s1 + $0x6f0] sm:$0xff]
      %v511 = vld [vmem:[%s1 + $0x6f8] sm:$0xff]
      %v512 = vld [vmem:[%s1 + $0x700] sm:$0xff]
      %v513 = vld [vmem:[%s1 + $0x708] sm:$0xff]
      %v514 = vld [vmem:[%s1 + $0x710] sm:$0xff]
      %v515 = vld [vmem:[%s1 + $0x718] sm:$0xff]
      %v516 = vld [vmem:[%s1 + $0x720] sm:$0xff]
      %v517 = vld [vmem:[%s1 + $0x728] sm:$0xff]
      %v518 = vld [vmem:[%s1 + $0x730] sm:$0xff]
      %v519 = vld [vmem:[%s1 + $0x738] sm:$0xff]
      %v520 = vld [vmem:[%s1 + $0x740] sm:$0xff]
      %v521 = vld [vmem:[%s1 + $0x748] sm:$0xff]
      %v522 = vld [vmem:[%s1 + $0x750] sm:$0xff]
      %v523 = vld [vmem:[%s1 + $0x758] sm:$0xff]
      %v524 = vld [vmem:[%s1 + $0x760] sm:$0xff]
      %v525 = vld [vmem:[%s1 + $0x768] sm:$0xff]
      %v526 = vld [vmem:[%s1 + $0x770] sm:$0xff]
      %v527 = vld [vmem:[%s1 + $0x778] sm:$0xff]
      %v528 = vld [vmem:[%s1 + $0x780] sm:$0xff]
      %v529 = vld [vmem:[%s1 + $0x788] sm:$0xff]
      %v530 = vld [vmem:[%s1 + $0x790] sm:$0xff]
      %v531 = vld [vmem:[%s1 + $0x798] sm:$0xff]
      %v532 = vld [vmem:[%s1 + $0x7a0] sm:$0xff]
      %v533 = vld [vmem:[%s1 + $0x7a8] sm:$0xff]
      %v534 = vld [vmem:[%s1 + $0x7b0] sm:$0xff]
      %v535 = vld [vmem:[%s1 + $0x7b8] sm:$0xff]
      %v536 = vld [vmem:[%s1 + $0x7c0] sm:$0xff]
      %v537 = vld [vmem:[%s1 + $0x7c8] sm:$0xff]
      %v538 = vld [vmem:[%s1 + $0x7d0] sm:$0xff]
      %v539 = vld [vmem:[%s1 + $0x7d8] sm:$0xff]
      %v540 = vld [vmem:[%s1 + $0x7e0] sm:$0xff]
      %v541 = vld [vmem:[%s1 + $0x7e8] sm:$0xff]
      %v542 = vld [vmem:[%s1 + $0x7f0] sm:$0xff]
      %v543 = vld [vmem:[%s1 + $0x7f8] sm:$0xff]
      %v544 = vld [vmem:[%s1 + $0x800] sm:$0xff]
      %v545 = vld [vmem:[%s1 + $0x808] sm:$0xff]
      %v546 = vld [vmem:[%s1 + $0x810] sm:$0xff]
      %v547 = vld [vmem:[%s1 + $0x818] sm:$0xff]
      %v548 = vld [vmem:[%s1 + $0x820] sm:$0xff]
      %v549 = vld [vmem:[%s1 + $0x828] sm:$0xff]
      %v550 = vld [vmem:[%s1 + $0x830] sm:$0xff]
      %v551 = vld [vmem:[%s1 + $0x838] sm:$0xff]
      %v552 = vld [vmem:[%s1 + $0x840] sm:$0xff]
      %v553 = vld [vmem:[%s1 + $0x848] sm:$0xff]
      %v554 = vld [vmem:[%s1 + $0x850] sm:$0xff]
      %v555 = vld [vmem:[%s1 + $0x858] sm:$0xff]
      %v556 = vld [vmem:[%s1 + $0x860] sm:$0xff]
      %v557 = vld [vmem:[%s1 + $0x868] sm:$0xff]
      %v558 = vld [vmem:[%s1 + $0x870] sm:$0xff]
      %v559 = vld [vmem:[%s1 + $0x878] sm:$0xff]
      %v560 = vld [vmem:[%s1 + $0x880] sm:$0xff]
      %v561 = vld [vmem:[%s1 + $0x888] sm:$0xff]
      %v562 = vld [vmem:[%s1 + $0x890] sm:$0xff]
      %v563 = vld [vmem:[%s1 + $0x898] sm:$0xff]
      %v564 = vld [vmem:[%s1 + $0x8a0] sm:$0xff]
      %v565 = vld [vmem:[%s1 + $0x8a8] sm:$0xff]
      %v566 = vld [vmem:[%s1 + $0x8b0] sm:$0xff]
      %v567 = vld [vmem:[%s1 + $0x8b8] sm:$0xff]
      %v568 = vld [vmem:[%s1 + $0x8c0] sm:$0xff]
      %v569 = vld [vmem:[%s1 + $0x8c8] sm:$0xff]
      %v570 = vld [vmem:[%s1 + $0x8d0] sm:$0xff]
      %v571 = vld [vmem:[%s1 + $0x8d8] sm:$0xff]
      %v572 = vld [vmem:[%s1 + $0x8e0] sm:$0xff]
      %v573 = vld [vmem:[%s1 + $0x8e8] sm:$0xff]
      %v574 = vld [vmem:[%s1 + $0x8f0] sm:$0xff]
      %v575 = vld [vmem:[%s1 + $0x8f8] sm:$0xff]
      %v576 = vld [vmem:[%s1 + $0x900] sm:$0xff]
      %v577 = vld [vmem:[%s1 + $0x908] sm:$0xff]
      %v578 = vld [vmem:[%s1 + $0x910] sm:$0xff]
      %v579 = vld [vmem:[%s1 + $0x918] sm:$0xff]
      %v580 = vld [vmem:[%s1 + $0x920] sm:$0xff]
      %v581 = vld [vmem:[%s1 + $0x928] sm:$0xff]
      %v582 = vld [vmem:[%s1 + $0x930] sm:$0xff]
      %v583 = vld [vmem:[%s1 + $0x938] sm:$0xff]
      %v584 = vld [vmem:[%s1 + $0x940] sm:$0xff]
      %v585 = vld [vmem:[%s1 + $0x948] sm:$0xff]
      %v586 = vld [vmem:[%s1 + $0x950] sm:$0xff]
      %v587 = vld [vmem:[%s1 + $0x958] sm:$0xff]
      %v588 = vld [vmem:[%s1 + $0x960] sm:$0xff]
      %v589 = vld [vmem:[%s1 + $0x968] sm:$0xff]
      %v590 = vld [vmem:[%s1 + $0x970] sm:$0xff]
      %v591 = vld [vmem:[%s1 + $0x978] sm:$0xff]
      %v592 = vld [vmem:[%s1 + $0x980] sm:$0xff]
      %v593 = vld [vmem:[%s1 + $0x988] sm:$0xff]
      %v594 = vld [vmem:[%s1 + $0x990] sm:$0xff]
      %v595 = vld [vmem:[%s1 + $0x998] sm:$0xff]
      %v596 = vld [vmem:[%s1 + $0x9a0] sm:$0xff]
      %v597 = vld [vmem:[%s1 + $0x9a8] sm:$0xff]
      %v598 = vld [vmem:[%s1 + $0x9b0] sm:$0xff]
      %v599 = vld [vmem:[%s1 + $0x9b8] sm:$0xff]
      %v600 = vld [vmem:[%s1 + $0x9c0] sm:$0xff]
      %v601 = vld [vmem:[%s1 + $0x9c8] sm:$0xff]
      %v602 = vld [vmem:[%s1 + $0x9d0] sm:$0xff]
      %v603 = vld [vmem:[%s1 + $0x9d8] sm:$0xff]
      %v604 = vld [vmem:[%s1 + $0x9e0] sm:$0xff]
      %v605 = vld [vmem:[%s1 + $0x9e8] sm:$0xff]
      %v606 = vld [vmem:[%s1 + $0x9f0] sm:$0xff]
      %v607 = vld [vmem:[%s1 + $0x9f8] sm:$0xff]
      %v608 = vld [vmem:[%s1 + $0xa00] sm:$0xff]
      %v609 = vld [vmem:[%s1 + $0xa08] sm:$0xff]
      %v610 = vld [vmem:[%s1 + $0xa10] sm:$0xff]
      %v611 = vld [vmem:[%s1 + $0xa18] sm:$0xff]
      %v612 = vld [vmem:[%s1 + $0xa20] sm:$0xff]
      %v613 = vld [vmem:[%s1 + $0xa28] sm:$0xff]
      %v614 = vld [vmem:[%s1 + $0xa30] sm:$0xff]
      %v615 = vld [vmem:[%s1 + $0xa38] sm:$0xff]
      %v616 = vld [vmem:[%s1 + $0xa40] sm:$0xff]
      %v617 = vld [vmem:[%s1 + $0xa48] sm:$0xff]
      %v618 = vld [vmem:[%s1 + $0xa50] sm:$0xff]
      %v619 = vld [vmem:[%s1 + $0xa58] sm:$0xff]
      %v620 = vld [vmem:[%s1 + $0xa60] sm:$0xff]
      %v621 = vld [vmem:[%s1 + $0xa68] sm:$0xff]
      %v622 = vld [vmem:[%s1 + $0xa70] sm:$0xff]
      %v623 = vld [vmem:[%s1 + $0xa78] sm:$0xff]
      %v624 = vld [vmem:[%s1 + $0xa80] sm:$0xff]
      %v625 = vld [vmem:[%s1 + $0xa88] sm:$0xff]
      %v626 = vld [vmem:[%s1 + $0xa90] sm:$0xff]
      %v627 = vld [vmem:[%s1 + $0xa98] sm:$0xff]
      %v628 = vld [vmem:[%s1 + $0xaa0] sm:$0xff]
      %v629 = vld [vmem:[%s1 + $0xaa8] sm:$0xff]
      %v630 = vld [vmem:[%s1 + $0xab0] sm:$0xff]
      %v631 = vld [vmem:[%s1 + $0xab8] sm:$0xff]
      %v632 = vld [vmem:[%s1 + $0xac0] sm:$0xff]
      %v633 = vld [vmem:[%s1 + $0xac8] sm:$0xff]
      %v634 = vld [vmem:[%s1 + $0xad0] sm:$0xff]
      %v635 = vld [vmem:[%s1 + $0xad8] sm:$0xff]
      %v636 = vld [vmem:[%s1 + $0xae0] sm:$0xff]
      %v637 = vld [vmem:[%s1 + $0xae8] sm:$0xff]
      %v638 = vld [vmem:[%s1 + $0xaf0] sm:$0xff]
      %v639 = vld [vmem:[%s1 + $0xaf8] sm:$0xff]
      %v640 = vld [vmem:[%s1 + $0xb00] sm:$0xff]
      %v641 = vld [vmem:[%s1 + $0xb08] sm:$0xff]
      %v642 = vld [vmem:[%s1 + $0xb10] sm:$0xff]
      %v643 = vld [vmem:[%s1 + $0xb18] sm:$0xff]
      %v644 = vld [vmem:[%s1 + $0xb20] sm:$0xff]
      %v645 = vld [vmem:[%s1 + $0xb28] sm:$0xff]
      %v646 = vld [vmem:[%s1 + $0xb30] sm:$0xff]
      %v647 = vld [vmem:[%s1 + $0xb38] sm:$0xff]
      %v648 = vld [vmem:[%s1 + $0xb40] sm:$0xff]
      %v649 = vld [vmem:[%s1 + $0xb48] sm:$0xff]
      %v650 = vld [vmem:[%s1 + $0xb50] sm:$0xff]
      %v651 = vld [vmem:[%s1 + $0xb58] sm:$0xff]
      %v652 = vld [vmem:[%s1 + $0xb60] sm:$0xff]
      %v653 = vld [vmem:[%s1 + $0xb68] sm:$0xff]
      %v654 = vld [vmem:[%s1 + $0xb70] sm:$0xff]
      %v655 = vld [vmem:[%s1 + $0xb78] sm:$0xff]
      %v656 = vld [vmem:[%s1 + $0xb80] sm:$0xff]
      %v657 = vld [vmem:[%s1 + $0xb88] sm:$0xff]
      %v658 = vld [vmem:[%s1 + $0xb90] sm:$0xff]
      %v659 = vld [vmem:[%s1 + $0xb98] sm:$0xff]
      %v660 = vld [vmem:[%s1 + $0xba0] sm:$0xff]
      %v661 = vld [vmem:[%s1 + $0xba8] sm:$0xff]
      %v662 = vld [vmem:[%s1 + $0xbb0] sm:$0xff]
      %v663 = vld [vmem:[%s1 + $0xbb8] sm:$0xff]
      %v664 = vld [vmem:[%s1 + $0xbc0] sm:$0xff]
      %v665 = vld [vmem:[%s1 + $0xbc8] sm:$0xff]
      %v666 = vld [vmem:[%s1 + $0xbd0] sm:$0xff]
      %v667 = vld [vmem:[%s1 + $0xbd8] sm:$0xff]
      %v668 = vld [vmem:[%s1 + $0xbe0] sm:$0xff]
      %v669 = vld [vmem:[%s1 + $0xbe8] sm:$0xff]
      %v670 = vld [vmem:[%s1 + $0xbf0] sm:$0xff]
      %v671 = vld [vmem:[%s1 + $0xbf8] sm:$0xff]
      %672 = vmatprep.subr.mxu0 %v379
      %673 = vmatpush1.msra.mxu0 %v378
      %674 = vmatprep.subr.mxu0 %v373
      %675 = vmatpush1.msra.mxu0 %v372
      %676 = vmatprep.subr.mxu0 %v367
      %677 = vmatpush1.msra.mxu0 %v366
      %678 = vmatprep.subr.mxu0 %v361
      %679 = vmatpush1.msra.mxu0 %v360
      %680 = vmatprep.subr.mxu0 %v355
      %681 = vmatpush1.msra.mxu0 %v354
      %682 = vmatprep.subr.mxu0 %v349
      %683 = vmatpush1.msra.mxu0 %v348
      %684 = vmatprep.subr.mxu0 %v343
      %685 = vmatpush1.msra.mxu0 %v342
      %686 = vmatprep.subr.mxu0 %v337
      %687 = vmatpush1.msra.mxu0 %v336
      %688 = vmatprep.subr.mxu0 %v331
      %689 = vmatpush1.msra.mxu0 %v330
      %690 = vmatprep.subr.mxu0 %v325
      %691 = vmatpush1.msra.mxu0 %v324
      %692 = vmatprep.subr.mxu0 %v319
      %693 = vmatpush1.msra.mxu0 %v318
      %694 = vmatprep.subr.mxu0 %v313
      %695 = vmatpush1.msra.mxu0 %v312
      %696 = vmatprep.subr.mxu0 %v307
      %697 = vmatpush1.msra.mxu0 %v306
      %698 = vmatprep.subr.mxu0 %v301
      %699 = vmatpush1.msra.mxu0 %v300
      %700 = vmatprep.subr.mxu0 %v295
      %701 = vmatpush1.msra.mxu0 %v294
      %702 = vmatprep.subr.mxu0 %v289
      %703 = vmatpush1.msra.mxu0 %v288
      %704 = vmatprep.subr.mxu0 %v475
      %705 = vmatpush2.msra.mxu0 %v474
      %706 = vmatprep.subr.mxu0 %v469
      %707 = vmatpush2.msra.mxu0 %v468
      %708 = vmatprep.subr.mxu0 %v463
      %709 = vmatpush2.msra.mxu0 %v462
      %710 = vmatprep.subr.mxu0 %v457
      %711 = vmatpush2.msra.mxu0 %v456
      %712 = vmatprep.subr.mxu0 %v451
      %713 = vmatpush2.msra.mxu0 %v450
      %714 = vmatprep.subr.mxu0 %v445
      %715 = vmatpush2.msra.mxu0 %v444
      %716 = vmatprep.subr.mxu0 %v439
      %717 = vmatpush2.msra.mxu0 %v438
      %718 = vmatprep.subr.mxu0 %v433
      %719 = vmatpush2.msra.mxu0 %v432
      %720 = vmatprep.subr.mxu0 %v427
      %721 = vmatpush2.msra.mxu0 %v426
      %722 = vmatprep.subr.mxu0 %v421
      %723 = vmatpush2.msra.mxu0 %v420
      %724 = vmatprep.subr.mxu0 %v415
      %725 = vmatpush2.msra.mxu0 %v414
      %726 = vmatprep.subr.mxu0 %v409
      %727 = vmatpush2.msra.mxu0 %v408
      %728 = vmatprep.subr.mxu0 %v403
      %729 = vmatpush2.msra.mxu0 %v402
      %730 = vmatprep.subr.mxu0 %v397
      %731 = vmatpush2.msra.mxu0 %v396
      %732 = vmatprep.subr.mxu0 %v391
      %733 = vmatpush2.msra.mxu0 %v390
      %734 = vmatprep.subr.mxu0 %v385
      %735 = vmatpush2.msra.mxu0 %v384
      %736 = vmatprep.mubr.f32.mxu0 %v277
      %737 = vmatmul.mubr.f32.gmra.mxu0 %v276
      %v738 = vpop.f32.mrf.mxu0
      %v739 = vadd.f32 0.0, %v738
      %v740 = vpop.f32.mrf.mxu0
      %v741 = vadd.f32 0.0, %v740
      %742 = vmatprep.mubr.f32.mxu0 %v281
      %743 = vmatmul.mubr.f32.gmra.mxu0 %v280
      %v744 = vpop.f32.mrf.mxu0
      %v745 = vadd.f32 0.0, %v744
      %v746 = vpop.f32.mrf.mxu0
      %v747 = vadd.f32 0.0, %v746
      %748 = vmatprep.mubr.f32.mxu0 %v285
      %749 = vmatmul.mubr.f32.gmra.mxu0 %v284
      %v750 = vpop.f32.mrf.mxu0
      %v751 = vadd.f32 0.0, %v750
      %v752 = vpop.f32.mrf.mxu0
      %v753 = vadd.f32 0.0, %v752
      %754 = vdwg.mxu0
      %755 = vmatprep.subr.mxu0 %v571
      %756 = vmatpush1.msra.mxu0 %v570
      %757 = vmatprep.subr.mxu0 %v565
      %758 = vmatpush1.msra.mxu0 %v564
      %759 = vmatprep.subr.mxu0 %v559
      %760 = vmatpush1.msra.mxu0 %v558
      %761 = vmatprep.subr.mxu0 %v553
      %762 = vmatpush1.msra.mxu0 %v552
      %763 = vmatprep.subr.mxu0 %v547
      %764 = vmatpush1.msra.mxu0 %v546
      %765 = vmatprep.subr.mxu0 %v541
      %766 = vmatpush1.msra.mxu0 %v540
      %767 = vmatprep.subr.mxu0 %v535
      %768 = vmatpush1.msra.mxu0 %v534
      %769 = vmatprep.subr.mxu0 %v529
      %770 = vmatpush1.msra.mxu0 %v528
      %771 = vmatprep.subr.mxu0 %v523
      %772 = vmatpush1.msra.mxu0 %v522
      %773 = vmatprep.subr.mxu0 %v517
      %774 = vmatpush1.msra.mxu0 %v516
      %775 = vmatprep.subr.mxu0 %v511
      %776 = vmatpush1.msra.mxu0 %v510
      %777 = vmatprep.subr.mxu0 %v505
      %778 = vmatpush1.msra.mxu0 %v504
      %779 = vmatprep.subr.mxu0 %v499
      %780 = vmatpush1.msra.mxu0 %v498
      %781 = vmatprep.subr.mxu0 %v493
      %782 = vmatpush1.msra.mxu0 %v492
      %783 = vmatprep.subr.mxu0 %v487
      %784 = vmatpush1.msra.mxu0 %v486
      %785 = vmatprep.subr.mxu0 %v481
      %786 = vmatpush1.msra.mxu0 %v480
      %787 = vmatprep.subr.mxu0 %v667
      %788 = vmatpush2.msra.mxu0 %v666
      %789 = vmatprep.subr.mxu0 %v661
      %790 = vmatpush2.msra.mxu0 %v660
      %791 = vmatprep.subr.mxu0 %v655
      %792 = vmatpush2.msra.mxu0 %v654
      %793 = vmatprep.subr.mxu0 %v649
      %794 = vmatpush2.msra.mxu0 %v648
      %795 = vmatprep.subr.mxu0 %v643
      %796 = vmatpush2.msra.mxu0 %v642
      %797 = vmatprep.subr.mxu0 %v637
      %798 = vmatpush2.msra.mxu0 %v636
      %799 = vmatprep.subr.mxu0 %v631
      %800 = vmatpush2.msra.mxu0 %v630
      %801 = vmatprep.subr.mxu0 %v625
      %802 = vmatpush2.msra.mxu0 %v624
      %803 = vmatprep.subr.mxu0 %v619
      %804 = vmatpush2.msra.mxu0 %v618
      %805 = vmatprep.subr.mxu0 %v613
      %806 = vmatpush2.msra.mxu0 %v612
      %807 = vmatprep.subr.mxu0 %v607
      %808 = vmatpush2.msra.mxu0 %v606
      %809 = vmatprep.subr.mxu0 %v601
      %810 = vmatpush2.msra.mxu0 %v600
      %811 = vmatprep.subr.mxu0 %v595
      %812 = vmatpush2.msra.mxu0 %v594
      %813 = vmatprep.subr.mxu0 %v589
      %814 = vmatpush2.msra.mxu0 %v588
      %815 = vmatprep.subr.mxu0 %v583
      %816 = vmatpush2.msra.mxu0 %v582
      %817 = vmatprep.subr.mxu0 %v577
      %818 = vmatpush2.msra.mxu0 %v576
      %819 = vmatprep.mubr.f32.mxu0 %v279
      %820 = vmatmul.mubr.f32.gmra.mxu0 %v278
      %v821 = vpop.f32.mrf.mxu0
      %v822 = vadd.f32 %v739, %v821
      %v823 = vpop.f32.mrf.mxu0
      %v824 = vadd.f32 %v741, %v823
      %825 = vmatprep.mubr.f32.mxu0 %v283
      %826 = vmatmul.mubr.f32.gmra.mxu0 %v282
      %v827 = vpop.f32.mrf.mxu0
      %v828 = vadd.f32 %v745, %v827
      %v829 = vpop.f32.mrf.mxu0
      %v830 = vadd.f32 %v747, %v829
      %831 = vmatprep.mubr.f32.mxu0 %v287
      %832 = vmatmul.mubr.f32.gmra.mxu0 %v286
      %v833 = vpop.f32.mrf.mxu0
      %v834 = vadd.f32 %v751, %v833
      %v835 = vpop.f32.mrf.mxu0
      %v836 = vadd.f32 %v753, %v835
      %837 = vdwg.mxu0
      %838 = vmatprep.subr.mxu0 %v381
      %839 = vmatpush1.msra.mxu0 %v380
      %840 = vmatprep.subr.mxu0 %v375
      %841 = vmatpush1.msra.mxu0 %v374
      %842 = vmatprep.subr.mxu0 %v369
      %843 = vmatpush1.msra.mxu0 %v368
      %844 = vmatprep.subr.mxu0 %v363
      %845 = vmatpush1.msra.mxu0 %v362
      %846 = vmatprep.subr.mxu0 %v357
      %847 = vmatpush1.msra.mxu0 %v356
      %848 = vmatprep.subr.mxu0 %v351
      %849 = vmatpush1.msra.mxu0 %v350
      %850 = vmatprep.subr.mxu0 %v345
      %851 = vmatpush1.msra.mxu0 %v344
      %852 = vmatprep.subr.mxu0 %v339
      %853 = vmatpush1.msra.mxu0 %v338
      %854 = vmatprep.subr.mxu0 %v333
      %855 = vmatpush1.msra.mxu0 %v332
      %856 = vmatprep.subr.mxu0 %v327
      %857 = vmatpush1.msra.mxu0 %v326
      %858 = vmatprep.subr.mxu0 %v321
      %859 = vmatpush1.msra.mxu0 %v320
      %860 = vmatprep.subr.mxu0 %v315
      %861 = vmatpush1.msra.mxu0 %v314
      %862 = vmatprep.subr.mxu0 %v309
      %863 = vmatpush1.msra.mxu0 %v308
      %864 = vmatprep.subr.mxu0 %v303
      %865 = vmatpush1.msra.mxu0 %v302
      %866 = vmatprep.subr.mxu0 %v297
      %867 = vmatpush1.msra.mxu0 %v296
      %868 = vmatprep.subr.mxu0 %v291
      %869 = vmatpush1.msra.mxu0 %v290
      %870 = vmatprep.subr.mxu0 %v477
      %871 = vmatpush2.msra.mxu0 %v476
      %872 = vmatprep.subr.mxu0 %v471
      %873 = vmatpush2.msra.mxu0 %v470
      %874 = vmatprep.subr.mxu0 %v465
      %875 = vmatpush2.msra.mxu0 %v464
      %876 = vmatprep.subr.mxu0 %v459
      %877 = vmatpush2.msra.mxu0 %v458
      %878 = vmatprep.subr.mxu0 %v453
      %879 = vmatpush2.msra.mxu0 %v452
      %880 = vmatprep.subr.mxu0 %v447
      %881 = vmatpush2.msra.mxu0 %v446
      %882 = vmatprep.subr.mxu0 %v441
      %883 = vmatpush2.msra.mxu0 %v440
      %884 = vmatprep.subr.mxu0 %v435
      %885 = vmatpush2.msra.mxu0 %v434
      %886 = vmatprep.subr.mxu0 %v429
      %887 = vmatpush2.msra.mxu0 %v428
      %888 = vmatprep.subr.mxu0 %v423
      %889 = vmatpush2.msra.mxu0 %v422
      %890 = vmatprep.subr.mxu0 %v417
      %891 = vmatpush2.msra.mxu0 %v416
      %892 = vmatprep.subr.mxu0 %v411
      %893 = vmatpush2.msra.mxu0 %v410
      %894 = vmatprep.subr.mxu0 %v405
      %895 = vmatpush2.msra.mxu0 %v404
      %896 = vmatprep.subr.mxu0 %v399
      %897 = vmatpush2.msra.mxu0 %v398
      %898 = vmatprep.subr.mxu0 %v393
      %899 = vmatpush2.msra.mxu0 %v392
      %900 = vmatprep.subr.mxu0 %v387
      %901 = vmatpush2.msra.mxu0 %v386
      %902 = vmatprep.mubr.f32.mxu0 %v277
      %903 = vmatmul.mubr.f32.gmra.mxu0 %v276
      %v904 = vpop.f32.mrf.mxu0
      %v905 = vadd.f32 0.0, %v904
      %v906 = vpop.f32.mrf.mxu0
      %v907 = vadd.f32 0.0, %v906
      %908 = vmatprep.mubr.f32.mxu0 %v281
      %909 = vmatmul.mubr.f32.gmra.mxu0 %v280
      %v910 = vpop.f32.mrf.mxu0
      %v911 = vadd.f32 0.0, %v910
      %v912 = vpop.f32.mrf.mxu0
      %v913 = vadd.f32 0.0, %v912
      %914 = vmatprep.mubr.f32.mxu0 %v285
      %915 = vmatmul.mubr.f32.gmra.mxu0 %v284
      %v916 = vpop.f32.mrf.mxu0
      %v917 = vadd.f32 0.0, %v916
      %v918 = vpop.f32.mrf.mxu0
      %v919 = vadd.f32 0.0, %v918
      %920 = vdwg.mxu0
      %921 = vmatprep.subr.mxu0 %v573
      %922 = vmatpush1.msra.mxu0 %v572
      %923 = vmatprep.subr.mxu0 %v567
      %924 = vmatpush1.msra.mxu0 %v566
      %925 = vmatprep.subr.mxu0 %v561
      %926 = vmatpush1.msra.mxu0 %v560
      %927 = vmatprep.subr.mxu0 %v555
      %928 = vmatpush1.msra.mxu0 %v554
      %929 = vmatprep.subr.mxu0 %v549
      %930 = vmatpush1.msra.mxu0 %v548
      %931 = vmatprep.subr.mxu0 %v543
      %932 = vmatpush1.msra.mxu0 %v542
      %933 = vmatprep.subr.mxu0 %v537
      %934 = vmatpush1.msra.mxu0 %v536
      %935 = vmatprep.subr.mxu0 %v531
      %936 = vmatpush1.msra.mxu0 %v530
      %937 = vmatprep.subr.mxu0 %v525
      %938 = vmatpush1.msra.mxu0 %v524
      %939 = vmatprep.subr.mxu0 %v519
      %940 = vmatpush1.msra.mxu0 %v518
      %941 = vmatprep.subr.mxu0 %v513
      %942 = vmatpush1.msra.mxu0 %v512
      %943 = vmatprep.subr.mxu0 %v507
      %944 = vmatpush1.msra.mxu0 %v506
      %945 = vmatprep.subr.mxu0 %v501
      %946 = vmatpush1.msra.mxu0 %v500
      %947 = vmatprep.subr.mxu0 %v495
      %948 = vmatpush1.msra.mxu0 %v494
      %949 = vmatprep.subr.mxu0 %v489
      %950 = vmatpush1.msra.mxu0 %v488
      %951 = vmatprep.subr.mxu0 %v483
      %952 = vmatpush1.msra.mxu0 %v482
      %953 = vmatprep.subr.mxu0 %v669
      %954 = vmatpush2.msra.mxu0 %v668
      %955 = vmatprep.subr.mxu0 %v663
      %956 = vmatpush2.msra.mxu0 %v662
      %957 = vmatprep.subr.mxu0 %v657
      %958 = vmatpush2.msra.mxu0 %v656
      %959 = vmatprep.subr.mxu0 %v651
      %960 = vmatpush2.msra.mxu0 %v650
      %961 = vmatprep.subr.mxu0 %v645
      %962 = vmatpush2.msra.mxu0 %v644
      %963 = vmatprep.subr.mxu0 %v639
      %964 = vmatpush2.msra.mxu0 %v638
      %965 = vmatprep.subr.mxu0 %v633
      %966 = vmatpush2.msra.mxu0 %v632
      %967 = vmatprep.subr.mxu0 %v627
      %968 = vmatpush2.msra.mxu0 %v626
      %969 = vmatprep.subr.mxu0 %v621
      %970 = vmatpush2.msra.mxu0 %v620
      %971 = vmatprep.subr.mxu0 %v615
      %972 = vmatpush2.msra.mxu0 %v614
      %973 = vmatprep.subr.mxu0 %v609
      %974 = vmatpush2.msra.mxu0 %v608
      %975 = vmatprep.subr.mxu0 %v603
      %976 = vmatpush2.msra.mxu0 %v602
      %977 = vmatprep.subr.mxu0 %v597
      %978 = vmatpush2.msra.mxu0 %v596
      %979 = vmatprep.subr.mxu0 %v591
      %980 = vmatpush2.msra.mxu0 %v590
      %981 = vmatprep.subr.mxu0 %v585
      %982 = vmatpush2.msra.mxu0 %v584
      %983 = vmatprep.subr.mxu0 %v579
      %984 = vmatpush2.msra.mxu0 %v578
      %985 = vmatprep.mubr.f32.mxu0 %v279
      %986 = vmatmul.mubr.f32.gmra.mxu0 %v278
      %v987 = vpop.f32.mrf.mxu0
      %v988 = vadd.f32 %v905, %v987
      %v989 = vpop.f32.mrf.mxu0
      %v990 = vadd.f32 %v907, %v989
      %991 = vmatprep.mubr.f32.mxu0 %v283
      %992 = vmatmul.mubr.f32.gmra.mxu0 %v282
      %v993 = vpop.f32.mrf.mxu0
      %v994 = vadd.f32 %v911, %v993
      %v995 = vpop.f32.mrf.mxu0
      %v996 = vadd.f32 %v913, %v995
      %997 = vmatprep.mubr.f32.mxu0 %v287
      %998 = vmatmul.mubr.f32.gmra.mxu0 %v286
      %v999 = vpop.f32.mrf.mxu0
      %v1000 = vadd.f32 %v917, %v999
      %v1001 = vpop.f32.mrf.mxu0
      %v1002 = vadd.f32 %v919, %v1001
      %1003 = vdwg.mxu0
      %1004 = vmatprep.subr.mxu0 %v383
      %1005 = vmatpush1.msra.mxu0 %v382
      %1006 = vmatprep.subr.mxu0 %v377
      %1007 = vmatpush1.msra.mxu0 %v376
      %1008 = vmatprep.subr.mxu0 %v371
      %1009 = vmatpush1.msra.mxu0 %v370
      %1010 = vmatprep.subr.mxu0 %v365
      %1011 = vmatpush1.msra.mxu0 %v364
      %1012 = vmatprep.subr.mxu0 %v359
      %1013 = vmatpush1.msra.mxu0 %v358
      %1014 = vmatprep.subr.mxu0 %v353
      %1015 = vmatpush1.msra.mxu0 %v352
      %1016 = vmatprep.subr.mxu0 %v347
      %1017 = vmatpush1.msra.mxu0 %v346
      %1018 = vmatprep.subr.mxu0 %v341
      %1019 = vmatpush1.msra.mxu0 %v340
      %1020 = vmatprep.subr.mxu0 %v335
      %1021 = vmatpush1.msra.mxu0 %v334
      %1022 = vmatprep.subr.mxu0 %v329
      %1023 = vmatpush1.msra.mxu0 %v328
      %1024 = vmatprep.subr.mxu0 %v323
      %1025 = vmatpush1.msra.mxu0 %v322
      %1026 = vmatprep.subr.mxu0 %v317
      %1027 = vmatpush1.msra.mxu0 %v316
      %1028 = vmatprep.subr.mxu0 %v311
      %1029 = vmatpush1.msra.mxu0 %v310
      %1030 = vmatprep.subr.mxu0 %v305
      %1031 = vmatpush1.msra.mxu0 %v304
      %1032 = vmatprep.subr.mxu0 %v299
      %1033 = vmatpush1.msra.mxu0 %v298
      %1034 = vmatprep.subr.mxu0 %v293
      %1035 = vmatpush1.msra.mxu0 %v292
      %1036 = vmatprep.subr.mxu0 %v479
      %1037 = vmatpush2.msra.mxu0 %v478
      %1038 = vmatprep.subr.mxu0 %v473
      %1039 = vmatpush2.msra.mxu0 %v472
      %1040 = vmatprep.subr.mxu0 %v467
      %1041 = vmatpush2.msra.mxu0 %v466
      %1042 = vmatprep.subr.mxu0 %v461
      %1043 = vmatpush2.msra.mxu0 %v460
      %1044 = vmatprep.subr.mxu0 %v455
      %1045 = vmatpush2.msra.mxu0 %v454
      %1046 = vmatprep.subr.mxu0 %v449
      %1047 = vmatpush2.msra.mxu0 %v448
      %1048 = vmatprep.subr.mxu0 %v443
      %1049 = vmatpush2.msra.mxu0 %v442
      %1050 = vmatprep.subr.mxu0 %v437
      %1051 = vmatpush2.msra.mxu0 %v436
      %1052 = vmatprep.subr.mxu0 %v431
      %1053 = vmatpush2.msra.mxu0 %v430
      %1054 = vmatprep.subr.mxu0 %v425
      %1055 = vmatpush2.msra.mxu0 %v424
      %1056 = vmatprep.subr.mxu0 %v419
      %1057 = vmatpush2.msra.mxu0 %v418
      %1058 = vmatprep.subr.mxu0 %v413
      %1059 = vmatpush2.msra.mxu0 %v412
      %1060 = vmatprep.subr.mxu0 %v407
      %1061 = vmatpush2.msra.mxu0 %v406
      %1062 = vmatprep.subr.mxu0 %v401
      %1063 = vmatpush2.msra.mxu0 %v400
      %1064 = vmatprep.subr.mxu0 %v395
      %1065 = vmatpush2.msra.mxu0 %v394
      %1066 = vmatprep.subr.mxu0 %v389
      %1067 = vmatpush2.msra.mxu0 %v388
      %1068 = vmatprep.mubr.f32.mxu0 %v277
      %1069 = vmatmul.mubr.f32.gmra.mxu0 %v276
      %v1070 = vpop.f32.mrf.mxu0
      %v1071 = vadd.f32 0.0, %v1070
      %v1072 = vpop.f32.mrf.mxu0
      %v1073 = vadd.f32 0.0, %v1072
      %1074 = vmatprep.mubr.f32.mxu0 %v281
      %1075 = vmatmul.mubr.f32.gmra.mxu0 %v280
      %v1076 = vpop.f32.mrf.mxu0
      %v1077 = vadd.f32 0.0, %v1076
      %v1078 = vpop.f32.mrf.mxu0
      %v1079 = vadd.f32 0.0, %v1078
      %1080 = vmatprep.mubr.f32.mxu0 %v285
      %1081 = vmatmul.mubr.f32.gmra.mxu0 %v284
      %v1082 = vpop.f32.mrf.mxu0
      %v1083 = vadd.f32 0.0, %v1082
      %v1084 = vpop.f32.mrf.mxu0
      %v1085 = vadd.f32 0.0, %v1084
      %1086 = vdwg.mxu0
      %1087 = vmatprep.subr.mxu0 %v575
      %1088 = vmatpush1.msra.mxu0 %v574
      %1089 = vmatprep.subr.mxu0 %v569
      %1090 = vmatpush1.msra.mxu0 %v568
      %1091 = vmatprep.subr.mxu0 %v563
      %1092 = vmatpush1.msra.mxu0 %v562
      %1093 = vmatprep.subr.mxu0 %v557
      %1094 = vmatpush1.msra.mxu0 %v556
      %1095 = vmatprep.subr.mxu0 %v551
      %1096 = vmatpush1.msra.mxu0 %v550
      %1097 = vmatprep.subr.mxu0 %v545
      %1098 = vmatpush1.msra.mxu0 %v544
      %1099 = vmatprep.subr.mxu0 %v539
      %1100 = vmatpush1.msra.mxu0 %v538
      %1101 = vmatprep.subr.mxu0 %v533
      %1102 = vmatpush1.msra.mxu0 %v532
      %1103 = vmatprep.subr.mxu0 %v527
      %1104 = vmatpush1.msra.mxu0 %v526
      %1105 = vmatprep.subr.mxu0 %v521
      %1106 = vmatpush1.msra.mxu0 %v520
      %1107 = vmatprep.subr.mxu0 %v515
      %1108 = vmatpush1.msra.mxu0 %v514
      %1109 = vmatprep.subr.mxu0 %v509
      %1110 = vmatpush1.msra.mxu0 %v508
      %1111 = vmatprep.subr.mxu0 %v503
      %1112 = vmatpush1.msra.mxu0 %v502
      %1113 = vmatprep.subr.mxu0 %v497
      %1114 = vmatpush1.msra.mxu0 %v496
      %1115 = vmatprep.subr.mxu0 %v491
      %1116 = vmatpush1.msra.mxu0 %v490
      %1117 = vmatprep.subr.mxu0 %v485
      %1118 = vmatpush1.msra.mxu0 %v484
      %1119 = vmatprep.subr.mxu0 %v671
      %1120 = vmatpush2.msra.mxu0 %v670
      %1121 = vmatprep.subr.mxu0 %v665
      %1122 = vmatpush2.msra.mxu0 %v664
      %1123 = vmatprep.subr.mxu0 %v659
      %1124 = vmatpush2.msra.mxu0 %v658
      %1125 = vmatprep.subr.mxu0 %v653
      %1126 = vmatpush2.msra.mxu0 %v652
      %1127 = vmatprep.subr.mxu0 %v647
      %1128 = vmatpush2.msra.mxu0 %v646
      %1129 = vmatprep.subr.mxu0 %v641
      %1130 = vmatpush2.msra.mxu0 %v640
      %1131 = vmatprep.subr.mxu0 %v635
      %1132 = vmatpush2.msra.mxu0 %v634
      %1133 = vmatprep.subr.mxu0 %v629
      %1134 = vmatpush2.msra.mxu0 %v628
      %1135 = vmatprep.subr.mxu0 %v623
      %1136 = vmatpush2.msra.mxu0 %v622
      %1137 = vmatprep.subr.mxu0 %v617
      %1138 = vmatpush2.msra.mxu0 %v616
      %1139 = vmatprep.subr.mxu0 %v611
      %1140 = vmatpush2.msra.mxu0 %v610
      %1141 = vmatprep.subr.mxu0 %v605
      %1142 = vmatpush2.msra.mxu0 %v604
      %1143 = vmatprep.subr.mxu0 %v599
      %1144 = vmatpush2.msra.mxu0 %v598
      %1145 = vmatprep.subr.mxu0 %v593
      %1146 = vmatpush2.msra.mxu0 %v592
      %1147 = vmatprep.subr.mxu0 %v587
      %1148 = vmatpush2.msra.mxu0 %v586
      %1149 = vmatprep.subr.mxu0 %v581
      %1150 = vmatpush2.msra.mxu0 %v580
      %1151 = vmatprep.mubr.f32.mxu0 %v279
      %1152 = vmatmul.mubr.f32.gmra.mxu0 %v278
      %v1153 = vpop.f32.mrf.mxu0
      %v1154 = vadd.f32 %v1071, %v1153
      %v1155 = vpop.f32.mrf.mxu0
      %v1156 = vadd.f32 %v1073, %v1155
      %1157 = vmatprep.mubr.f32.mxu0 %v283
      %1158 = vmatmul.mubr.f32.gmra.mxu0 %v282
      %v1159 = vpop.f32.mrf.mxu0
      %v1160 = vadd.f32 %v1077, %v1159
      %v1161 = vpop.f32.mrf.mxu0
      %v1162 = vadd.f32 %v1079, %v1161
      %1163 = vmatprep.mubr.f32.mxu0 %v287
      %1164 = vmatmul.mubr.f32.gmra.mxu0 %v286
      %v1165 = vpop.f32.mrf.mxu0
      %v1166 = vadd.f32 %v1083, %v1165
      %v1167 = vpop.f32.mrf.mxu0
      %v1168 = vadd.f32 %v1085, %v1167
      %1169 = vdwg.mxu0
      %v1170 = vmul.f32 %v822, %v822
      %v1171 = vmul.f32 %v824, %v824
      %v1172 = vmul.f32 %v988, %v988
      %v1173 = vmul.f32 %v828, %v828
      %v1174 = vmul.f32 %v830, %v830
      %v1175 = vmul.f32 %v994, %v994
      %v1176 = vmul.f32 %v834, %v834
      %v1177 = vmul.f32 %v836, %v836
      %v1178 = vmul.f32 %v1000, %v1000
      %v1179 = vmul.f32 %v990, %v990
      %v1180 = vmul.f32 %v1154, %v1154
      %v1181 = vmul.f32 %v1156, %v1156
      %v1182 = vmul.f32 %v996, %v996
      %v1183 = vmul.f32 %v1160, %v1160
      %v1184 = vmul.f32 %v1162, %v1162
      %v1185 = vmul.f32 %v1002, %v1002
      %v1186 = vmul.f32 %v1166, %v1166
      %v1187 = vmul.f32 %v1168, %v1168
      %v1188 = vadd.f32 %v1170, %v1179
      %v1189 = vadd.f32 %v1171, %v1180
      %v1190 = vadd.f32 %v1172, %v1181
      %v1191 = vadd.f32 %v1173, %v1182
      %v1192 = vadd.f32 %v1174, %v1183
      %v1193 = vadd.f32 %v1175, %v1184
      %v1194 = vadd.f32 %v1176, %v1185
      %v1195 = vadd.f32 %v1177, %v1186
      %v1196 = vadd.f32 %v1178, %v1187
      %v1197 = vld [vmem:[%s2] sm:$0xff]
      %v1198 = vld [vmem:[%s2 + $0x8] sm:$0xff]
      %v1199 = vld [vmem:[%s2 + $0x10] sm:$0xff]
      %v1200 = vld [vmem:[%s2 + $0x18] sm:$0xff]
      %v1201 = vld [vmem:[%s2 + $0x20] sm:$0xff]
      %v1202 = vld [vmem:[%s2 + $0x28] sm:$0xff]
      %v1203 = vld [vmem:[%s2 + $0x30] sm:$0xff]
      %v1204 = vld [vmem:[%s2 + $0x38] sm:$0xff]
      %v1205 = vld [vmem:[%s2 + $0x40] sm:$0xff]
      %v1206 = vld [vmem:[%s2 + $0x48] sm:$0xff]
      %v1207 = vld [vmem:[%s2 + $0x50] sm:$0xff]
      %v1208 = vld [vmem:[%s2 + $0x58] sm:$0xff]
      %v1209 = vld [vmem:[%s2 + $0x60] sm:$0xff]
      %v1210 = vld [vmem:[%s2 + $0x68] sm:$0xff]
      %v1211 = vld [vmem:[%s2 + $0x70] sm:$0xff]
      %v1212 = vld [vmem:[%s2 + $0x78] sm:$0xff]
      %v1213 = vld [vmem:[%s2 + $0x80] sm:$0xff]
      %v1214 = vld [vmem:[%s2 + $0x88] sm:$0xff]
      %v1215 = vld [vmem:[%s2 + $0x90] sm:$0xff]
      %v1216 = vld [vmem:[%s2 + $0x98] sm:$0xff]
      %v1217 = vld [vmem:[%s2 + $0xa0] sm:$0xff]
      %v1218 = vld [vmem:[%s2 + $0xa8] sm:$0xff]
      %v1219 = vld [vmem:[%s2 + $0xb0] sm:$0xff]
      %v1220 = vld [vmem:[%s2 + $0xb8] sm:$0xff]
      %v1221 = vld [vmem:[%s2 + $0xc0] sm:$0xff]
      %v1222 = vld [vmem:[%s2 + $0xc8] sm:$0xff]
      %v1223 = vld [vmem:[%s2 + $0xd0] sm:$0xff]
      %v1224 = vld [vmem:[%s2 + $0xd8] sm:$0xff]
      %v1225 = vld [vmem:[%s2 + $0xe0] sm:$0xff]
      %v1226 = vld [vmem:[%s2 + $0xe8] sm:$0xff]
      %v1227 = vld [vmem:[%s2 + $0xf0] sm:$0xff]
      %v1228 = vld [vmem:[%s2 + $0xf8] sm:$0xff]
      %v1229 = vld [vmem:[%s2 + $0x100] sm:$0xff]
      %v1230 = vld [vmem:[%s2 + $0x108] sm:$0xff]
      %v1231 = vld [vmem:[%s2 + $0x110] sm:$0xff]
      %v1232 = vld [vmem:[%s2 + $0x118] sm:$0xff]
      %v1233 = vld [vmem:[%s2 + $0x120] sm:$0xff]
      %v1234 = vld [vmem:[%s2 + $0x128] sm:$0xff]
      %v1235 = vld [vmem:[%s2 + $0x130] sm:$0xff]
      %v1236 = vld [vmem:[%s2 + $0x138] sm:$0xff]
      %v1237 = vld [vmem:[%s2 + $0x140] sm:$0xff]
      %v1238 = vld [vmem:[%s2 + $0x148] sm:$0xff]
      %v1239 = vld [vmem:[%s2 + $0x150] sm:$0xff]
      %v1240 = vld [vmem:[%s2 + $0x158] sm:$0xff]
      %v1241 = vld [vmem:[%s2 + $0x160] sm:$0xff]
      %v1242 = vld [vmem:[%s2 + $0x168] sm:$0xff]
      %v1243 = vld [vmem:[%s2 + $0x170] sm:$0xff]
      %v1244 = vld [vmem:[%s2 + $0x178] sm:$0xff]
      %1245 = vmatprep.subr.mxu0 0.0
      %1246 = vmatpush1.msra.mxu0 %v1212
      %1247 = vmatprep.subr.mxu0 0.0
      %1248 = vmatpush1.msra.mxu0 %v1211
      %1249 = vmatprep.subr.mxu0 0.0
      %1250 = vmatpush1.msra.mxu0 %v1210
      %1251 = vmatprep.subr.mxu0 0.0
      %1252 = vmatpush1.msra.mxu0 %v1209
      %1253 = vmatprep.subr.mxu0 0.0
      %1254 = vmatpush1.msra.mxu0 %v1208
      %1255 = vmatprep.subr.mxu0 0.0
      %1256 = vmatpush1.msra.mxu0 %v1207
      %1257 = vmatprep.subr.mxu0 0.0
      %1258 = vmatpush1.msra.mxu0 %v1206
      %1259 = vmatprep.subr.mxu0 0.0
      %1260 = vmatpush1.msra.mxu0 %v1205
      %1261 = vmatprep.subr.mxu0 0.0
      %1262 = vmatpush1.msra.mxu0 %v1204
      %1263 = vmatprep.subr.mxu0 0.0
      %1264 = vmatpush1.msra.mxu0 %v1203
      %1265 = vmatprep.subr.mxu0 0.0
      %1266 = vmatpush1.msra.mxu0 %v1202
      %1267 = vmatprep.subr.mxu0 0.0
      %1268 = vmatpush1.msra.mxu0 %v1201
      %1269 = vmatprep.subr.mxu0 0.0
      %1270 = vmatpush1.msra.mxu0 %v1200
      %1271 = vmatprep.subr.mxu0 0.0
      %1272 = vmatpush1.msra.mxu0 %v1199
      %1273 = vmatprep.subr.mxu0 0.0
      %1274 = vmatpush1.msra.mxu0 %v1198
      %1275 = vmatprep.subr.mxu0 0.0
      %1276 = vmatpush1.msra.mxu0 %v1197
      %1277 = vmatprep.subr.mxu0 0.0
      %1278 = vmatpush2.msra.mxu0 %v1228
      %1279 = vmatprep.subr.mxu0 0.0
      %1280 = vmatpush2.msra.mxu0 %v1227
      %1281 = vmatprep.subr.mxu0 0.0
      %1282 = vmatpush2.msra.mxu0 %v1226
      %1283 = vmatprep.subr.mxu0 0.0
      %1284 = vmatpush2.msra.mxu0 %v1225
      %1285 = vmatprep.subr.mxu0 0.0
      %1286 = vmatpush2.msra.mxu0 %v1224
      %1287 = vmatprep.subr.mxu0 0.0
      %1288 = vmatpush2.msra.mxu0 %v1223
      %1289 = vmatprep.subr.mxu0 0.0
      %1290 = vmatpush2.msra.mxu0 %v1222
      %1291 = vmatprep.subr.mxu0 0.0
      %1292 = vmatpush2.msra.mxu0 %v1221
      %1293 = vmatprep.subr.mxu0 0.0
      %1294 = vmatpush2.msra.mxu0 %v1220
      %1295 = vmatprep.subr.mxu0 0.0
      %1296 = vmatpush2.msra.mxu0 %v1219
      %1297 = vmatprep.subr.mxu0 0.0
      %1298 = vmatpush2.msra.mxu0 %v1218
      %1299 = vmatprep.subr.mxu0 0.0
      %1300 = vmatpush2.msra.mxu0 %v1217
      %1301 = vmatprep.subr.mxu0 0.0
      %1302 = vmatpush2.msra.mxu0 %v1216
      %1303 = vmatprep.subr.mxu0 0.0
      %1304 = vmatpush2.msra.mxu0 %v1215
      %1305 = vmatprep.subr.mxu0 0.0
      %1306 = vmatpush2.msra.mxu0 %v1214
      %1307 = vmatprep.subr.mxu0 0.0
      %1308 = vmatpush2.msra.mxu0 %v1213
      %1309 = vmatprep.mubr.f32.mxu0 %v1189
      %1310 = vmatmul.mubr.f32.gmra.mxu0 %v1188
      %v1311 = vpop.f32.mrf.mxu0
      %v1312 = vadd.f32 1e-06, %v1311
      %v1313 = vpop.f32.mrf.mxu0
      %1314 = vmatprep.mubr.f32.mxu0 %v1192
      %1315 = vmatmul.mubr.f32.gmra.mxu0 %v1191
      %v1316 = vpop.f32.mrf.mxu0
      %v1317 = vadd.f32 1e-06, %v1316
      %v1318 = vpop.f32.mrf.mxu0
      %1319 = vmatprep.mubr.f32.mxu0 %v1195
      %1320 = vmatmul.mubr.f32.gmra.mxu0 %v1194
      %v1321 = vpop.f32.mrf.mxu0
      %v1322 = vadd.f32 1e-06, %v1321
      %v1323 = vpop.f32.mrf.mxu0
      %1324 = vdwg.mxu0
      %1325 = vmatprep.subr.mxu0 0.0
      %1326 = vmatpush1.msra.mxu0 %v1244
      %1327 = vmatprep.subr.mxu0 0.0
      %1328 = vmatpush1.msra.mxu0 %v1243
      %1329 = vmatprep.subr.mxu0 0.0
      %1330 = vmatpush1.msra.mxu0 %v1242
      %1331 = vmatprep.subr.mxu0 0.0
      %1332 = vmatpush1.msra.mxu0 %v1241
      %1333 = vmatprep.subr.mxu0 0.0
      %1334 = vmatpush1.msra.mxu0 %v1240
      %1335 = vmatprep.subr.mxu0 0.0
      %1336 = vmatpush1.msra.mxu0 %v1239
      %1337 = vmatprep.subr.mxu0 0.0
      %1338 = vmatpush1.msra.mxu0 %v1238
      %1339 = vmatprep.subr.mxu0 0.0
      %1340 = vmatpush1.msra.mxu0 %v1237
      %1341 = vmatprep.subr.mxu0 0.0
      %1342 = vmatpush1.msra.mxu0 %v1236
      %1343 = vmatprep.subr.mxu0 0.0
      %1344 = vmatpush1.msra.mxu0 %v1235
      %1345 = vmatprep.subr.mxu0 0.0
      %1346 = vmatpush1.msra.mxu0 %v1234
      %1347 = vmatprep.subr.mxu0 0.0
      %1348 = vmatpush1.msra.mxu0 %v1233
      %1349 = vmatprep.subr.mxu0 0.0
      %1350 = vmatpush1.msra.mxu0 %v1232
      %1351 = vmatprep.subr.mxu0 0.0
      %1352 = vmatpush1.msra.mxu0 %v1231
      %1353 = vmatprep.subr.mxu0 0.0
      %1354 = vmatpush1.msra.mxu0 %v1230
      %1355 = vmatprep.subr.mxu0 0.0
      %1356 = vmatpush1.msra.mxu0 %v1229
      %1357 = vmatprep.subr.mxu0 0.0
      %1358 = vmatpush2.msra.mxu0 0.0
      %1359 = vmatprep.subr.mxu0 0.0
      %1360 = vmatpush2.msra.mxu0 0.0
      %1361 = vmatprep.subr.mxu0 0.0
      %1362 = vmatpush2.msra.mxu0 0.0
      %1363 = vmatprep.subr.mxu0 0.0
      %1364 = vmatpush2.msra.mxu0 0.0
      %1365 = vmatprep.subr.mxu0 0.0
      %1366 = vmatpush2.msra.mxu0 0.0
      %1367 = vmatprep.subr.mxu0 0.0
      %1368 = vmatpush2.msra.mxu0 0.0
      %1369 = vmatprep.subr.mxu0 0.0
      %1370 = vmatpush2.msra.mxu0 0.0
      %1371 = vmatprep.subr.mxu0 0.0
      %1372 = vmatpush2.msra.mxu0 0.0
      %1373 = vmatprep.subr.mxu0 0.0
      %1374 = vmatpush2.msra.mxu0 0.0
      %1375 = vmatprep.subr.mxu0 0.0
      %1376 = vmatpush2.msra.mxu0 0.0
      %1377 = vmatprep.subr.mxu0 0.0
      %1378 = vmatpush2.msra.mxu0 0.0
      %1379 = vmatprep.subr.mxu0 0.0
      %1380 = vmatpush2.msra.mxu0 0.0
      %1381 = vmatprep.subr.mxu0 0.0
      %1382 = vmatpush2.msra.mxu0 0.0
      %1383 = vmatprep.subr.mxu0 0.0
      %1384 = vmatpush2.msra.mxu0 0.0
      %1385 = vmatprep.subr.mxu0 0.0
      %1386 = vmatpush2.msra.mxu0 0.0
      %1387 = vmatprep.subr.mxu0 0.0
      %1388 = vmatpush2.msra.mxu0 0.0
      %1389 = vmatprep.mubr.f32.mxu0 0.0
      %1390 = vmatmul.mubr.f32.gmra.mxu0 %v1190
      %v1391 = vpop.f32.mrf.mxu0
      %v1392 = vadd.f32 %v1312, %v1391
      %v1393 = vpop.f32.mrf.mxu0
      %1394 = vmatprep.mubr.f32.mxu0 0.0
      %1395 = vmatmul.mubr.f32.gmra.mxu0 %v1193
      %v1396 = vpop.f32.mrf.mxu0
      %v1397 = vadd.f32 %v1317, %v1396
      %v1398 = vpop.f32.mrf.mxu0
      %1399 = vmatprep.mubr.f32.mxu0 0.0
      %1400 = vmatmul.mubr.f32.gmra.mxu0 %v1196
      %v1401 = vpop.f32.mrf.mxu0
      %v1402 = vadd.f32 %v1322, %v1401
      %v1403 = vpop.f32.mrf.mxu0
      %1404 = vdwg.mxu0
      %v1405 = vlog2.pop %v1392
      %v1406 = vmul.f32 %v1405, 0.6931472
      %v1407 = vlog2.pop %v1397
      %v1408 = vmul.f32 %v1407, 0.6931472
      %v1409 = vlog2.pop %v1402
      %v1410 = vmul.f32 %v1409, 0.6931472
      %v1411 = vadd.f32 %v1406, %v1408
      %vm1412 = vcmask 1044480
      %v1413 = vsel %vm1412, %v1410, 0.0
      %v1414 = vadd.f32 %v1411, %v1413
      %v1415 = vrot.slane %v1414, 4
      %v1416 = vadd.f32 %v1414, %v1415
      %v1417 = vrot.slane %v1416, 2
      %v1418 = vadd.f32 %v1416, %v1417
      %v1419 = vrot.slane %v1418, 1
      %v1420 = vadd.f32 %v1418, %v1419
      %v1421 = vrcp.pop 21.0
      %v1422 = vmul.f32 %v1420, %v1421
      %v1423 = vsub.f32 %v1406, %v1422
      %v1424 = vsub.f32 %v1408, %v1422
      %v1425 = vsub.f32 %v1410, %v1422
      %v1426 = vmul.f32 %v1423, %v1423
      %v1427 = vmul.f32 %v1424, %v1424
      %v1428 = vmul.f32 %v1425, %v1425
      %v1429 = vadd.f32 %v1426, %v1427
      %v1430 = vsel %vm1412, %v1428, 0.0
      %v1431 = vadd.f32 %v1429, %v1430
      %v1432 = vrot.slane %v1431, 4
      %v1433 = vadd.f32 %v1431, %v1432
      %v1434 = vrot.slane %v1433, 2
      %v1435 = vadd.f32 %v1433, %v1434
      %v1436 = vrot.slane %v1435, 1
      %v1437 = vadd.f32 %v1435, %v1436
      %v1438 = vmul.f32 %v1437, %v1421
      %v1439 = vadd.f32 %v1438, 1e-05
      %v1440 = vrsqrt.pop %v1439
      %v1441 = vmul.f32 %v1423, %v1440
      %v1442 = vmul.f32 %v1424, %v1440
      %v1443 = vmul.f32 %v1425, %v1440
      %v1444 = vld [vmem:[%s4] sm:$0x1f]
      %vm1448 = vcmask 1041408
      %v1449 = vrot.slane %v1441, 6
      %v1450 = vrot.slane %v1442, 6
      %v1451 = vsel %vm1448, %v1449, %v1450
      %v1452 = vrot.slane %v1443, 6
      %v1453 = vsel %vm1448, %v1450, %v1452
      %v1457 = vsel %vm1448, 0.0, %v1449
      %vm1458 = vcmask 1046528
      %v1459 = vsel %vm1458, %v1453, 0.0
      %v1460 = vpack.c.bf16 %v1451, %v1457
      %v1461 = vpack.c.bf16 %v1459, %v1459
      %v1462 = vld [vmem:[%s3] sm:$0xf]
      %v1463 = vld [vmem:[%s3 + $0x4] sm:$0xf]
      %v1464 = vld [vmem:[%s3 + $0x8] sm:$0xf]
      %v1465 = vld [vmem:[%s3 + $0xc] sm:$0xf]
      %v1466 = vld [vmem:[%s3 + $0x10] sm:$0xf]
      %v1467 = vld [vmem:[%s3 + $0x14] sm:$0xf]
      %v1468 = vld [vmem:[%s3 + $0x18] sm:$0xf]
      %v1469 = vld [vmem:[%s3 + $0x1c] sm:$0xf]
      %v1470 = vld [vmem:[%s3 + $0x20] sm:$0xf]
      %v1471 = vld [vmem:[%s3 + $0x24] sm:$0xf]
      %v1472 = vld [vmem:[%s3 + $0x28] sm:$0xf]
      %v1473 = vld [vmem:[%s3 + $0x2c] sm:$0xf]
      %v1474 = vld [vmem:[%s3 + $0x30] sm:$0xf]
      %v1475 = vld [vmem:[%s3 + $0x34] sm:$0xf]
      %v1476 = vld [vmem:[%s3 + $0x38] sm:$0xf]
      %v1477 = vld [vmem:[%s3 + $0x3c] sm:$0xf]
      %s1478 = scalar_lea.vmem %s3, 64
      %v1479 = vld [vmem:[%s1478] sm:$0xf]
      %v1480 = vld [vmem:[%s1478 + $0x4] sm:$0xf]
      %v1481 = vld [vmem:[%s1478 + $0x8] sm:$0xf]
      %v1482 = vld [vmem:[%s1478 + $0xc] sm:$0xf]
      %v1483 = vld [vmem:[%s1478 + $0x10] sm:$0xf]
      %v1484 = vld [vmem:[%s1478 + $0x14] sm:$0xf]
      %v1485 = vld [vmem:[%s1478 + $0x18] sm:$0xf]
      %v1486 = vld [vmem:[%s1478 + $0x1c] sm:$0xf]
      %v1487 = vld [vmem:[%s1478 + $0x20] sm:$0xf]
      %v1488 = vld [vmem:[%s1478 + $0x24] sm:$0xf]
      %v1489 = vld [vmem:[%s1478 + $0x28] sm:$0xf]
      %v1490 = vld [vmem:[%s1478 + $0x2c] sm:$0xf]
      %v1491 = vld [vmem:[%s1478 + $0x30] sm:$0xf]
      %v1492 = vld [vmem:[%s1478 + $0x34] sm:$0xf]
      %v1493 = vld [vmem:[%s1478 + $0x38] sm:$0xf]
      %v1494 = vld [vmem:[%s1478 + $0x3c] sm:$0xf]
      %vm1495 = vsmask.f32 7424
      %v1497 = vshrl.u32 %v1460, 16
      %v1499 = vshll.u32 %v1460, 16
      %v1501 = vrot.slane %v1499, 1
      %v1502 = vor.u32 %v1497, %v1501
      %v1504 = vshll.u32 %v1461, 16
      %v1506 = vrot.slane %v1504, 1
      %v1507 = vsel %vm1495, %v1502, %v1506
      %v1508 = vshrl.u32 %v1461, 16
      %v1510 = vor.u32 %v1508, %v1506
      %v1529 = vunpack.c.l.b16 %v1479
      %v1530 = vunpack.c.l.b16 %v1480
      %v1531 = vunpack.c.l.b16 %v1481
      %v1532 = vunpack.c.l.b16 %v1482
      %v1533 = vunpack.c.l.b16 %v1483
      %v1534 = vunpack.c.l.b16 %v1484
      %v1535 = vunpack.c.l.b16 %v1485
      %v1536 = vunpack.c.l.b16 %v1486
      %v1537 = vunpack.c.l.b16 %v1487
      %v1538 = vunpack.c.l.b16 %v1488
      %v1539 = vunpack.c.l.b16 %v1489
      %v1540 = vunpack.c.l.b16 %v1490
      %v1541 = vunpack.c.l.b16 %v1491
      %v1542 = vunpack.c.l.b16 %v1492
      %v1543 = vunpack.c.l.b16 %v1493
      %v1544 = vunpack.c.l.b16 %v1494
      %v1545 = vpack.c.b16 %v1530, %v1529
      %v1546 = vpack.c.b16 %v1532, %v1531
      %v1547 = vpack.c.b16 %v1534, %v1533
      %v1548 = vpack.c.b16 %v1536, %v1535
      %v1549 = vpack.c.b16 %v1538, %v1537
      %v1550 = vpack.c.b16 %v1540, %v1539
      %v1551 = vpack.c.b16 %v1542, %v1541
      %v1552 = vpack.c.b16 %v1544, %v1543
      %1561 = vmatprep.subr.bf16.mxu0 0
      %1562 = vmatpush1.bf16.msra.mxu0 %v1552
      %1563 = vmatprep.subr.bf16.mxu0 0
      %1564 = vmatpush1.bf16.msra.mxu0 %v1551
      %1565 = vmatprep.subr.bf16.mxu0 0
      %1566 = vmatpush1.bf16.msra.mxu0 %v1550
      %1567 = vmatprep.subr.bf16.mxu0 0
      %1568 = vmatpush1.bf16.msra.mxu0 %v1549
      %1569 = vmatprep.subr.bf16.mxu0 0
      %1570 = vmatpush1.bf16.msra.mxu0 %v1548
      %1571 = vmatprep.subr.bf16.mxu0 0
      %1572 = vmatpush1.bf16.msra.mxu0 %v1547
      %1573 = vmatprep.subr.bf16.mxu0 0
      %1574 = vmatpush1.bf16.msra.mxu0 %v1546
      %1575 = vmatprep.subr.bf16.mxu0 0
      %1576 = vmatpush1.bf16.msra.mxu0 %v1545
      %1577 = vmatprep.subr.bf16.mxu0 0
      %1578 = vmatpush2.bf16.msra.mxu0 0
      %1579 = vmatprep.subr.bf16.mxu0 0
      %1580 = vmatpush2.bf16.msra.mxu0 0
      %1581 = vmatprep.subr.bf16.mxu0 0
      %1582 = vmatpush2.bf16.msra.mxu0 0
      %1583 = vmatprep.subr.bf16.mxu0 0
      %1584 = vmatpush2.bf16.msra.mxu0 0
      %1585 = vmatprep.subr.bf16.mxu0 0
      %1586 = vmatpush2.bf16.msra.mxu0 0
      %1587 = vmatprep.subr.bf16.mxu0 0
      %1588 = vmatpush2.bf16.msra.mxu0 0
      %1589 = vmatprep.subr.bf16.mxu0 0
      %1590 = vmatpush2.bf16.msra.mxu0 0
      %1591 = vmatprep.subr.bf16.mxu0 0
      %1592 = vmatpush2.bf16.msra.mxu0 0
      %1593 = vmatprep.mubr.bf16.mxu0 0
      %1594 = vmatmul.mubr.bf16.gmra.mxu0 %v1507
      %v1595 = vpop.f32.mrf.mxu0
      %v1596 = vadd.f32 0.0, %v1595
      %v1597 = vpop.f32.mrf.mxu0
      %v1598 = vpop.f32.mrf.mxu0
      %v1599 = vadd.f32 0.0, %v1598
      %v1600 = vpop.f32.mrf.mxu0
      %1601 = vmatprep.mubr.bf16.mxu0 0
      %1602 = vmatmul.mubr.bf16.gmra.mxu0 %v1510
      %v1603 = vpop.f32.mrf.mxu0
      %v1604 = vadd.f32 0.0, %v1603
      %v1605 = vpop.f32.mrf.mxu0
      %v1606 = vpop.f32.mrf.mxu0
      %v1607 = vpop.f32.mrf.mxu0
      %1608 = vdwg.mxu0
      %v1625 = vunpack.c.l.b16 %v1462
      %v1626 = vunpack.c.l.b16 %v1463
      %v1627 = vunpack.c.l.b16 %v1464
      %v1628 = vunpack.c.l.b16 %v1465
      %v1629 = vunpack.c.l.b16 %v1466
      %v1630 = vunpack.c.l.b16 %v1467
      %v1631 = vunpack.c.l.b16 %v1468
      %v1632 = vunpack.c.l.b16 %v1469
      %v1633 = vunpack.c.l.b16 %v1470
      %v1634 = vunpack.c.l.b16 %v1471
      %v1635 = vunpack.c.l.b16 %v1472
      %v1636 = vunpack.c.l.b16 %v1473
      %v1637 = vunpack.c.l.b16 %v1474
      %v1638 = vunpack.c.l.b16 %v1475
      %v1639 = vunpack.c.l.b16 %v1476
      %v1640 = vunpack.c.l.b16 %v1477
      %v1641 = vpack.c.b16 %v1626, %v1625
      %v1642 = vpack.c.b16 %v1628, %v1627
      %v1643 = vpack.c.b16 %v1630, %v1629
      %v1644 = vpack.c.b16 %v1632, %v1631
      %v1645 = vpack.c.b16 %v1634, %v1633
      %v1646 = vpack.c.b16 %v1636, %v1635
      %v1647 = vpack.c.b16 %v1638, %v1637
      %v1648 = vpack.c.b16 %v1640, %v1639
      %1657 = vmatprep.subr.bf16.mxu0 0
      %1658 = vmatpush1.bf16.msra.mxu0 %v1648
      %1659 = vmatprep.subr.bf16.mxu0 0
      %1660 = vmatpush1.bf16.msra.mxu0 %v1647
      %1661 = vmatprep.subr.bf16.mxu0 0
      %1662 = vmatpush1.bf16.msra.mxu0 %v1646
      %1663 = vmatprep.subr.bf16.mxu0 0
      %1664 = vmatpush1.bf16.msra.mxu0 %v1645
      %1665 = vmatprep.subr.bf16.mxu0 0
      %1666 = vmatpush1.bf16.msra.mxu0 %v1644
      %1667 = vmatprep.subr.bf16.mxu0 0
      %1668 = vmatpush1.bf16.msra.mxu0 %v1643
      %1669 = vmatprep.subr.bf16.mxu0 0
      %1670 = vmatpush1.bf16.msra.mxu0 %v1642
      %1671 = vmatprep.subr.bf16.mxu0 0
      %1672 = vmatpush1.bf16.msra.mxu0 %v1641
      %1673 = vmatprep.subr.bf16.mxu0 0
      %1674 = vmatpush2.bf16.msra.mxu0 0
      %1675 = vmatprep.subr.bf16.mxu0 0
      %1676 = vmatpush2.bf16.msra.mxu0 0
      %1677 = vmatprep.subr.bf16.mxu0 0
      %1678 = vmatpush2.bf16.msra.mxu0 0
      %1679 = vmatprep.subr.bf16.mxu0 0
      %1680 = vmatpush2.bf16.msra.mxu0 0
      %1681 = vmatprep.subr.bf16.mxu0 0
      %1682 = vmatpush2.bf16.msra.mxu0 0
      %1683 = vmatprep.subr.bf16.mxu0 0
      %1684 = vmatpush2.bf16.msra.mxu0 0
      %1685 = vmatprep.subr.bf16.mxu0 0
      %1686 = vmatpush2.bf16.msra.mxu0 0
      %1687 = vmatprep.subr.bf16.mxu0 0
      %1688 = vmatpush2.bf16.msra.mxu0 0
      %1689 = vmatprep.mubr.bf16.mxu0 0
      %1690 = vmatmul.mubr.bf16.gmra.mxu0 %v1460
      %v1691 = vpop.f32.mrf.mxu0
      %v1692 = vadd.f32 %v1596, %v1691
      %v1693 = vpop.f32.mrf.mxu0
      %v1694 = vpop.f32.mrf.mxu0
      %v1695 = vadd.f32 %v1599, %v1694
      %v1696 = vpop.f32.mrf.mxu0
      %1697 = vmatprep.mubr.bf16.mxu0 0
      %1698 = vmatmul.mubr.bf16.gmra.mxu0 %v1461
      %v1699 = vpop.f32.mrf.mxu0
      %v1700 = vadd.f32 %v1604, %v1699
      %v1701 = vpop.f32.mrf.mxu0
      %v1702 = vpop.f32.mrf.mxu0
      %v1703 = vpop.f32.mrf.mxu0
      %1704 = vdwg.mxu0
      %s1705 = scalar_lea.vmem %s3, 128
      %v1706 = vld [vmem:[%s1705] sm:$0xf]
      %v1707 = vld [vmem:[%s1705 + $0x4] sm:$0xf]
      %v1708 = vld [vmem:[%s1705 + $0x8] sm:$0xf]
      %v1709 = vld [vmem:[%s1705 + $0xc] sm:$0xf]
      %v1710 = vld [vmem:[%s1705 + $0x10] sm:$0xf]
      %v1711 = vld [vmem:[%s1705 + $0x14] sm:$0xf]
      %v1712 = vld [vmem:[%s1705 + $0x18] sm:$0xf]
      %v1713 = vld [vmem:[%s1705 + $0x1c] sm:$0xf]
      %v1714 = vld [vmem:[%s1705 + $0x20] sm:$0xf]
      %v1715 = vld [vmem:[%s1705 + $0x24] sm:$0xf]
      %v1716 = vld [vmem:[%s1705 + $0x28] sm:$0xf]
      %v1717 = vld [vmem:[%s1705 + $0x2c] sm:$0xf]
      %v1718 = vld [vmem:[%s1705 + $0x30] sm:$0xf]
      %v1719 = vld [vmem:[%s1705 + $0x34] sm:$0xf]
      %v1720 = vld [vmem:[%s1705 + $0x38] sm:$0xf]
      %v1721 = vld [vmem:[%s1705 + $0x3c] sm:$0xf]
      %vm1724 = vcmask 1046528
      %v1725 = vrot.slane %v1460, 1
      %v1726 = vrot.slane %v1461, 1
      %v1727 = vsel %vm1724, %v1725, %v1726
      %v1746 = vunpack.c.l.b16 %v1706
      %v1747 = vunpack.c.l.b16 %v1707
      %v1748 = vunpack.c.l.b16 %v1708
      %v1749 = vunpack.c.l.b16 %v1709
      %v1750 = vunpack.c.l.b16 %v1710
      %v1751 = vunpack.c.l.b16 %v1711
      %v1752 = vunpack.c.l.b16 %v1712
      %v1753 = vunpack.c.l.b16 %v1713
      %v1754 = vunpack.c.l.b16 %v1714
      %v1755 = vunpack.c.l.b16 %v1715
      %v1756 = vunpack.c.l.b16 %v1716
      %v1757 = vunpack.c.l.b16 %v1717
      %v1758 = vunpack.c.l.b16 %v1718
      %v1759 = vunpack.c.l.b16 %v1719
      %v1760 = vunpack.c.l.b16 %v1720
      %v1761 = vunpack.c.l.b16 %v1721
      %v1762 = vpack.c.b16 %v1747, %v1746
      %v1763 = vpack.c.b16 %v1749, %v1748
      %v1764 = vpack.c.b16 %v1751, %v1750
      %v1765 = vpack.c.b16 %v1753, %v1752
      %v1766 = vpack.c.b16 %v1755, %v1754
      %v1767 = vpack.c.b16 %v1757, %v1756
      %v1768 = vpack.c.b16 %v1759, %v1758
      %v1769 = vpack.c.b16 %v1761, %v1760
      %1778 = vmatprep.subr.bf16.mxu0 0
      %1779 = vmatpush1.bf16.msra.mxu0 %v1769
      %1780 = vmatprep.subr.bf16.mxu0 0
      %1781 = vmatpush1.bf16.msra.mxu0 %v1768
      %1782 = vmatprep.subr.bf16.mxu0 0
      %1783 = vmatpush1.bf16.msra.mxu0 %v1767
      %1784 = vmatprep.subr.bf16.mxu0 0
      %1785 = vmatpush1.bf16.msra.mxu0 %v1766
      %1786 = vmatprep.subr.bf16.mxu0 0
      %1787 = vmatpush1.bf16.msra.mxu0 %v1765
      %1788 = vmatprep.subr.bf16.mxu0 0
      %1789 = vmatpush1.bf16.msra.mxu0 %v1764
      %1790 = vmatprep.subr.bf16.mxu0 0
      %1791 = vmatpush1.bf16.msra.mxu0 %v1763
      %1792 = vmatprep.subr.bf16.mxu0 0
      %1793 = vmatpush1.bf16.msra.mxu0 %v1762
      %1794 = vmatprep.subr.bf16.mxu0 0
      %1795 = vmatpush2.bf16.msra.mxu0 0
      %1796 = vmatprep.subr.bf16.mxu0 0
      %1797 = vmatpush2.bf16.msra.mxu0 0
      %1798 = vmatprep.subr.bf16.mxu0 0
      %1799 = vmatpush2.bf16.msra.mxu0 0
      %1800 = vmatprep.subr.bf16.mxu0 0
      %1801 = vmatpush2.bf16.msra.mxu0 0
      %1802 = vmatprep.subr.bf16.mxu0 0
      %1803 = vmatpush2.bf16.msra.mxu0 0
      %1804 = vmatprep.subr.bf16.mxu0 0
      %1805 = vmatpush2.bf16.msra.mxu0 0
      %1806 = vmatprep.subr.bf16.mxu0 0
      %1807 = vmatpush2.bf16.msra.mxu0 0
      %1808 = vmatprep.subr.bf16.mxu0 0
      %1809 = vmatpush2.bf16.msra.mxu0 0
      %1810 = vmatprep.mubr.bf16.mxu0 0
      %1811 = vmatmul.mubr.bf16.gmra.mxu0 %v1727
      %v1812 = vpop.f32.mrf.mxu0
      %v1813 = vadd.f32 0.0, %v1812
      %v1814 = vpop.f32.mrf.mxu0
      %v1815 = vpop.f32.mrf.mxu0
      %v1816 = vadd.f32 0.0, %v1815
      %v1817 = vpop.f32.mrf.mxu0
      %1818 = vmatprep.mubr.bf16.mxu0 0
      %1819 = vmatmul.mubr.bf16.gmra.mxu0 %v1726
      %v1820 = vpop.f32.mrf.mxu0
      %v1821 = vadd.f32 0.0, %v1820
      %v1822 = vpop.f32.mrf.mxu0
      %v1823 = vpop.f32.mrf.mxu0
      %v1824 = vpop.f32.mrf.mxu0
      %1825 = vdwg.mxu0
      %v1826 = vadd.f32 %v1692, %v1813
      %v1827 = vadd.f32 %v1695, %v1816
      %v1828 = vadd.f32 %v1700, %v1821
      %s1829 = scalar_lea.vmem %s3, 192
      %v1830 = vld [vmem:[%s1829] sm:$0xf]
      %v1831 = vld [vmem:[%s1829 + $0x4] sm:$0xf]
      %v1832 = vld [vmem:[%s1829 + $0x8] sm:$0xf]
      %v1833 = vld [vmem:[%s1829 + $0xc] sm:$0xf]
      %v1834 = vld [vmem:[%s1829 + $0x10] sm:$0xf]
      %v1835 = vld [vmem:[%s1829 + $0x14] sm:$0xf]
      %v1836 = vld [vmem:[%s1829 + $0x18] sm:$0xf]
      %v1837 = vld [vmem:[%s1829 + $0x1c] sm:$0xf]
      %v1838 = vld [vmem:[%s1829 + $0x20] sm:$0xf]
      %v1839 = vld [vmem:[%s1829 + $0x24] sm:$0xf]
      %v1840 = vld [vmem:[%s1829 + $0x28] sm:$0xf]
      %v1841 = vld [vmem:[%s1829 + $0x2c] sm:$0xf]
      %v1842 = vld [vmem:[%s1829 + $0x30] sm:$0xf]
      %v1843 = vld [vmem:[%s1829 + $0x34] sm:$0xf]
      %v1844 = vld [vmem:[%s1829 + $0x38] sm:$0xf]
      %v1845 = vld [vmem:[%s1829 + $0x3c] sm:$0xf]
      %vm1846 = vsmask.f32 6400
      %v1847 = vrot.slane %v1497, 1
      %v1848 = vrot.slane %v1499, 2
      %v1849 = vor.u32 %v1847, %v1848
      %v1850 = vrot.slane %v1508, 1
      %v1851 = vrot.slane %v1504, 2
      %v1852 = vor.u32 %v1850, %v1851
      %v1853 = vsel %vm1846, %v1849, %v1852
      %v1872 = vunpack.c.l.b16 %v1830
      %v1873 = vunpack.c.l.b16 %v1831
      %v1874 = vunpack.c.l.b16 %v1832
      %v1875 = vunpack.c.l.b16 %v1833
      %v1876 = vunpack.c.l.b16 %v1834
      %v1877 = vunpack.c.l.b16 %v1835
      %v1878 = vunpack.c.l.b16 %v1836
      %v1879 = vunpack.c.l.b16 %v1837
      %v1880 = vunpack.c.l.b16 %v1838
      %v1881 = vunpack.c.l.b16 %v1839
      %v1882 = vunpack.c.l.b16 %v1840
      %v1883 = vunpack.c.l.b16 %v1841
      %v1884 = vunpack.c.l.b16 %v1842
      %v1885 = vunpack.c.l.b16 %v1843
      %v1886 = vunpack.c.l.b16 %v1844
      %v1887 = vunpack.c.l.b16 %v1845
      %v1888 = vpack.c.b16 %v1873, %v1872
      %v1889 = vpack.c.b16 %v1875, %v1874
      %v1890 = vpack.c.b16 %v1877, %v1876
      %v1891 = vpack.c.b16 %v1879, %v1878
      %v1892 = vpack.c.b16 %v1881, %v1880
      %v1893 = vpack.c.b16 %v1883, %v1882
      %v1894 = vpack.c.b16 %v1885, %v1884
      %v1895 = vpack.c.b16 %v1887, %v1886
      %1904 = vmatprep.subr.bf16.mxu0 0
      %1905 = vmatpush1.bf16.msra.mxu0 %v1895
      %1906 = vmatprep.subr.bf16.mxu0 0
      %1907 = vmatpush1.bf16.msra.mxu0 %v1894
      %1908 = vmatprep.subr.bf16.mxu0 0
      %1909 = vmatpush1.bf16.msra.mxu0 %v1893
      %1910 = vmatprep.subr.bf16.mxu0 0
      %1911 = vmatpush1.bf16.msra.mxu0 %v1892
      %1912 = vmatprep.subr.bf16.mxu0 0
      %1913 = vmatpush1.bf16.msra.mxu0 %v1891
      %1914 = vmatprep.subr.bf16.mxu0 0
      %1915 = vmatpush1.bf16.msra.mxu0 %v1890
      %1916 = vmatprep.subr.bf16.mxu0 0
      %1917 = vmatpush1.bf16.msra.mxu0 %v1889
      %1918 = vmatprep.subr.bf16.mxu0 0
      %1919 = vmatpush1.bf16.msra.mxu0 %v1888
      %1920 = vmatprep.subr.bf16.mxu0 0
      %1921 = vmatpush2.bf16.msra.mxu0 0
      %1922 = vmatprep.subr.bf16.mxu0 0
      %1923 = vmatpush2.bf16.msra.mxu0 0
      %1924 = vmatprep.subr.bf16.mxu0 0
      %1925 = vmatpush2.bf16.msra.mxu0 0
      %1926 = vmatprep.subr.bf16.mxu0 0
      %1927 = vmatpush2.bf16.msra.mxu0 0
      %1928 = vmatprep.subr.bf16.mxu0 0
      %1929 = vmatpush2.bf16.msra.mxu0 0
      %1930 = vmatprep.subr.bf16.mxu0 0
      %1931 = vmatpush2.bf16.msra.mxu0 0
      %1932 = vmatprep.subr.bf16.mxu0 0
      %1933 = vmatpush2.bf16.msra.mxu0 0
      %1934 = vmatprep.subr.bf16.mxu0 0
      %1935 = vmatpush2.bf16.msra.mxu0 0
      %1936 = vmatprep.mubr.bf16.mxu0 0
      %1937 = vmatmul.mubr.bf16.gmra.mxu0 %v1853
      %v1938 = vpop.f32.mrf.mxu0
      %v1939 = vadd.f32 0.0, %v1938
      %v1940 = vpop.f32.mrf.mxu0
      %v1941 = vpop.f32.mrf.mxu0
      %v1942 = vadd.f32 0.0, %v1941
      %v1943 = vpop.f32.mrf.mxu0
      %1944 = vmatprep.mubr.bf16.mxu0 0
      %1945 = vmatmul.mubr.bf16.gmra.mxu0 %v1852
      %v1946 = vpop.f32.mrf.mxu0
      %v1947 = vadd.f32 0.0, %v1946
      %v1948 = vpop.f32.mrf.mxu0
      %v1949 = vpop.f32.mrf.mxu0
      %v1950 = vpop.f32.mrf.mxu0
      %1951 = vdwg.mxu0
      %v1952 = vadd.f32 %v1826, %v1939
      %v1953 = vadd.f32 %v1827, %v1942
      %v1954 = vadd.f32 %v1828, %v1947
      %v1955 = vpack.c.bf16 0.0, %v1459
      %s1956 = scalar_lea.vmem %s3, 256
      %v1957 = vld [vmem:[%s1956] sm:$0xf]
      %v1958 = vld [vmem:[%s1956 + $0x4] sm:$0xf]
      %v1959 = vld [vmem:[%s1956 + $0x8] sm:$0xf]
      %v1960 = vld [vmem:[%s1956 + $0xc] sm:$0xf]
      %v1961 = vld [vmem:[%s1956 + $0x10] sm:$0xf]
      %v1962 = vld [vmem:[%s1956 + $0x14] sm:$0xf]
      %v1963 = vld [vmem:[%s1956 + $0x18] sm:$0xf]
      %v1964 = vld [vmem:[%s1956 + $0x1c] sm:$0xf]
      %v1965 = vld [vmem:[%s1956 + $0x20] sm:$0xf]
      %v1966 = vld [vmem:[%s1956 + $0x24] sm:$0xf]
      %v1967 = vld [vmem:[%s1956 + $0x28] sm:$0xf]
      %v1968 = vld [vmem:[%s1956 + $0x2c] sm:$0xf]
      %v1969 = vld [vmem:[%s1956 + $0x30] sm:$0xf]
      %v1970 = vld [vmem:[%s1956 + $0x34] sm:$0xf]
      %v1971 = vld [vmem:[%s1956 + $0x38] sm:$0xf]
      %v1972 = vld [vmem:[%s1956 + $0x3c] sm:$0xf]
      %vm1974 = vcmask 1045504
      %v1975 = vrot.slane %v1460, 2
      %v1976 = vrot.slane %v1955, 2
      %v1977 = vsel %vm1974, %v1975, %v1976
      %v1996 = vunpack.c.l.b16 %v1957
      %v1997 = vunpack.c.l.b16 %v1958
      %v1998 = vunpack.c.l.b16 %v1959
      %v1999 = vunpack.c.l.b16 %v1960
      %v2000 = vunpack.c.l.b16 %v1961
      %v2001 = vunpack.c.l.b16 %v1962
      %v2002 = vunpack.c.l.b16 %v1963
      %v2003 = vunpack.c.l.b16 %v1964
      %v2004 = vunpack.c.l.b16 %v1965
      %v2005 = vunpack.c.l.b16 %v1966
      %v2006 = vunpack.c.l.b16 %v1967
      %v2007 = vunpack.c.l.b16 %v1968
      %v2008 = vunpack.c.l.b16 %v1969
      %v2009 = vunpack.c.l.b16 %v1970
      %v2010 = vunpack.c.l.b16 %v1971
      %v2011 = vunpack.c.l.b16 %v1972
      %v2012 = vpack.c.b16 %v1997, %v1996
      %v2013 = vpack.c.b16 %v1999, %v1998
      %v2014 = vpack.c.b16 %v2001, %v2000
      %v2015 = vpack.c.b16 %v2003, %v2002
      %v2016 = vpack.c.b16 %v2005, %v2004
      %v2017 = vpack.c.b16 %v2007, %v2006
      %v2018 = vpack.c.b16 %v2009, %v2008
      %v2019 = vpack.c.b16 %v2011, %v2010
      %2028 = vmatprep.subr.bf16.mxu0 0
      %2029 = vmatpush1.bf16.msra.mxu0 %v2019
      %2030 = vmatprep.subr.bf16.mxu0 0
      %2031 = vmatpush1.bf16.msra.mxu0 %v2018
      %2032 = vmatprep.subr.bf16.mxu0 0
      %2033 = vmatpush1.bf16.msra.mxu0 %v2017
      %2034 = vmatprep.subr.bf16.mxu0 0
      %2035 = vmatpush1.bf16.msra.mxu0 %v2016
      %2036 = vmatprep.subr.bf16.mxu0 0
      %2037 = vmatpush1.bf16.msra.mxu0 %v2015
      %2038 = vmatprep.subr.bf16.mxu0 0
      %2039 = vmatpush1.bf16.msra.mxu0 %v2014
      %2040 = vmatprep.subr.bf16.mxu0 0
      %2041 = vmatpush1.bf16.msra.mxu0 %v2013
      %2042 = vmatprep.subr.bf16.mxu0 0
      %2043 = vmatpush1.bf16.msra.mxu0 %v2012
      %2044 = vmatprep.subr.bf16.mxu0 0
      %2045 = vmatpush2.bf16.msra.mxu0 0
      %2046 = vmatprep.subr.bf16.mxu0 0
      %2047 = vmatpush2.bf16.msra.mxu0 0
      %2048 = vmatprep.subr.bf16.mxu0 0
      %2049 = vmatpush2.bf16.msra.mxu0 0
      %2050 = vmatprep.subr.bf16.mxu0 0
      %2051 = vmatpush2.bf16.msra.mxu0 0
      %2052 = vmatprep.subr.bf16.mxu0 0
      %2053 = vmatpush2.bf16.msra.mxu0 0
      %2054 = vmatprep.subr.bf16.mxu0 0
      %2055 = vmatpush2.bf16.msra.mxu0 0
      %2056 = vmatprep.subr.bf16.mxu0 0
      %2057 = vmatpush2.bf16.msra.mxu0 0
      %2058 = vmatprep.subr.bf16.mxu0 0
      %2059 = vmatpush2.bf16.msra.mxu0 0
      %2060 = vmatprep.mubr.bf16.mxu0 0
      %2061 = vmatmul.mubr.bf16.gmra.mxu0 %v1977
      %v2062 = vpop.f32.mrf.mxu0
      %v2063 = vadd.f32 0.0, %v2062
      %v2064 = vpop.f32.mrf.mxu0
      %v2065 = vpop.f32.mrf.mxu0
      %v2066 = vadd.f32 0.0, %v2065
      %v2067 = vpop.f32.mrf.mxu0
      %2068 = vmatprep.mubr.bf16.mxu0 0
      %2069 = vmatmul.mubr.bf16.gmra.mxu0 %v1976
      %v2070 = vpop.f32.mrf.mxu0
      %v2071 = vadd.f32 0.0, %v2070
      %v2072 = vpop.f32.mrf.mxu0
      %v2073 = vpop.f32.mrf.mxu0
      %v2074 = vpop.f32.mrf.mxu0
      %2075 = vdwg.mxu0
      %v2076 = vadd.f32 %v1952, %v2063
      %v2077 = vadd.f32 %v1953, %v2066
      %v2078 = vadd.f32 %v1954, %v2071
      %v2079 = vlaneseq
      %v2080 = vshrl.u32 %v2079, 7
      %v2081 = vsub.s32 0, %v2080
      %v2082 = vrot.slane %v1444, %v2081
      %v2083 = vadd.f32 %v2076, %v2082
      %v2084 = vadd.f32 %v2077, %v2082
      %v2085 = vadd.f32 %v2078, %v2082
      %v2086 = vmax.f32 %v2083, 0.0
      %v2087 = vmax.f32 %v2084, 0.0
      %v2088 = vmax.f32 %v2085, 0.0
      %v2092 = vrot.slane %v2086, 6
      %v2093 = vrot.slane %v2087, 6
      %v2094 = vsel %vm1448, %v2092, %v2093
      %v2095 = vrot.slane %v2088, 6
      %v2096 = vsel %vm1448, %v2093, %v2095
      %v2100 = vsel %vm1448, 0.0, %v2092
      %v2101 = vsel %vm1458, %v2096, 0.0
      %v2102 = vpack.c.bf16 %v2094, %v2100
      %v2103 = vpack.c.bf16 %v2101, %v2101
      %s2104 = scalar_lea.vmem %s3, 320
      %v2105 = vld [vmem:[%s2104] sm:$0xf]
      %v2106 = vld [vmem:[%s2104 + $0x4] sm:$0xf]
      %v2107 = vld [vmem:[%s2104 + $0x8] sm:$0xf]
      %v2108 = vld [vmem:[%s2104 + $0xc] sm:$0xf]
      %v2109 = vld [vmem:[%s2104 + $0x10] sm:$0xf]
      %v2110 = vld [vmem:[%s2104 + $0x14] sm:$0xf]
      %v2111 = vld [vmem:[%s2104 + $0x18] sm:$0xf]
      %v2112 = vld [vmem:[%s2104 + $0x1c] sm:$0xf]
      %v2113 = vld [vmem:[%s2104 + $0x20] sm:$0xf]
      %v2114 = vld [vmem:[%s2104 + $0x24] sm:$0xf]
      %v2115 = vld [vmem:[%s2104 + $0x28] sm:$0xf]
      %v2116 = vld [vmem:[%s2104 + $0x2c] sm:$0xf]
      %v2117 = vld [vmem:[%s2104 + $0x30] sm:$0xf]
      %v2118 = vld [vmem:[%s2104 + $0x34] sm:$0xf]
      %v2119 = vld [vmem:[%s2104 + $0x38] sm:$0xf]
      %v2120 = vld [vmem:[%s2104 + $0x3c] sm:$0xf]
      %s2121 = scalar_lea.vmem %s3, 384
      %v2122 = vld [vmem:[%s2121] sm:$0xf]
      %v2123 = vld [vmem:[%s2121 + $0x4] sm:$0xf]
      %v2124 = vld [vmem:[%s2121 + $0x8] sm:$0xf]
      %v2125 = vld [vmem:[%s2121 + $0xc] sm:$0xf]
      %v2126 = vld [vmem:[%s2121 + $0x10] sm:$0xf]
      %v2127 = vld [vmem:[%s2121 + $0x14] sm:$0xf]
      %v2128 = vld [vmem:[%s2121 + $0x18] sm:$0xf]
      %v2129 = vld [vmem:[%s2121 + $0x1c] sm:$0xf]
      %v2130 = vld [vmem:[%s2121 + $0x20] sm:$0xf]
      %v2131 = vld [vmem:[%s2121 + $0x24] sm:$0xf]
      %v2132 = vld [vmem:[%s2121 + $0x28] sm:$0xf]
      %v2133 = vld [vmem:[%s2121 + $0x2c] sm:$0xf]
      %v2134 = vld [vmem:[%s2121 + $0x30] sm:$0xf]
      %v2135 = vld [vmem:[%s2121 + $0x34] sm:$0xf]
      %v2136 = vld [vmem:[%s2121 + $0x38] sm:$0xf]
      %v2137 = vld [vmem:[%s2121 + $0x3c] sm:$0xf]
      %v2140 = vrot.slane %v2102, 1
      %v2141 = vrot.slane %v2103, 1
      %v2142 = vsel %vm1724, %v2140, %v2141
      %v2161 = vunpack.c.l.b16 %v2122
      %v2162 = vunpack.c.l.b16 %v2123
      %v2163 = vunpack.c.l.b16 %v2124
      %v2164 = vunpack.c.l.b16 %v2125
      %v2165 = vunpack.c.l.b16 %v2126
      %v2166 = vunpack.c.l.b16 %v2127
      %v2167 = vunpack.c.l.b16 %v2128
      %v2168 = vunpack.c.l.b16 %v2129
      %v2169 = vunpack.c.l.b16 %v2130
      %v2170 = vunpack.c.l.b16 %v2131
      %v2171 = vunpack.c.l.b16 %v2132
      %v2172 = vunpack.c.l.b16 %v2133
      %v2173 = vunpack.c.l.b16 %v2134
      %v2174 = vunpack.c.l.b16 %v2135
      %v2175 = vunpack.c.l.b16 %v2136
      %v2176 = vunpack.c.l.b16 %v2137
      %v2177 = vpack.c.b16 %v2162, %v2161
      %v2178 = vpack.c.b16 %v2164, %v2163
      %v2179 = vpack.c.b16 %v2166, %v2165
      %v2180 = vpack.c.b16 %v2168, %v2167
      %v2181 = vpack.c.b16 %v2170, %v2169
      %v2182 = vpack.c.b16 %v2172, %v2171
      %v2183 = vpack.c.b16 %v2174, %v2173
      %v2184 = vpack.c.b16 %v2176, %v2175
      %2193 = vmatprep.subr.bf16.mxu0 0
      %2194 = vmatpush1.bf16.msra.mxu0 %v2184
      %2195 = vmatprep.subr.bf16.mxu0 0
      %2196 = vmatpush1.bf16.msra.mxu0 %v2183
      %2197 = vmatprep.subr.bf16.mxu0 0
      %2198 = vmatpush1.bf16.msra.mxu0 %v2182
      %2199 = vmatprep.subr.bf16.mxu0 0
      %2200 = vmatpush1.bf16.msra.mxu0 %v2181
      %2201 = vmatprep.subr.bf16.mxu0 0
      %2202 = vmatpush1.bf16.msra.mxu0 %v2180
      %2203 = vmatprep.subr.bf16.mxu0 0
      %2204 = vmatpush1.bf16.msra.mxu0 %v2179
      %2205 = vmatprep.subr.bf16.mxu0 0
      %2206 = vmatpush1.bf16.msra.mxu0 %v2178
      %2207 = vmatprep.subr.bf16.mxu0 0
      %2208 = vmatpush1.bf16.msra.mxu0 %v2177
      %2209 = vmatprep.subr.bf16.mxu0 0
      %2210 = vmatpush2.bf16.msra.mxu0 0
      %2211 = vmatprep.subr.bf16.mxu0 0
      %2212 = vmatpush2.bf16.msra.mxu0 0
      %2213 = vmatprep.subr.bf16.mxu0 0
      %2214 = vmatpush2.bf16.msra.mxu0 0
      %2215 = vmatprep.subr.bf16.mxu0 0
      %2216 = vmatpush2.bf16.msra.mxu0 0
      %2217 = vmatprep.subr.bf16.mxu0 0
      %2218 = vmatpush2.bf16.msra.mxu0 0
      %2219 = vmatprep.subr.bf16.mxu0 0
      %2220 = vmatpush2.bf16.msra.mxu0 0
      %2221 = vmatprep.subr.bf16.mxu0 0
      %2222 = vmatpush2.bf16.msra.mxu0 0
      %2223 = vmatprep.subr.bf16.mxu0 0
      %2224 = vmatpush2.bf16.msra.mxu0 0
      %2225 = vmatprep.mubr.bf16.mxu0 0
      %2226 = vmatmul.mubr.bf16.gmra.mxu0 %v2142
      %v2227 = vpop.f32.mrf.mxu0
      %v2228 = vadd.f32 0.0, %v2227
      %v2229 = vpop.f32.mrf.mxu0
      %v2230 = vpop.f32.mrf.mxu0
      %v2231 = vadd.f32 0.0, %v2230
      %v2232 = vpop.f32.mrf.mxu0
      %2233 = vmatprep.mubr.bf16.mxu0 0
      %2234 = vmatmul.mubr.bf16.gmra.mxu0 %v2141
      %v2235 = vpop.f32.mrf.mxu0
      %v2236 = vadd.f32 0.0, %v2235
      %v2237 = vpop.f32.mrf.mxu0
      %v2238 = vpop.f32.mrf.mxu0
      %v2239 = vpop.f32.mrf.mxu0
      %2240 = vdwg.mxu0
      %v2257 = vunpack.c.l.b16 %v2105
      %v2258 = vunpack.c.l.b16 %v2106
      %v2259 = vunpack.c.l.b16 %v2107
      %v2260 = vunpack.c.l.b16 %v2108
      %v2261 = vunpack.c.l.b16 %v2109
      %v2262 = vunpack.c.l.b16 %v2110
      %v2263 = vunpack.c.l.b16 %v2111
      %v2264 = vunpack.c.l.b16 %v2112
      %v2265 = vunpack.c.l.b16 %v2113
      %v2266 = vunpack.c.l.b16 %v2114
      %v2267 = vunpack.c.l.b16 %v2115
      %v2268 = vunpack.c.l.b16 %v2116
      %v2269 = vunpack.c.l.b16 %v2117
      %v2270 = vunpack.c.l.b16 %v2118
      %v2271 = vunpack.c.l.b16 %v2119
      %v2272 = vunpack.c.l.b16 %v2120
      %v2273 = vpack.c.b16 %v2258, %v2257
      %v2274 = vpack.c.b16 %v2260, %v2259
      %v2275 = vpack.c.b16 %v2262, %v2261
      %v2276 = vpack.c.b16 %v2264, %v2263
      %v2277 = vpack.c.b16 %v2266, %v2265
      %v2278 = vpack.c.b16 %v2268, %v2267
      %v2279 = vpack.c.b16 %v2270, %v2269
      %v2280 = vpack.c.b16 %v2272, %v2271
      %2289 = vmatprep.subr.bf16.mxu0 0
      %2290 = vmatpush1.bf16.msra.mxu0 %v2280
      %2291 = vmatprep.subr.bf16.mxu0 0
      %2292 = vmatpush1.bf16.msra.mxu0 %v2279
      %2293 = vmatprep.subr.bf16.mxu0 0
      %2294 = vmatpush1.bf16.msra.mxu0 %v2278
      %2295 = vmatprep.subr.bf16.mxu0 0
      %2296 = vmatpush1.bf16.msra.mxu0 %v2277
      %2297 = vmatprep.subr.bf16.mxu0 0
      %2298 = vmatpush1.bf16.msra.mxu0 %v2276
      %2299 = vmatprep.subr.bf16.mxu0 0
      %2300 = vmatpush1.bf16.msra.mxu0 %v2275
      %2301 = vmatprep.subr.bf16.mxu0 0
      %2302 = vmatpush1.bf16.msra.mxu0 %v2274
      %2303 = vmatprep.subr.bf16.mxu0 0
      %2304 = vmatpush1.bf16.msra.mxu0 %v2273
      %2305 = vmatprep.subr.bf16.mxu0 0
      %2306 = vmatpush2.bf16.msra.mxu0 0
      %2307 = vmatprep.subr.bf16.mxu0 0
      %2308 = vmatpush2.bf16.msra.mxu0 0
      %2309 = vmatprep.subr.bf16.mxu0 0
      %2310 = vmatpush2.bf16.msra.mxu0 0
      %2311 = vmatprep.subr.bf16.mxu0 0
      %2312 = vmatpush2.bf16.msra.mxu0 0
      %2313 = vmatprep.subr.bf16.mxu0 0
      %2314 = vmatpush2.bf16.msra.mxu0 0
      %2315 = vmatprep.subr.bf16.mxu0 0
      %2316 = vmatpush2.bf16.msra.mxu0 0
      %2317 = vmatprep.subr.bf16.mxu0 0
      %2318 = vmatpush2.bf16.msra.mxu0 0
      %2319 = vmatprep.subr.bf16.mxu0 0
      %2320 = vmatpush2.bf16.msra.mxu0 0
      %2321 = vmatprep.mubr.bf16.mxu0 0
      %2322 = vmatmul.mubr.bf16.gmra.mxu0 %v2102
      %v2323 = vpop.f32.mrf.mxu0
      %v2324 = vadd.f32 %v2228, %v2323
      %v2325 = vpop.f32.mrf.mxu0
      %v2326 = vpop.f32.mrf.mxu0
      %v2327 = vadd.f32 %v2231, %v2326
      %v2328 = vpop.f32.mrf.mxu0
      %2329 = vmatprep.mubr.bf16.mxu0 0
      %2330 = vmatmul.mubr.bf16.gmra.mxu0 %v2103
      %v2331 = vpop.f32.mrf.mxu0
      %v2332 = vadd.f32 %v2236, %v2331
      %v2333 = vpop.f32.mrf.mxu0
      %v2334 = vpop.f32.mrf.mxu0
      %v2335 = vpop.f32.mrf.mxu0
      %2336 = vdwg.mxu0
      %v2337 = vpack.c.bf16 0.0, %v2101
      %s2338 = scalar_lea.vmem %s3, 448
      %v2339 = vld [vmem:[%s2338] sm:$0xf]
      %v2340 = vld [vmem:[%s2338 + $0x4] sm:$0xf]
      %v2341 = vld [vmem:[%s2338 + $0x8] sm:$0xf]
      %v2342 = vld [vmem:[%s2338 + $0xc] sm:$0xf]
      %v2343 = vld [vmem:[%s2338 + $0x10] sm:$0xf]
      %v2344 = vld [vmem:[%s2338 + $0x14] sm:$0xf]
      %v2345 = vld [vmem:[%s2338 + $0x18] sm:$0xf]
      %v2346 = vld [vmem:[%s2338 + $0x1c] sm:$0xf]
      %v2347 = vld [vmem:[%s2338 + $0x20] sm:$0xf]
      %v2348 = vld [vmem:[%s2338 + $0x24] sm:$0xf]
      %v2349 = vld [vmem:[%s2338 + $0x28] sm:$0xf]
      %v2350 = vld [vmem:[%s2338 + $0x2c] sm:$0xf]
      %v2351 = vld [vmem:[%s2338 + $0x30] sm:$0xf]
      %v2352 = vld [vmem:[%s2338 + $0x34] sm:$0xf]
      %v2353 = vld [vmem:[%s2338 + $0x38] sm:$0xf]
      %v2354 = vld [vmem:[%s2338 + $0x3c] sm:$0xf]
      %v2356 = vrot.slane %v2102, 2
      %v2357 = vrot.slane %v2337, 2
      %v2358 = vsel %vm1974, %v2356, %v2357
      %v2377 = vunpack.c.l.b16 %v2339
      %v2378 = vunpack.c.l.b16 %v2340
      %v2379 = vunpack.c.l.b16 %v2341
      %v2380 = vunpack.c.l.b16 %v2342
      %v2381 = vunpack.c.l.b16 %v2343
      %v2382 = vunpack.c.l.b16 %v2344
      %v2383 = vunpack.c.l.b16 %v2345
      %v2384 = vunpack.c.l.b16 %v2346
      %v2385 = vunpack.c.l.b16 %v2347
      %v2386 = vunpack.c.l.b16 %v2348
      %v2387 = vunpack.c.l.b16 %v2349
      %v2388 = vunpack.c.l.b16 %v2350
      %v2389 = vunpack.c.l.b16 %v2351
      %v2390 = vunpack.c.l.b16 %v2352
      %v2391 = vunpack.c.l.b16 %v2353
      %v2392 = vunpack.c.l.b16 %v2354
      %v2393 = vpack.c.b16 %v2378, %v2377
      %v2394 = vpack.c.b16 %v2380, %v2379
      %v2395 = vpack.c.b16 %v2382, %v2381
      %v2396 = vpack.c.b16 %v2384, %v2383
      %v2397 = vpack.c.b16 %v2386, %v2385
      %v2398 = vpack.c.b16 %v2388, %v2387
      %v2399 = vpack.c.b16 %v2390, %v2389
      %v2400 = vpack.c.b16 %v2392, %v2391
      %2409 = vmatprep.subr.bf16.mxu0 0
      %2410 = vmatpush1.bf16.msra.mxu0 %v2400
      %2411 = vmatprep.subr.bf16.mxu0 0
      %2412 = vmatpush1.bf16.msra.mxu0 %v2399
      %2413 = vmatprep.subr.bf16.mxu0 0
      %2414 = vmatpush1.bf16.msra.mxu0 %v2398
      %2415 = vmatprep.subr.bf16.mxu0 0
      %2416 = vmatpush1.bf16.msra.mxu0 %v2397
      %2417 = vmatprep.subr.bf16.mxu0 0
      %2418 = vmatpush1.bf16.msra.mxu0 %v2396
      %2419 = vmatprep.subr.bf16.mxu0 0
      %2420 = vmatpush1.bf16.msra.mxu0 %v2395
      %2421 = vmatprep.subr.bf16.mxu0 0
      %2422 = vmatpush1.bf16.msra.mxu0 %v2394
      %2423 = vmatprep.subr.bf16.mxu0 0
      %2424 = vmatpush1.bf16.msra.mxu0 %v2393
      %2425 = vmatprep.subr.bf16.mxu0 0
      %2426 = vmatpush2.bf16.msra.mxu0 0
      %2427 = vmatprep.subr.bf16.mxu0 0
      %2428 = vmatpush2.bf16.msra.mxu0 0
      %2429 = vmatprep.subr.bf16.mxu0 0
      %2430 = vmatpush2.bf16.msra.mxu0 0
      %2431 = vmatprep.subr.bf16.mxu0 0
      %2432 = vmatpush2.bf16.msra.mxu0 0
      %2433 = vmatprep.subr.bf16.mxu0 0
      %2434 = vmatpush2.bf16.msra.mxu0 0
      %2435 = vmatprep.subr.bf16.mxu0 0
      %2436 = vmatpush2.bf16.msra.mxu0 0
      %2437 = vmatprep.subr.bf16.mxu0 0
      %2438 = vmatpush2.bf16.msra.mxu0 0
      %2439 = vmatprep.subr.bf16.mxu0 0
      %2440 = vmatpush2.bf16.msra.mxu0 0
      %2441 = vmatprep.mubr.bf16.mxu0 0
      %2442 = vmatmul.mubr.bf16.gmra.mxu0 %v2358
      %v2443 = vpop.f32.mrf.mxu0
      %v2444 = vadd.f32 0.0, %v2443
      %v2445 = vpop.f32.mrf.mxu0
      %v2446 = vpop.f32.mrf.mxu0
      %v2447 = vadd.f32 0.0, %v2446
      %v2448 = vpop.f32.mrf.mxu0
      %2449 = vmatprep.mubr.bf16.mxu0 0
      %2450 = vmatmul.mubr.bf16.gmra.mxu0 %v2357
      %v2451 = vpop.f32.mrf.mxu0
      %v2452 = vadd.f32 0.0, %v2451
      %v2453 = vpop.f32.mrf.mxu0
      %v2454 = vpop.f32.mrf.mxu0
      %v2455 = vpop.f32.mrf.mxu0
      %2456 = vdwg.mxu0
      %v2457 = vadd.f32 %v2324, %v2444
      %v2458 = vadd.f32 %v2327, %v2447
      %v2459 = vadd.f32 %v2332, %v2452
      %v2460 = vlaneseq
      %v2461 = vshrl.u32 %v2460, 7
      %v2462 = vsub.s32 1, %v2461
      %v2463 = vrot.slane %v1444, %v2462
      %v2464 = vadd.f32 %v2457, %v2463
      %v2465 = vadd.f32 %v2458, %v2463
      %v2466 = vadd.f32 %v2459, %v2463
      %v2467 = vmax.f32 %v2464, 0.0
      %v2468 = vmax.f32 %v2465, 0.0
      %v2469 = vmax.f32 %v2466, 0.0
      %v2470 = vpack.c.bf16 %v2468, %v2467
      %v2471 = vpack.c.bf16 %v2469, %v2469
      %s2472 = scalar_lea.vmem %s3, 512
      %v2473 = vld [vmem:[%s2472] sm:$0xf]
      %v2474 = vld [vmem:[%s2472 + $0x4] sm:$0xf]
      %v2475 = vld [vmem:[%s2472 + $0x8] sm:$0xf]
      %v2476 = vld [vmem:[%s2472 + $0xc] sm:$0xf]
      %v2477 = vld [vmem:[%s2472 + $0x10] sm:$0xf]
      %v2478 = vld [vmem:[%s2472 + $0x14] sm:$0xf]
      %v2479 = vld [vmem:[%s2472 + $0x18] sm:$0xf]
      %v2480 = vld [vmem:[%s2472 + $0x1c] sm:$0xf]
      %v2481 = vld [vmem:[%s2472 + $0x20] sm:$0xf]
      %v2482 = vld [vmem:[%s2472 + $0x24] sm:$0xf]
      %v2483 = vld [vmem:[%s2472 + $0x28] sm:$0xf]
      %v2484 = vld [vmem:[%s2472 + $0x2c] sm:$0xf]
      %v2485 = vld [vmem:[%s2472 + $0x30] sm:$0xf]
      %v2486 = vld [vmem:[%s2472 + $0x34] sm:$0xf]
      %v2487 = vld [vmem:[%s2472 + $0x38] sm:$0xf]
      %v2488 = vld [vmem:[%s2472 + $0x3c] sm:$0xf]
      %v2489 = vlaneseq
      %v2490 = vshrl.u32 %v2489, 7
      %v2491 = vsub.s32 2, %v2490
      %v2492 = vrot.slane %v1444, %v2491
      %v2509 = vunpack.c.l.b16 %v2473
      %v2510 = vunpack.c.l.b16 %v2474
      %v2511 = vunpack.c.l.b16 %v2475
      %v2512 = vunpack.c.l.b16 %v2476
      %v2513 = vunpack.c.l.b16 %v2477
      %v2514 = vunpack.c.l.b16 %v2478
      %v2515 = vunpack.c.l.b16 %v2479
      %v2516 = vunpack.c.l.b16 %v2480
      %v2517 = vunpack.c.l.b16 %v2481
      %v2518 = vunpack.c.l.b16 %v2482
      %v2519 = vunpack.c.l.b16 %v2483
      %v2520 = vunpack.c.l.b16 %v2484
      %v2521 = vunpack.c.l.b16 %v2485
      %v2522 = vunpack.c.l.b16 %v2486
      %v2523 = vunpack.c.l.b16 %v2487
      %v2524 = vunpack.c.l.b16 %v2488
      %v2525 = vpack.c.b16 %v2510, %v2509
      %v2526 = vpack.c.b16 %v2512, %v2511
      %v2527 = vpack.c.b16 %v2514, %v2513
      %v2528 = vpack.c.b16 %v2516, %v2515
      %v2529 = vpack.c.b16 %v2518, %v2517
      %v2530 = vpack.c.b16 %v2520, %v2519
      %v2531 = vpack.c.b16 %v2522, %v2521
      %v2532 = vpack.c.b16 %v2524, %v2523
      %2541 = vmatprep.subr.bf16.mxu0 0
      %2542 = vmatpush1.bf16.msra.mxu0 %v2532
      %2543 = vmatprep.subr.bf16.mxu0 0
      %2544 = vmatpush1.bf16.msra.mxu0 %v2531
      %2545 = vmatprep.subr.bf16.mxu0 0
      %2546 = vmatpush1.bf16.msra.mxu0 %v2530
      %2547 = vmatprep.subr.bf16.mxu0 0
      %2548 = vmatpush1.bf16.msra.mxu0 %v2529
      %2549 = vmatprep.subr.bf16.mxu0 0
      %2550 = vmatpush1.bf16.msra.mxu0 %v2528
      %2551 = vmatprep.subr.bf16.mxu0 0
      %2552 = vmatpush1.bf16.msra.mxu0 %v2527
      %2553 = vmatprep.subr.bf16.mxu0 0
      %2554 = vmatpush1.bf16.msra.mxu0 %v2526
      %2555 = vmatprep.subr.bf16.mxu0 0
      %2556 = vmatpush1.bf16.msra.mxu0 %v2525
      %2557 = vmatprep.subr.bf16.mxu0 0
      %2558 = vmatpush2.bf16.msra.mxu0 0
      %2559 = vmatprep.subr.bf16.mxu0 0
      %2560 = vmatpush2.bf16.msra.mxu0 0
      %2561 = vmatprep.subr.bf16.mxu0 0
      %2562 = vmatpush2.bf16.msra.mxu0 0
      %2563 = vmatprep.subr.bf16.mxu0 0
      %2564 = vmatpush2.bf16.msra.mxu0 0
      %2565 = vmatprep.subr.bf16.mxu0 0
      %2566 = vmatpush2.bf16.msra.mxu0 0
      %2567 = vmatprep.subr.bf16.mxu0 0
      %2568 = vmatpush2.bf16.msra.mxu0 0
      %2569 = vmatprep.subr.bf16.mxu0 0
      %2570 = vmatpush2.bf16.msra.mxu0 0
      %2571 = vmatprep.subr.bf16.mxu0 0
      %2572 = vmatpush2.bf16.msra.mxu0 0
      %2573 = vmatprep.mubr.bf16.mxu0 0
      %2574 = vmatmul.mubr.bf16.gmra.mxu0 %v2470
      %v2575 = vpop.f32.mrf.mxu0
      %v2576 = vadd.f32 %v2492, %v2575
      %v2577 = vpop.f32.mrf.mxu0
      %v2578 = vpop.f32.mrf.mxu0
      %v2579 = vadd.f32 %v2492, %v2578
      %v2580 = vpop.f32.mrf.mxu0
      %2581 = vmatprep.mubr.bf16.mxu0 0
      %2582 = vmatmul.mubr.bf16.gmra.mxu0 %v2471
      %v2583 = vpop.f32.mrf.mxu0
      %v2584 = vadd.f32 %v2492, %v2583
      %v2585 = vpop.f32.mrf.mxu0
      %v2586 = vpop.f32.mrf.mxu0
      %v2587 = vpop.f32.mrf.mxu0
      %2588 = vdwg.mxu0
      %v2589 = vmax.f32 %v2576, 0.0
      %v2590 = vmax.f32 %v2579, 0.0
      %v2591 = vmax.f32 %v2584, 0.0
      %v2592 = vadd.f32 %v2589, %v2590
      %v2593 = vsel %vm1412, %v2591, 0.0
      %v2594 = vadd.f32 %v2592, %v2593
      %v2595 = vrot.slane %v2594, 4
      %v2596 = vadd.f32 %v2594, %v2595
      %v2597 = vrot.slane %v2596, 2
      %v2598 = vadd.f32 %v2596, %v2597
      %v2599 = vrot.slane %v2598, 1
      %v2600 = vadd.f32 %v2598, %v2599
      %v2601 = vmul.f32 %v2600, %v1421
      %v2602 = vsub.f32 %v2589, %v2601
      %v2603 = vsub.f32 %v2590, %v2601
      %v2604 = vsub.f32 %v2591, %v2601
      %v2605 = vmul.f32 %v2602, %v2602
      %v2606 = vmul.f32 %v2603, %v2603
      %v2607 = vmul.f32 %v2604, %v2604
      %v2608 = vadd.f32 %v2605, %v2606
      %v2609 = vsel %vm1412, %v2607, 0.0
      %v2610 = vadd.f32 %v2608, %v2609
      %v2611 = vrot.slane %v2610, 4
      %v2612 = vadd.f32 %v2610, %v2611
      %v2613 = vrot.slane %v2612, 2
      %v2614 = vadd.f32 %v2612, %v2613
      %v2615 = vrot.slane %v2614, 1
      %v2616 = vadd.f32 %v2614, %v2615
      %v2617 = vmul.f32 %v2616, %v1421
      %v2618 = vadd.f32 %v2617, 1e-08
      %v2619 = vrsqrt.pop %v2618
      %v2620 = vmul.f32 %v2618, %v2619
      %vm2621 = vcmp.eq.f32.partialorder %v2618, inf
      %v2622 = vsel %vm2621, %v2618, %v2620
      %vm2623 = vcmp.eq.f32.partialorder %v2618, 0.0
      %v2624 = vand.u32 %v2618, 2147483648
      %v2625 = vsel %vm2623, %v2624, %v2622
      %v2626 = vpack.c.bf16 %v2601, %v2601
      %v2627 = vpack.c.bf16 %v2625, %v2625
      %v2628 = vld [vmem:[%s5] sm:$0xf]
      %v2629 = vld [vmem:[%s5 + $0x4] sm:$0xf]
      %v2630 = vld [vmem:[%s5 + $0x8] sm:$0xf]
      %v2631 = vld [vmem:[%s5 + $0xc] sm:$0xf]
      %v2632 = vld [vmem:[%s5 + $0x10] sm:$0xf]
      %v2633 = vld [vmem:[%s5 + $0x14] sm:$0xf]
      %v2634 = vld [vmem:[%s5 + $0x18] sm:$0xf]
      %v2635 = vld [vmem:[%s5 + $0x1c] sm:$0xf]
      %v2636 = vld [vmem:[%s5 + $0x20] sm:$0xf]
      %v2637 = vld [vmem:[%s5 + $0x24] sm:$0xf]
      %v2638 = vld [vmem:[%s5 + $0x28] sm:$0xf]
      %v2639 = vld [vmem:[%s5 + $0x2c] sm:$0xf]
      %v2640 = vld [vmem:[%s5 + $0x30] sm:$0xf]
      %v2641 = vld [vmem:[%s5 + $0x34] sm:$0xf]
      %v2642 = vld [vmem:[%s5 + $0x38] sm:$0xf]
      %v2643 = vld [vmem:[%s5 + $0x3c] sm:$0xf]
      %v2644 = vld [vmem:[%s5 + $0x40] sm:$0xf]
      %v2645 = vld [vmem:[%s5 + $0x44] sm:$0xf]
      %v2646 = vld [vmem:[%s5 + $0x48] sm:$0xf]
      %v2647 = vld [vmem:[%s5 + $0x4c] sm:$0xf]
      %v2648 = vld [vmem:[%s5 + $0x50] sm:$0xf]
      %v2649 = vld [vmem:[%s5 + $0x54] sm:$0xf]
      %v2650 = vld [vmem:[%s5 + $0x58] sm:$0xf]
      %v2651 = vld [vmem:[%s5 + $0x5c] sm:$0xf]
      %v2652 = vld [vmem:[%s5 + $0x60] sm:$0xf]
      %v2653 = vld [vmem:[%s5 + $0x64] sm:$0xf]
      %v2654 = vld [vmem:[%s5 + $0x68] sm:$0xf]
      %v2655 = vld [vmem:[%s5 + $0x6c] sm:$0xf]
      %v2656 = vld [vmem:[%s5 + $0x70] sm:$0xf]
      %v2657 = vld [vmem:[%s5 + $0x74] sm:$0xf]
      %v2658 = vld [vmem:[%s5 + $0x78] sm:$0xf]
      %v2659 = vld [vmem:[%s5 + $0x7c] sm:$0xf]
      %v2692 = vunpack.c.l.b16 %v2628
      %v2693 = vunpack.c.l.b16 %v2629
      %v2694 = vunpack.c.l.b16 %v2630
      %v2695 = vunpack.c.l.b16 %v2631
      %v2696 = vunpack.c.l.b16 %v2632
      %v2697 = vunpack.c.l.b16 %v2633
      %v2698 = vunpack.c.l.b16 %v2634
      %v2699 = vunpack.c.l.b16 %v2635
      %v2700 = vunpack.c.l.b16 %v2636
      %v2701 = vunpack.c.l.b16 %v2637
      %v2702 = vunpack.c.l.b16 %v2638
      %v2703 = vunpack.c.l.b16 %v2639
      %v2704 = vunpack.c.l.b16 %v2640
      %v2705 = vunpack.c.l.b16 %v2641
      %v2706 = vunpack.c.l.b16 %v2642
      %v2707 = vunpack.c.l.b16 %v2643
      %v2708 = vunpack.c.l.b16 %v2644
      %v2709 = vunpack.c.l.b16 %v2645
      %v2710 = vunpack.c.l.b16 %v2646
      %v2711 = vunpack.c.l.b16 %v2647
      %v2712 = vunpack.c.l.b16 %v2648
      %v2713 = vunpack.c.l.b16 %v2649
      %v2714 = vunpack.c.l.b16 %v2650
      %v2715 = vunpack.c.l.b16 %v2651
      %v2716 = vunpack.c.l.b16 %v2652
      %v2717 = vunpack.c.l.b16 %v2653
      %v2718 = vunpack.c.l.b16 %v2654
      %v2719 = vunpack.c.l.b16 %v2655
      %v2720 = vunpack.c.l.b16 %v2656
      %v2721 = vunpack.c.l.b16 %v2657
      %v2722 = vunpack.c.l.b16 %v2658
      %v2723 = vunpack.c.l.b16 %v2659
      %v2724 = vpack.c.b16 %v2693, %v2692
      %v2725 = vpack.c.b16 %v2695, %v2694
      %v2726 = vpack.c.b16 %v2697, %v2696
      %v2727 = vpack.c.b16 %v2699, %v2698
      %v2728 = vpack.c.b16 %v2701, %v2700
      %v2729 = vpack.c.b16 %v2703, %v2702
      %v2730 = vpack.c.b16 %v2705, %v2704
      %v2731 = vpack.c.b16 %v2707, %v2706
      %v2732 = vpack.c.b16 %v2709, %v2708
      %v2733 = vpack.c.b16 %v2711, %v2710
      %v2734 = vpack.c.b16 %v2713, %v2712
      %v2735 = vpack.c.b16 %v2715, %v2714
      %v2736 = vpack.c.b16 %v2717, %v2716
      %v2737 = vpack.c.b16 %v2719, %v2718
      %v2738 = vpack.c.b16 %v2721, %v2720
      %v2739 = vpack.c.b16 %v2723, %v2722
      %v2757 = vrot.slane %v1444, 3
      %2759 = vmatprep.subr.bf16.mxu0 0
      %2760 = vmatpush1.bf16.msra.mxu0 %v2731
      %2761 = vmatprep.subr.bf16.mxu0 0
      %2762 = vmatpush1.bf16.msra.mxu0 %v2730
      %2763 = vmatprep.subr.bf16.mxu0 0
      %2764 = vmatpush1.bf16.msra.mxu0 %v2729
      %2765 = vmatprep.subr.bf16.mxu0 0
      %2766 = vmatpush1.bf16.msra.mxu0 %v2728
      %2767 = vmatprep.subr.bf16.mxu0 0
      %2768 = vmatpush1.bf16.msra.mxu0 %v2727
      %2769 = vmatprep.subr.bf16.mxu0 0
      %2770 = vmatpush1.bf16.msra.mxu0 %v2726
      %2771 = vmatprep.subr.bf16.mxu0 0
      %2772 = vmatpush1.bf16.msra.mxu0 %v2725
      %2773 = vmatprep.subr.bf16.mxu0 0
      %2774 = vmatpush1.bf16.msra.mxu0 %v2724
      %2775 = vmatprep.subr.bf16.mxu0 0
      %2776 = vmatpush2.bf16.msra.mxu0 %v2739
      %2777 = vmatprep.subr.bf16.mxu0 0
      %2778 = vmatpush2.bf16.msra.mxu0 %v2738
      %2779 = vmatprep.subr.bf16.mxu0 0
      %2780 = vmatpush2.bf16.msra.mxu0 %v2737
      %2781 = vmatprep.subr.bf16.mxu0 0
      %2782 = vmatpush2.bf16.msra.mxu0 %v2736
      %2783 = vmatprep.subr.bf16.mxu0 0
      %2784 = vmatpush2.bf16.msra.mxu0 %v2735
      %2785 = vmatprep.subr.bf16.mxu0 0
      %2786 = vmatpush2.bf16.msra.mxu0 %v2734
      %2787 = vmatprep.subr.bf16.mxu0 0
      %2788 = vmatpush2.bf16.msra.mxu0 %v2733
      %2789 = vmatprep.subr.bf16.mxu0 0
      %2790 = vmatpush2.bf16.msra.mxu0 %v2732
      %2791 = vmatprep.mubr.bf16.mxu0 %v2627
      %2792 = vmatmul.mubr.bf16.gmra.mxu0 %v2626
      %v2793 = vpop.f32.mrf.mxu0
      %v2794 = vadd.f32 %v2757, %v2793
      %v2795 = vpop.f32.mrf.mxu0
      %v2796 = vpop.f32.mrf.mxu0
      %v2797 = vpop.f32.mrf.mxu0
      %2798 = vdwg.mxu0
      %v2799 = vpack.c.bf16 %v2794, %v2794
      %v2800 = vld [vmem:[%s6] sm:$0xf]
      %v2801 = vld [vmem:[%s6 + $0x4] sm:$0xf]
      %v2802 = vld [vmem:[%s6 + $0x8] sm:$0xf]
      %v2803 = vld [vmem:[%s6 + $0xc] sm:$0xf]
      %v2804 = vld [vmem:[%s6 + $0x10] sm:$0xf]
      %v2805 = vld [vmem:[%s6 + $0x14] sm:$0xf]
      %v2806 = vld [vmem:[%s6 + $0x18] sm:$0xf]
      %v2807 = vld [vmem:[%s6 + $0x1c] sm:$0xf]
      %v2808 = vld [vmem:[%s6 + $0x20] sm:$0xf]
      %v2809 = vld [vmem:[%s6 + $0x24] sm:$0xf]
      %v2810 = vld [vmem:[%s6 + $0x28] sm:$0xf]
      %v2811 = vld [vmem:[%s6 + $0x2c] sm:$0xf]
      %v2812 = vld [vmem:[%s6 + $0x30] sm:$0xf]
      %v2813 = vld [vmem:[%s6 + $0x34] sm:$0xf]
      %v2814 = vld [vmem:[%s6 + $0x38] sm:$0xf]
      %v2815 = vld [vmem:[%s6 + $0x3c] sm:$0xf]
      %v2832 = vunpack.c.l.b16 %v2800
      %v2833 = vunpack.c.l.b16 %v2801
      %v2834 = vunpack.c.l.b16 %v2802
      %v2835 = vunpack.c.l.b16 %v2803
      %v2836 = vunpack.c.l.b16 %v2804
      %v2837 = vunpack.c.l.b16 %v2805
      %v2838 = vunpack.c.l.b16 %v2806
      %v2839 = vunpack.c.l.b16 %v2807
      %v2840 = vunpack.c.l.b16 %v2808
      %v2841 = vunpack.c.l.b16 %v2809
      %v2842 = vunpack.c.l.b16 %v2810
      %v2843 = vunpack.c.l.b16 %v2811
      %v2844 = vunpack.c.l.b16 %v2812
      %v2845 = vunpack.c.l.b16 %v2813
      %v2846 = vunpack.c.l.b16 %v2814
      %v2847 = vunpack.c.l.b16 %v2815
      %v2848 = vpack.c.b16 %v2833, %v2832
      %v2849 = vpack.c.b16 %v2835, %v2834
      %v2850 = vpack.c.b16 %v2837, %v2836
      %v2851 = vpack.c.b16 %v2839, %v2838
      %v2852 = vpack.c.b16 %v2841, %v2840
      %v2853 = vpack.c.b16 %v2843, %v2842
      %v2854 = vpack.c.b16 %v2845, %v2844
      %v2855 = vpack.c.b16 %v2847, %v2846
      %v2864 = vrot.slane %v1444, 4
      %2866 = vmatprep.subr.bf16.mxu0 0
      %2867 = vmatpush1.bf16.msra.mxu0 %v2855
      %2868 = vmatprep.subr.bf16.mxu0 0
      %2869 = vmatpush1.bf16.msra.mxu0 %v2854
      %2870 = vmatprep.subr.bf16.mxu0 0
      %2871 = vmatpush1.bf16.msra.mxu0 %v2853
      %2872 = vmatprep.subr.bf16.mxu0 0
      %2873 = vmatpush1.bf16.msra.mxu0 %v2852
      %2874 = vmatprep.subr.bf16.mxu0 0
      %2875 = vmatpush1.bf16.msra.mxu0 %v2851
      %2876 = vmatprep.subr.bf16.mxu0 0
      %2877 = vmatpush1.bf16.msra.mxu0 %v2850
      %2878 = vmatprep.subr.bf16.mxu0 0
      %2879 = vmatpush1.bf16.msra.mxu0 %v2849
      %2880 = vmatprep.subr.bf16.mxu0 0
      %2881 = vmatpush1.bf16.msra.mxu0 %v2848
      %2882 = vmatprep.subr.bf16.mxu0 0
      %2883 = vmatpush2.bf16.msra.mxu0 0
      %2884 = vmatprep.subr.bf16.mxu0 0
      %2885 = vmatpush2.bf16.msra.mxu0 0
      %2886 = vmatprep.subr.bf16.mxu0 0
      %2887 = vmatpush2.bf16.msra.mxu0 0
      %2888 = vmatprep.subr.bf16.mxu0 0
      %2889 = vmatpush2.bf16.msra.mxu0 0
      %2890 = vmatprep.subr.bf16.mxu0 0
      %2891 = vmatpush2.bf16.msra.mxu0 0
      %2892 = vmatprep.subr.bf16.mxu0 0
      %2893 = vmatpush2.bf16.msra.mxu0 0
      %2894 = vmatprep.subr.bf16.mxu0 0
      %2895 = vmatpush2.bf16.msra.mxu0 0
      %2896 = vmatprep.subr.bf16.mxu0 0
      %2897 = vmatpush2.bf16.msra.mxu0 0
      %2898 = vmatprep.mubr.bf16.mxu0 0
      %2899 = vmatmul.mubr.bf16.gmra.mxu0 %v2799
      %v2900 = vpop.f32.mrf.mxu0
      %v2901 = vadd.f32 %v2864, %v2900
      %v2902 = vpop.f32.mrf.mxu0
      %v2903 = vpop.f32.mrf.mxu0
      %v2904 = vpop.f32.mrf.mxu0
      %2905 = vdwg.mxu0
      %2906 = vst [vmem:[%s274] sm:$0x1] %v2901
      %p2907 = scmp.lt.s32.totalorder %s18, 1
      %s2908 = scalar_select %p2907, %s18, 1
      %s2909 = scalar_lea.vmem %s7, %s2908
      // Predicated region
      $region49: #{forward.1} parent=47 // pred_check
        %p2910 = pneg %p188
      $region50: #{forward.1} parent=47 // pred_check_branch
        %2912 = sbr.rel (%p2910) target = $region52
      $region51: #{forward.1} parent=47 // pred_region
        _
      $region52: #{forward.1} parent=47 // pred_fallthru
        _
    $region48: #{forward.1} parent=5 // pred_fallthru
      _
    %p2913 = scmp.le.s32.totalorder 2, %s13
    // Predicated region
    $region53: #{forward.1} parent=5 // pred_check
      %p2914 = pneg %p2913
    $region54: #{forward.1} parent=5 // pred_check_branch
      %2916 = sbr.rel (%p2914) target = $region56
    $region55: #{forward.1} parent=5 // pred_region
      %s2917 = ssub.s32 %s13, 2
      // Predicated region
      $region57: #{forward.1} parent=55 // pred_check
        %p2918 = pneg %p194
      $region58: #{forward.1} parent=55 // pred_check_branch
        %2920 = sbr.rel (%p2918) target = $region60
      $region59: #{forward.1} parent=55 // pred_region
        %p2921 = scmp.lt.s32.totalorder %s19, 1
        %s2922 = scalar_select %p2921, %s19, 1
        %s2923 = scalar_lea.vmem %s7, %s2922
      $region60: #{forward.1} parent=55 // pred_fallthru
        _
    $region56: #{forward.1} parent=5 // pred_fallthru
      _
  $region6: #{forward.1} parent=0 // loop_footer
    %s17 = sadd.s32 1, %s13
  $region7: #{forward.1} parent=0 // loop_footer_branch
    %12 = sbr.rel target = $region3
  $region8: #{forward.1} parent=0 // loop_exit
    _

</llo_original>
